<compile_context>
chip_gen: v5e
topology: v5e:2x2
jax: 0.10.0
libtpu: 0.0.40
codegen_flags: <defaults>
</compile_context>

<pallas_src>
import jax
import jax.numpy as jnp
import numpy as np
from jax import lax
from jax.experimental import pallas as pl
from jax.experimental.pallas import tpu as pltpu


# ------------------------------ fused kernel ---------------------------------
def _make_fused_kernel(H, W):
    """Builds the fused 4-layer conv kernel for an (H, W) spatial input."""
    C1, C2, C3, C4 = 16, 64, 32, 64
    H1, W1 = H + 2, W + 2                          # conv1 out (1x1, pad 1)
    H2, W2 = (H1 - 3) // 2 + 1, (W1 - 3) // 2 + 1  # conv2 out (3x3, s=2, p=0)
    H3, W3 = H2 + 2, W2 + 2                        # conv3 out (1x1, pad 1)
    H3p, W3p = H3 + 2, W3 + 2                      # conv4 padded input (p=1)
    H4, W4 = H3, W3                                # conv4 out (3x3, s=1, p=1)

    def kernel(x_ref, w1_ref, b1_ref, w2_ref, b2_ref, w3_ref, b3_ref,
               w4_ref, b4_ref, o_ref, act1, xs2, act3p, xs4):
        f32 = jnp.float32

        # ---- conv1: 1x1, Cin=3 -> 16, as VPU pointwise FMAs on the padded
        #      (H1, W1) grid (the zero-padded ring becomes relu(b1) exactly).
        w1 = w1_ref[...]                                         # (3, C1)
        y1 = (x_ref[:, 0:1] * w1[0:1, :] + x_ref[:, 1:2] * w1[1:2, :]
              + x_ref[:, 2:3] * w1[2:3, :] + b1_ref[...])
        act1[...] = jnp.maximum(y1, 0.0)                         # (H1*W1, C1)

        # ---- conv2: 3x3, stride 2, pad 0 -> 9 shifted-slab matmuls ----------
        y2 = jnp.broadcast_to(b2_ref[...], (H2 * W2, C2))
        for kh in range(3):
            for kw in range(3):
                for oh in range(H2):
                    src = (2 * oh + kh) * W1 + kw
                    xs2[oh * W2:(oh + 1) * W2, :] = (
                        act1[pl.ds(src, W2, stride=2), :])
                y2 = y2 + jnp.dot(xs2[...], w2_ref[kh * 3 + kw],
                                  preferred_element_type=f32)
        y2 = jnp.maximum(y2, 0.0)                                # (H2*W2, C2)

        # ---- conv3: 1x1, pad 1 (ring = relu(b3)), fused with conv4's zero
        #      padding: assemble conv4's (H3p, W3p) input directly in VMEM ----
        y3 = jnp.dot(y2, w3_ref[...], preferred_element_type=f32) + b3_ref[...]
        y3 = jnp.maximum(y3, 0.0)                                # (H2*W2, C3)
        rb3 = jnp.broadcast_to(jnp.maximum(b3_ref[...], 0.0), (W3, C3))
        act3p[...] = jnp.zeros((H3p * W3p, C3), f32)             # conv4 zeros
        for r in range(1, H3 + 1):                               # conv3 ring
            act3p[r * W3p + 1:r * W3p + 1 + W3, :] = rb3
        for r in range(H2):                                      # conv3 core
            base = (r + 2) * W3p + 2
            act3p[base:base + W2, :] = y3[r * W2:(r + 1) * W2, :]

        # ---- conv4: 3x3, stride 1 (padding already in act3p) ----------------
        y4 = jnp.broadcast_to(b4_ref[...], (H4 * W4, C4))
        for kh in range(3):
            for kw in range(3):
                for oh in range(H4):
                    src = (oh + kh) * W3p + kw
                    xs4[oh * W4:(oh + 1) * W4, :] = act3p[src:src + W4, :]
                y4 = y4 + jnp.dot(xs4[...], w4_ref[kh * 3 + kw],
                                  preferred_element_type=f32)
        o_ref[...] = jnp.maximum(y4, 0.0)                        # (H4*W4, C4)

    dims = dict(H1=H1, W1=W1, H2=H2, W2=W2, H3=H3, W3=W3, H3p=H3p, W3p=W3p,
                H4=H4, W4=W4, C1=C1, C2=C2, C3=C3, C4=C4)
    return kernel, dims


def fused_model_forward(x_nchw, prep):
    """x_nchw: (N, 3, H, W) f32 -> (N, 64, H4, W4) f32, one fused Pallas call."""
    w1m, b1, w2m, b2, w3m, b3, w4m, b4 = prep
    N, Cin, H, W = x_nchw.shape
    assert Cin == 3
    kernel, d = _make_fused_kernel(H, W)
    H1, W1, C1 = d["H1"], d["W1"], d["C1"]
    H2, W2, C2 = d["H2"], d["W2"], d["C2"]
    H3p, W3p, C3 = d["H3p"], d["W3p"], d["C3"]
    H4, W4, C4 = d["H4"], d["W4"], d["C4"]

    # One NCHW->NHWC transpose + conv1's zero padding + flatten (6 KB input).
    v = jnp.transpose(x_nchw, (0, 2, 3, 1))
    v = jnp.pad(v, ((0, 0), (1, 1), (1, 1), (0, 0)))
    v = v.reshape(N, H1 * W1, Cin)

    out = pl.pallas_call(
        kernel,
        out_shape=jax.ShapeDtypeStruct((N, H4 * W4, C4), jnp.float32),
        grid=(N,),
        in_specs=[
            pl.BlockSpec((None, H1 * W1, Cin), lambda b: (b, 0, 0)),
            pl.BlockSpec((Cin, C1), lambda b: (0, 0)),
            pl.BlockSpec((1, C1), lambda b: (0, 0)),
            pl.BlockSpec((9, C1, C2), lambda b: (0, 0, 0)),
            pl.BlockSpec((1, C2), lambda b: (0, 0)),
            pl.BlockSpec((C2, C3), lambda b: (0, 0)),
            pl.BlockSpec((1, C3), lambda b: (0, 0)),
            pl.BlockSpec((9, C3, C4), lambda b: (0, 0, 0)),
            pl.BlockSpec((1, C4), lambda b: (0, 0)),
        ],
        out_specs=pl.BlockSpec((None, H4 * W4, C4), lambda b: (b, 0, 0)),
        scratch_shapes=[
            pltpu.VMEM((H1 * W1, C1), jnp.float32),   # conv1 output
            pltpu.VMEM((H2 * W2, C1), jnp.float32),   # conv2 per-tap patch slab
            pltpu.VMEM((H3p * W3p, C3), jnp.float32),  # conv4 padded input
            pltpu.VMEM((H4 * W4, C3), jnp.float32),   # conv4 per-tap patch slab
        ],
        compiler_params=pltpu.CompilerParams(
            dimension_semantics=("parallel",)),
    )(v, w1m, b1, w2m, b2, w3m, b3, w4m, b4)

    out = out.reshape(N, H4, W4, C4)
    return jnp.transpose(out, (0, 3, 1, 2))            # back to NCHW once


# ------------------------------ params ---------------------------------------
def init_conv_params(key, cout, cin, kh, kw):
    kw_key, kb_key = jax.random.split(key)
    fan_in = cin * kh * kw
    bound = 1.0 / np.sqrt(fan_in)
    w = jax.random.uniform(kw_key, (cout, cin, kh, kw), jnp.float32, -bound, bound)
    b = jax.random.uniform(kb_key, (cout,), jnp.float32, -bound, bound)
    return w, b


def init_model_params(key):
    k1, k2, k3, k4 = jax.random.split(key, 4)
    return (
        init_conv_params(k1, 16, 3, 1, 1),    # conv1
        init_conv_params(k2, 64, 16, 3, 3),   # conv2
        init_conv_params(k3, 32, 64, 1, 1),   # conv3
        init_conv_params(k4, 64, 32, 3, 3),   # conv4
    )


def prepare_params(params):
    """Hoisted (one-time) relayout of weights/biases into matmul form."""
    (w1, b1), (w2, b2), (w3, b3), (w4, b4) = params
    w1m = jnp.transpose(w1[:, :, 0, 0], (1, 0))                    # (3, 16)
    w2m = jnp.transpose(w2, (2, 3, 1, 0)).reshape(9, 16, 64)       # (tap, Ci, Co)
    w3m = jnp.transpose(w3[:, :, 0, 0], (1, 0))                    # (64, 32)
    w4m = jnp.transpose(w4, (2, 3, 1, 0)).reshape(9, 32, 64)       # (tap, Ci, Co)
    return (w1m, b1.reshape(1, -1), w2m, b2.reshape(1, -1),
            w3m, b3.reshape(1, -1), w4m, b4.reshape(1, -1))


# ---------------------------- pure-JAX reference ------------------------------
def conv2d_relu_ref(x, w, b, stride, padding):
    y = lax.conv_general_dilated(
        x, w, window_strides=(stride, stride),
        padding=[(padding, padding), (padding, padding)],
        dimension_numbers=("NCHW", "OIHW", "NCHW"),
        precision=lax.Precision.HIGHEST)
    return jnp.maximum(y + b[None, :, None, None], 0.0)


def model_forward_ref(x, params):
    (w1, b1), (w2, b2), (w3, b3), (w4, b4) = params
    v = conv2d_relu_ref(x, w1, b1, 1, 1)
    v = conv2d_relu_ref(v, w2, b2, 2, 0)
    v = conv2d_relu_ref(v, w3, b3, 1, 1)
    v = conv2d_relu_ref(v, w4, b4, 1, 1)
    return v


# --------------------------------- main ---------------------------------------
if __name__ == "__main__":
    key = jax.random.PRNGKey(0)
    kx, kp = jax.random.split(key)

    x = jax.random.normal(kx, (2, 3, 16, 16), jnp.float32)
    params = init_model_params(kp)
    prep = prepare_params(params)           # one-time weight relayout (hoisted)

    fwd = jax.jit(fused_model_forward)
    out = jax.block_until_ready(fwd(x, prep))

    ref = jax.block_until_ready(model_forward_ref(x, params))
    assert out.shape == ref.shape == (2, 64, 10, 10), (out.shape, ref.shape)
    np.testing.assert_allclose(np.asarray(out), np.asarray(ref),
                               rtol=1e-2, atol=1e-2)

    print("KERNEL_OK")
</pallas_src>

<mosaic_0001>
module attributes {stable_mosaic.version = 11 : i64} {
  func.func @kernel(%arg0: i32, %arg1: memref<1x324x3xf32, #tpu.memory_space<vmem>>, %arg2: memref<3x16xf32, #tpu.memory_space<vmem>>, %arg3: memref<1x16xf32, #tpu.memory_space<vmem>>, %arg4: memref<9x16x64xf32, #tpu.memory_space<vmem>>, %arg5: memref<1x64xf32, #tpu.memory_space<vmem>>, %arg6: memref<64x32xf32, #tpu.memory_space<vmem>>, %arg7: memref<1x32xf32, #tpu.memory_space<vmem>>, %arg8: memref<9x32x64xf32, #tpu.memory_space<vmem>>, %arg9: memref<1x64xf32, #tpu.memory_space<vmem>>, %arg10: memref<1x100x64xf32, #tpu.memory_space<vmem>>, %arg11: memref<324x16xf32, #tpu.memory_space<vmem>>, %arg12: memref<64x16xf32, #tpu.memory_space<vmem>>, %arg13: memref<144x32xf32, #tpu.memory_space<vmem>>, %arg14: memref<100x32xf32, #tpu.memory_space<vmem>>) attributes {dimension_semantics = [#tpu.dimension_semantics<parallel>], iteration_bounds = array<i64: 2>, scalar_prefetch = 0 : i64, scratch_operands = 4 : i64, tpu.core_type = #tpu.core_type<tc>, window_params = [{transform_indices = @transform_0, window_bounds = array<i64: 1, 324, 3>}, {pipeline_mode = #tpu.pipeline_mode<synchronous>, transform_indices = @transform_1, window_bounds = array<i64: 3, 16>}, {pipeline_mode = #tpu.pipeline_mode<synchronous>, transform_indices = @transform_2, window_bounds = array<i64: 1, 16>}, {pipeline_mode = #tpu.pipeline_mode<synchronous>, transform_indices = @transform_3, window_bounds = array<i64: 9, 16, 64>}, {pipeline_mode = #tpu.pipeline_mode<synchronous>, transform_indices = @transform_4, window_bounds = array<i64: 1, 64>}, {pipeline_mode = #tpu.pipeline_mode<synchronous>, transform_indices = @transform_5, window_bounds = array<i64: 64, 32>}, {pipeline_mode = #tpu.pipeline_mode<synchronous>, transform_indices = @transform_6, window_bounds = array<i64: 1, 32>}, {pipeline_mode = #tpu.pipeline_mode<synchronous>, transform_indices = @transform_7, window_bounds = array<i64: 9, 32, 64>}, {pipeline_mode = #tpu.pipeline_mode<synchronous>, transform_indices = @transform_8, window_bounds = array<i64: 1, 64>}, {transform_indices = @transform_9, window_bounds = array<i64: 1, 100, 64>}]} {
    %c0 = arith.constant 0 : index
    %c0_0 = arith.constant 0 : index
    %0 = vector.load %arg2[%c0, %c0_0] : memref<3x16xf32, #tpu.memory_space<vmem>>, vector<3x16xf32>
    %c0_1 = arith.constant 0 : index
    %c0_2 = arith.constant 0 : index
    %c0_3 = arith.constant 0 : index
    %1 = vector.load %arg1[%c0_1, %c0_2, %c0_3] : memref<1x324x3xf32, #tpu.memory_space<vmem>>, vector<1x324x1xf32>
    %2 = vector.shape_cast %1 : vector<1x324x1xf32> to vector<324x1xf32>
    %3 = vector.extract_strided_slice %0 {offsets = [0, 0], sizes = [1, 16], strides = [1, 1]} : vector<3x16xf32> to vector<1x16xf32>
    %4 = vector.broadcast %2 : vector<324x1xf32> to vector<324x16xf32>
    %5 = vector.broadcast %3 : vector<1x16xf32> to vector<324x16xf32>
    %6 = arith.mulf %4, %5 : vector<324x16xf32>
    %c0_4 = arith.constant 0 : index
    %c0_5 = arith.constant 0 : index
    %c1 = arith.constant 1 : index
    %7 = vector.load %arg1[%c0_4, %c0_5, %c1] : memref<1x324x3xf32, #tpu.memory_space<vmem>>, vector<1x324x1xf32>
    %8 = vector.shape_cast %7 : vector<1x324x1xf32> to vector<324x1xf32>
    %9 = vector.extract_strided_slice %0 {offsets = [1, 0], sizes = [1, 16], strides = [1, 1]} : vector<3x16xf32> to vector<1x16xf32>
    %10 = vector.broadcast %8 : vector<324x1xf32> to vector<324x16xf32>
    %11 = vector.broadcast %9 : vector<1x16xf32> to vector<324x16xf32>
    %12 = arith.mulf %10, %11 : vector<324x16xf32>
    %13 = arith.addf %6, %12 : vector<324x16xf32>
    %c0_6 = arith.constant 0 : index
    %c0_7 = arith.constant 0 : index
    %c2 = arith.constant 2 : index
    %14 = vector.load %arg1[%c0_6, %c0_7, %c2] : memref<1x324x3xf32, #tpu.memory_space<vmem>>, vector<1x324x1xf32>
    %15 = vector.shape_cast %14 : vector<1x324x1xf32> to vector<324x1xf32>
    %16 = vector.extract_strided_slice %0 {offsets = [2, 0], sizes = [1, 16], strides = [1, 1]} : vector<3x16xf32> to vector<1x16xf32>
    %17 = vector.broadcast %15 : vector<324x1xf32> to vector<324x16xf32>
    %18 = vector.broadcast %16 : vector<1x16xf32> to vector<324x16xf32>
    %19 = arith.mulf %17, %18 : vector<324x16xf32>
    %20 = arith.addf %13, %19 : vector<324x16xf32>
    %c0_8 = arith.constant 0 : index
    %c0_9 = arith.constant 0 : index
    %21 = vector.load %arg3[%c0_8, %c0_9] : memref<1x16xf32, #tpu.memory_space<vmem>>, vector<1x16xf32>
    %22 = vector.broadcast %21 : vector<1x16xf32> to vector<324x16xf32>
    %23 = arith.addf %20, %22 : vector<324x16xf32>
    %cst = arith.constant 0.000000e+00 : f32
    %24 = vector.broadcast %cst : f32 to vector<324x16xf32>
    %25 = arith.maximumf %23, %24 : vector<324x16xf32>
    %c0_10 = arith.constant 0 : index
    %c0_11 = arith.constant 0 : index
    %26 = vector.load %arg11[%c0_10, %c0_11] : memref<324x16xf32, #tpu.memory_space<vmem>>, vector<324x16xf32>
    tpu.vector_store %arg11[%c0_10, %c0_11], %25 {strides = array<i32>} : memref<324x16xf32, #tpu.memory_space<vmem>>, vector<324x16xf32>,
    %c0_12 = arith.constant 0 : index
    %c0_13 = arith.constant 0 : index
    %27 = vector.load %arg5[%c0_12, %c0_13] : memref<1x64xf32, #tpu.memory_space<vmem>>, vector<1x64xf32>
    %28 = vector.shape_cast %27 : vector<1x64xf32> to vector<1x64xf32>
    %29 = vector.broadcast %28 : vector<1x64xf32> to vector<64x64xf32>
    %c0_14 = arith.constant 0 : index
    %c0_15 = arith.constant 0 : index
    %30 = tpu.strided_load %arg11[%c0_14, %c0_15] {strides = array<i32: 2, 1>} : memref<324x16xf32, #tpu.memory_space<vmem>>, vector<8x16xf32>
    %c0_16 = arith.constant 0 : index
    %c0_17 = arith.constant 0 : index
    %31 = vector.load %arg12[%c0_16, %c0_17] : memref<64x16xf32, #tpu.memory_space<vmem>>, vector<8x16xf32>
    tpu.vector_store %arg12[%c0_16, %c0_17], %30 {strides = array<i32>} : memref<64x16xf32, #tpu.memory_space<vmem>>, vector<8x16xf32>,
    %c36 = arith.constant 36 : index
    %c0_18 = arith.constant 0 : index
    %32 = tpu.strided_load %arg11[%c36, %c0_18] {strides = array<i32: 2, 1>} : memref<324x16xf32, #tpu.memory_space<vmem>>, vector<8x16xf32>
    %c8 = arith.constant 8 : index
    %c0_19 = arith.constant 0 : index
    %33 = vector.load %arg12[%c8, %c0_19] : memref<64x16xf32, #tpu.memory_space<vmem>>, vector<8x16xf32>
    tpu.vector_store %arg12[%c8, %c0_19], %32 {strides = array<i32>} : memref<64x16xf32, #tpu.memory_space<vmem>>, vector<8x16xf32>,
    %c72 = arith.constant 72 : index
    %c0_20 = arith.constant 0 : index
    %34 = tpu.strided_load %arg11[%c72, %c0_20] {strides = array<i32: 2, 1>} : memref<324x16xf32, #tpu.memory_space<vmem>>, vector<8x16xf32>
    %c16 = arith.constant 16 : index
    %c0_21 = arith.constant 0 : index
    %35 = vector.load %arg12[%c16, %c0_21] : memref<64x16xf32, #tpu.memory_space<vmem>>, vector<8x16xf32>
    tpu.vector_store %arg12[%c16, %c0_21], %34 {strides = array<i32>} : memref<64x16xf32, #tpu.memory_space<vmem>>, vector<8x16xf32>,
    %c108 = arith.constant 108 : index
    %c0_22 = arith.constant 0 : index
    %36 = tpu.strided_load %arg11[%c108, %c0_22] {strides = array<i32: 2, 1>} : memref<324x16xf32, #tpu.memory_space<vmem>>, vector<8x16xf32>
    %c24 = arith.constant 24 : index
    %c0_23 = arith.constant 0 : index
    %37 = vector.load %arg12[%c24, %c0_23] : memref<64x16xf32, #tpu.memory_space<vmem>>, vector<8x16xf32>
    tpu.vector_store %arg12[%c24, %c0_23], %36 {strides = array<i32>} : memref<64x16xf32, #tpu.memory_space<vmem>>, vector<8x16xf32>,
    %c144 = arith.constant 144 : index
    %c0_24 = arith.constant 0 : index
    %38 = tpu.strided_load %arg11[%c144, %c0_24] {strides = array<i32: 2, 1>} : memref<324x16xf32, #tpu.memory_space<vmem>>, vector<8x16xf32>
    %c32 = arith.constant 32 : index
    %c0_25 = arith.constant 0 : index
    %39 = vector.load %arg12[%c32, %c0_25] : memref<64x16xf32, #tpu.memory_space<vmem>>, vector<8x16xf32>
    tpu.vector_store %arg12[%c32, %c0_25], %38 {strides = array<i32>} : memref<64x16xf32, #tpu.memory_space<vmem>>, vector<8x16xf32>,
    %c180 = arith.constant 180 : index
    %c0_26 = arith.constant 0 : index
    %40 = tpu.strided_load %arg11[%c180, %c0_26] {strides = array<i32: 2, 1>} : memref<324x16xf32, #tpu.memory_space<vmem>>, vector<8x16xf32>
    %c40 = arith.constant 40 : index
    %c0_27 = arith.constant 0 : index
    %41 = vector.load %arg12[%c40, %c0_27] : memref<64x16xf32, #tpu.memory_space<vmem>>, vector<8x16xf32>
    tpu.vector_store %arg12[%c40, %c0_27], %40 {strides = array<i32>} : memref<64x16xf32, #tpu.memory_space<vmem>>, vector<8x16xf32>,
    %c216 = arith.constant 216 : index
    %c0_28 = arith.constant 0 : index
    %42 = tpu.strided_load %arg11[%c216, %c0_28] {strides = array<i32: 2, 1>} : memref<324x16xf32, #tpu.memory_space<vmem>>, vector<8x16xf32>
    %c48 = arith.constant 48 : index
    %c0_29 = arith.constant 0 : index
    %43 = vector.load %arg12[%c48, %c0_29] : memref<64x16xf32, #tpu.memory_space<vmem>>, vector<8x16xf32>
    tpu.vector_store %arg12[%c48, %c0_29], %42 {strides = array<i32>} : memref<64x16xf32, #tpu.memory_space<vmem>>, vector<8x16xf32>,
    %c252 = arith.constant 252 : index
    %c0_30 = arith.constant 0 : index
    %44 = tpu.strided_load %arg11[%c252, %c0_30] {strides = array<i32: 2, 1>} : memref<324x16xf32, #tpu.memory_space<vmem>>, vector<8x16xf32>
    %c56 = arith.constant 56 : index
    %c0_31 = arith.constant 0 : index
    %45 = vector.load %arg12[%c56, %c0_31] : memref<64x16xf32, #tpu.memory_space<vmem>>, vector<8x16xf32>
    tpu.vector_store %arg12[%c56, %c0_31], %44 {strides = array<i32>} : memref<64x16xf32, #tpu.memory_space<vmem>>, vector<8x16xf32>,
    %c0_32 = arith.constant 0 : index
    %c0_33 = arith.constant 0 : index
    %46 = vector.load %arg12[%c0_32, %c0_33] : memref<64x16xf32, #tpu.memory_space<vmem>>, vector<64x16xf32>
    %c0_34 = arith.constant 0 : index
    %c0_35 = arith.constant 0 : index
    %c0_36 = arith.constant 0 : index
    %47 = vector.load %arg4[%c0_34, %c0_35, %c0_36] : memref<9x16x64xf32, #tpu.memory_space<vmem>>, vector<1x16x64xf32>
    %48 = vector.shape_cast %47 : vector<1x16x64xf32> to vector<16x64xf32>
    %cst_37 = arith.constant dense<0.000000e+00> : vector<64x64xf32>
    %49 = tpu.matmul %46, %48, %cst_37 {dimension_numbers = #tpu.dot_dimension_numbers<[1], [0], [0], [1], [0, 0, 1, 1], [], []>} : vector<64x16xf32>, vector<16x64xf32>, vector<64x64xf32> -> vector<64x64xf32>
    %50 = arith.addf %29, %49 : vector<64x64xf32>
    %c1_38 = arith.constant 1 : index
    %c0_39 = arith.constant 0 : index
    %51 = tpu.strided_load %arg11[%c1_38, %c0_39] {strides = array<i32: 2, 1>} : memref<324x16xf32, #tpu.memory_space<vmem>>, vector<8x16xf32>
    %c0_40 = arith.constant 0 : index
    %c0_41 = arith.constant 0 : index
    %52 = vector.load %arg12[%c0_40, %c0_41] : memref<64x16xf32, #tpu.memory_space<vmem>>, vector<8x16xf32>
    tpu.vector_store %arg12[%c0_40, %c0_41], %51 {strides = array<i32>} : memref<64x16xf32, #tpu.memory_space<vmem>>, vector<8x16xf32>,
    %c37 = arith.constant 37 : index
    %c0_42 = arith.constant 0 : index
    %53 = tpu.strided_load %arg11[%c37, %c0_42] {strides = array<i32: 2, 1>} : memref<324x16xf32, #tpu.memory_space<vmem>>, vector<8x16xf32>
    %c8_43 = arith.constant 8 : index
    %c0_44 = arith.constant 0 : index
    %54 = vector.load %arg12[%c8_43, %c0_44] : memref<64x16xf32, #tpu.memory_space<vmem>>, vector<8x16xf32>
    tpu.vector_store %arg12[%c8_43, %c0_44], %53 {strides = array<i32>} : memref<64x16xf32, #tpu.memory_space<vmem>>, vector<8x16xf32>,
    %c73 = arith.constant 73 : index
    %c0_45 = arith.constant 0 : index
    %55 = tpu.strided_load %arg11[%c73, %c0_45] {strides = array<i32: 2, 1>} : memref<324x16xf32, #tpu.memory_space<vmem>>, vector<8x16xf32>
    %c16_46 = arith.constant 16 : index
    %c0_47 = arith.constant 0 : index
    %56 = vector.load %arg12[%c16_46, %c0_47] : memref<64x16xf32, #tpu.memory_space<vmem>>, vector<8x16xf32>
    tpu.vector_store %arg12[%c16_46, %c0_47], %55 {strides = array<i32>} : memref<64x16xf32, #tpu.memory_space<vmem>>, vector<8x16xf32>,
    %c109 = arith.constant 109 : index
    %c0_48 = arith.constant 0 : index
    %57 = tpu.strided_load %arg11[%c109, %c0_48] {strides = array<i32: 2, 1>} : memref<324x16xf32, #tpu.memory_space<vmem>>, vector<8x16xf32>
    %c24_49 = arith.constant 24 : index
    %c0_50 = arith.constant 0 : index
    %58 = vector.load %arg12[%c24_49, %c0_50] : memref<64x16xf32, #tpu.memory_space<vmem>>, vector<8x16xf32>
    tpu.vector_store %arg12[%c24_49, %c0_50], %57 {strides = array<i32>} : memref<64x16xf32, #tpu.memory_space<vmem>>, vector<8x16xf32>,
    %c145 = arith.constant 145 : index
    %c0_51 = arith.constant 0 : index
    %59 = tpu.strided_load %arg11[%c145, %c0_51] {strides = array<i32: 2, 1>} : memref<324x16xf32, #tpu.memory_space<vmem>>, vector<8x16xf32>
    %c32_52 = arith.constant 32 : index
    %c0_53 = arith.constant 0 : index
    %60 = vector.load %arg12[%c32_52, %c0_53] : memref<64x16xf32, #tpu.memory_space<vmem>>, vector<8x16xf32>
    tpu.vector_store %arg12[%c32_52, %c0_53], %59 {strides = array<i32>} : memref<64x16xf32, #tpu.memory_space<vmem>>, vector<8x16xf32>,
    %c181 = arith.constant 181 : index
    %c0_54 = arith.constant 0 : index
    %61 = tpu.strided_load %arg11[%c181, %c0_54] {strides = array<i32: 2, 1>} : memref<324x16xf32, #tpu.memory_space<vmem>>, vector<8x16xf32>
    %c40_55 = arith.constant 40 : index
    %c0_56 = arith.constant 0 : index
    %62 = vector.load %arg12[%c40_55, %c0_56] : memref<64x16xf32, #tpu.memory_space<vmem>>, vector<8x16xf32>
    tpu.vector_store %arg12[%c40_55, %c0_56], %61 {strides = array<i32>} : memref<64x16xf32, #tpu.memory_space<vmem>>, vector<8x16xf32>,
    %c217 = arith.constant 217 : index
    %c0_57 = arith.constant 0 : index
    %63 = tpu.strided_load %arg11[%c217, %c0_57] {strides = array<i32: 2, 1>} : memref<324x16xf32, #tpu.memory_space<vmem>>, vector<8x16xf32>
    %c48_58 = arith.constant 48 : index
    %c0_59 = arith.constant 0 : index
    %64 = vector.load %arg12[%c48_58, %c0_59] : memref<64x16xf32, #tpu.memory_space<vmem>>, vector<8x16xf32>
    tpu.vector_store %arg12[%c48_58, %c0_59], %63 {strides = array<i32>} : memref<64x16xf32, #tpu.memory_space<vmem>>, vector<8x16xf32>,
    %c253 = arith.constant 253 : index
    %c0_60 = arith.constant 0 : index
    %65 = tpu.strided_load %arg11[%c253, %c0_60] {strides = array<i32: 2, 1>} : memref<324x16xf32, #tpu.memory_space<vmem>>, vector<8x16xf32>
    %c56_61 = arith.constant 56 : index
    %c0_62 = arith.constant 0 : index
    %66 = vector.load %arg12[%c56_61, %c0_62] : memref<64x16xf32, #tpu.memory_space<vmem>>, vector<8x16xf32>
    tpu.vector_store %arg12[%c56_61, %c0_62], %65 {strides = array<i32>} : memref<64x16xf32, #tpu.memory_space<vmem>>, vector<8x16xf32>,
    %c0_63 = arith.constant 0 : index
    %c0_64 = arith.constant 0 : index
    %67 = vector.load %arg12[%c0_63, %c0_64] : memref<64x16xf32, #tpu.memory_space<vmem>>, vector<64x16xf32>
    %c1_65 = arith.constant 1 : index
    %c0_66 = arith.constant 0 : index
    %c0_67 = arith.constant 0 : index
    %68 = vector.load %arg4[%c1_65, %c0_66, %c0_67] : memref<9x16x64xf32, #tpu.memory_space<vmem>>, vector<1x16x64xf32>
    %69 = vector.shape_cast %68 : vector<1x16x64xf32> to vector<16x64xf32>
    %cst_68 = arith.constant dense<0.000000e+00> : vector<64x64xf32>
    %70 = tpu.matmul %67, %69, %cst_68 {dimension_numbers = #tpu.dot_dimension_numbers<[1], [0], [0], [1], [0, 0, 1, 1], [], []>} : vector<64x16xf32>, vector<16x64xf32>, vector<64x64xf32> -> vector<64x64xf32>
    %71 = arith.addf %50, %70 : vector<64x64xf32>
    %c2_69 = arith.constant 2 : index
    %c0_70 = arith.constant 0 : index
    %72 = tpu.strided_load %arg11[%c2_69, %c0_70] {strides = array<i32: 2, 1>} : memref<324x16xf32, #tpu.memory_space<vmem>>, vector<8x16xf32>
    %c0_71 = arith.constant 0 : index
    %c0_72 = arith.constant 0 : index
    %73 = vector.load %arg12[%c0_71, %c0_72] : memref<64x16xf32, #tpu.memory_space<vmem>>, vector<8x16xf32>
    tpu.vector_store %arg12[%c0_71, %c0_72], %72 {strides = array<i32>} : memref<64x16xf32, #tpu.memory_space<vmem>>, vector<8x16xf32>,
    %c38 = arith.constant 38 : index
    %c0_73 = arith.constant 0 : index
    %74 = tpu.strided_load %arg11[%c38, %c0_73] {strides = array<i32: 2, 1>} : memref<324x16xf32, #tpu.memory_space<vmem>>, vector<8x16xf32>
    %c8_74 = arith.constant 8 : index
    %c0_75 = arith.constant 0 : index
    %75 = vector.load %arg12[%c8_74, %c0_75] : memref<64x16xf32, #tpu.memory_space<vmem>>, vector<8x16xf32>
    tpu.vector_store %arg12[%c8_74, %c0_75], %74 {strides = array<i32>} : memref<64x16xf32, #tpu.memory_space<vmem>>, vector<8x16xf32>,
    %c74 = arith.constant 74 : index
    %c0_76 = arith.constant 0 : index
    %76 = tpu.strided_load %arg11[%c74, %c0_76] {strides = array<i32: 2, 1>} : memref<324x16xf32, #tpu.memory_space<vmem>>, vector<8x16xf32>
    %c16_77 = arith.constant 16 : index
    %c0_78 = arith.constant 0 : index
    %77 = vector.load %arg12[%c16_77, %c0_78] : memref<64x16xf32, #tpu.memory_space<vmem>>, vector<8x16xf32>
    tpu.vector_store %arg12[%c16_77, %c0_78], %76 {strides = array<i32>} : memref<64x16xf32, #tpu.memory_space<vmem>>, vector<8x16xf32>,
    %c110 = arith.constant 110 : index
    %c0_79 = arith.constant 0 : index
    %78 = tpu.strided_load %arg11[%c110, %c0_79] {strides = array<i32: 2, 1>} : memref<324x16xf32, #tpu.memory_space<vmem>>, vector<8x16xf32>
    %c24_80 = arith.constant 24 : index
    %c0_81 = arith.constant 0 : index
    %79 = vector.load %arg12[%c24_80, %c0_81] : memref<64x16xf32, #tpu.memory_space<vmem>>, vector<8x16xf32>
    tpu.vector_store %arg12[%c24_80, %c0_81], %78 {strides = array<i32>} : memref<64x16xf32, #tpu.memory_space<vmem>>, vector<8x16xf32>,
    %c146 = arith.constant 146 : index
    %c0_82 = arith.constant 0 : index
    %80 = tpu.strided_load %arg11[%c146, %c0_82] {strides = array<i32: 2, 1>} : memref<324x16xf32, #tpu.memory_space<vmem>>, vector<8x16xf32>
    %c32_83 = arith.constant 32 : index
    %c0_84 = arith.constant 0 : index
    %81 = vector.load %arg12[%c32_83, %c0_84] : memref<64x16xf32, #tpu.memory_space<vmem>>, vector<8x16xf32>
    tpu.vector_store %arg12[%c32_83, %c0_84], %80 {strides = array<i32>} : memref<64x16xf32, #tpu.memory_space<vmem>>, vector<8x16xf32>,
    %c182 = arith.constant 182 : index
    %c0_85 = arith.constant 0 : index
    %82 = tpu.strided_load %arg11[%c182, %c0_85] {strides = array<i32: 2, 1>} : memref<324x16xf32, #tpu.memory_space<vmem>>, vector<8x16xf32>
    %c40_86 = arith.constant 40 : index
    %c0_87 = arith.constant 0 : index
    %83 = vector.load %arg12[%c40_86, %c0_87] : memref<64x16xf32, #tpu.memory_space<vmem>>, vector<8x16xf32>
    tpu.vector_store %arg12[%c40_86, %c0_87], %82 {strides = array<i32>} : memref<64x16xf32, #tpu.memory_space<vmem>>, vector<8x16xf32>,
    %c218 = arith.constant 218 : index
    %c0_88 = arith.constant 0 : index
    %84 = tpu.strided_load %arg11[%c218, %c0_88] {strides = array<i32: 2, 1>} : memref<324x16xf32, #tpu.memory_space<vmem>>, vector<8x16xf32>
    %c48_89 = arith.constant 48 : index
    %c0_90 = arith.constant 0 : index
    %85 = vector.load %arg12[%c48_89, %c0_90] : memref<64x16xf32, #tpu.memory_space<vmem>>, vector<8x16xf32>
    tpu.vector_store %arg12[%c48_89, %c0_90], %84 {strides = array<i32>} : memref<64x16xf32, #tpu.memory_space<vmem>>, vector<8x16xf32>,
    %c254 = arith.constant 254 : index
    %c0_91 = arith.constant 0 : index
    %86 = tpu.strided_load %arg11[%c254, %c0_91] {strides = array<i32: 2, 1>} : memref<324x16xf32, #tpu.memory_space<vmem>>, vector<8x16xf32>
    %c56_92 = arith.constant 56 : index
    %c0_93 = arith.constant 0 : index
    %87 = vector.load %arg12[%c56_92, %c0_93] : memref<64x16xf32, #tpu.memory_space<vmem>>, vector<8x16xf32>
    tpu.vector_store %arg12[%c56_92, %c0_93], %86 {strides = array<i32>} : memref<64x16xf32, #tpu.memory_space<vmem>>, vector<8x16xf32>,
    %c0_94 = arith.constant 0 : index
    %c0_95 = arith.constant 0 : index
    %88 = vector.load %arg12[%c0_94, %c0_95] : memref<64x16xf32, #tpu.memory_space<vmem>>, vector<64x16xf32>
    %c2_96 = arith.constant 2 : index
    %c0_97 = arith.constant 0 : index
    %c0_98 = arith.constant 0 : index
    %89 = vector.load %arg4[%c2_96, %c0_97, %c0_98] : memref<9x16x64xf32, #tpu.memory_space<vmem>>, vector<1x16x64xf32>
    %90 = vector.shape_cast %89 : vector<1x16x64xf32> to vector<16x64xf32>
    %cst_99 = arith.constant dense<0.000000e+00> : vector<64x64xf32>
    %91 = tpu.matmul %88, %90, %cst_99 {dimension_numbers = #tpu.dot_dimension_numbers<[1], [0], [0], [1], [0, 0, 1, 1], [], []>} : vector<64x16xf32>, vector<16x64xf32>, vector<64x64xf32> -> vector<64x64xf32>
    %92 = arith.addf %71, %91 : vector<64x64xf32>
    %c18 = arith.constant 18 : index
    %c0_100 = arith.constant 0 : index
    %93 = tpu.strided_load %arg11[%c18, %c0_100] {strides = array<i32: 2, 1>} : memref<324x16xf32, #tpu.memory_space<vmem>>, vector<8x16xf32>
    %c0_101 = arith.constant 0 : index
    %c0_102 = arith.constant 0 : index
    %94 = vector.load %arg12[%c0_101, %c0_102] : memref<64x16xf32, #tpu.memory_space<vmem>>, vector<8x16xf32>
    tpu.vector_store %arg12[%c0_101, %c0_102], %93 {strides = array<i32>} : memref<64x16xf32, #tpu.memory_space<vmem>>, vector<8x16xf32>,
    %c54 = arith.constant 54 : index
    %c0_103 = arith.constant 0 : index
    %95 = tpu.strided_load %arg11[%c54, %c0_103] {strides = array<i32: 2, 1>} : memref<324x16xf32, #tpu.memory_space<vmem>>, vector<8x16xf32>
    %c8_104 = arith.constant 8 : index
    %c0_105 = arith.constant 0 : index
    %96 = vector.load %arg12[%c8_104, %c0_105] : memref<64x16xf32, #tpu.memory_space<vmem>>, vector<8x16xf32>
    tpu.vector_store %arg12[%c8_104, %c0_105], %95 {strides = array<i32>} : memref<64x16xf32, #tpu.memory_space<vmem>>, vector<8x16xf32>,
    %c90 = arith.constant 90 : index
    %c0_106 = arith.constant 0 : index
    %97 = tpu.strided_load %arg11[%c90, %c0_106] {strides = array<i32: 2, 1>} : memref<324x16xf32, #tpu.memory_space<vmem>>, vector<8x16xf32>
    %c16_107 = arith.constant 16 : index
    %c0_108 = arith.constant 0 : index
    %98 = vector.load %arg12[%c16_107, %c0_108] : memref<64x16xf32, #tpu.memory_space<vmem>>, vector<8x16xf32>
    tpu.vector_store %arg12[%c16_107, %c0_108], %97 {strides = array<i32>} : memref<64x16xf32, #tpu.memory_space<vmem>>, vector<8x16xf32>,
    %c126 = arith.constant 126 : index
    %c0_109 = arith.constant 0 : index
    %99 = tpu.strided_load %arg11[%c126, %c0_109] {strides = array<i32: 2, 1>} : memref<324x16xf32, #tpu.memory_space<vmem>>, vector<8x16xf32>
    %c24_110 = arith.constant 24 : index
    %c0_111 = arith.constant 0 : index
    %100 = vector.load %arg12[%c24_110, %c0_111] : memref<64x16xf32, #tpu.memory_space<vmem>>, vector<8x16xf32>
    tpu.vector_store %arg12[%c24_110, %c0_111], %99 {strides = array<i32>} : memref<64x16xf32, #tpu.memory_space<vmem>>, vector<8x16xf32>,
    %c162 = arith.constant 162 : index
    %c0_112 = arith.constant 0 : index
    %101 = tpu.strided_load %arg11[%c162, %c0_112] {strides = array<i32: 2, 1>} : memref<324x16xf32, #tpu.memory_space<vmem>>, vector<8x16xf32>
    %c32_113 = arith.constant 32 : index
    %c0_114 = arith.constant 0 : index
    %102 = vector.load %arg12[%c32_113, %c0_114] : memref<64x16xf32, #tpu.memory_space<vmem>>, vector<8x16xf32>
    tpu.vector_store %arg12[%c32_113, %c0_114], %101 {strides = array<i32>} : memref<64x16xf32, #tpu.memory_space<vmem>>, vector<8x16xf32>,
    %c198 = arith.constant 198 : index
    %c0_115 = arith.constant 0 : index
    %103 = tpu.strided_load %arg11[%c198, %c0_115] {strides = array<i32: 2, 1>} : memref<324x16xf32, #tpu.memory_space<vmem>>, vector<8x16xf32>
    %c40_116 = arith.constant 40 : index
    %c0_117 = arith.constant 0 : index
    %104 = vector.load %arg12[%c40_116, %c0_117] : memref<64x16xf32, #tpu.memory_space<vmem>>, vector<8x16xf32>
    tpu.vector_store %arg12[%c40_116, %c0_117], %103 {strides = array<i32>} : memref<64x16xf32, #tpu.memory_space<vmem>>, vector<8x16xf32>,
    %c234 = arith.constant 234 : index
    %c0_118 = arith.constant 0 : index
    %105 = tpu.strided_load %arg11[%c234, %c0_118] {strides = array<i32: 2, 1>} : memref<324x16xf32, #tpu.memory_space<vmem>>, vector<8x16xf32>
    %c48_119 = arith.constant 48 : index
    %c0_120 = arith.constant 0 : index
    %106 = vector.load %arg12[%c48_119, %c0_120] : memref<64x16xf32, #tpu.memory_space<vmem>>, vector<8x16xf32>
    tpu.vector_store %arg12[%c48_119, %c0_120], %105 {strides = array<i32>} : memref<64x16xf32, #tpu.memory_space<vmem>>, vector<8x16xf32>,
    %c270 = arith.constant 270 : index
    %c0_121 = arith.constant 0 : index
    %107 = tpu.strided_load %arg11[%c270, %c0_121] {strides = array<i32: 2, 1>} : memref<324x16xf32, #tpu.memory_space<vmem>>, vector<8x16xf32>
    %c56_122 = arith.constant 56 : index
    %c0_123 = arith.constant 0 : index
    %108 = vector.load %arg12[%c56_122, %c0_123] : memref<64x16xf32, #tpu.memory_space<vmem>>, vector<8x16xf32>
    tpu.vector_store %arg12[%c56_122, %c0_123], %107 {strides = array<i32>} : memref<64x16xf32, #tpu.memory_space<vmem>>, vector<8x16xf32>,
    %c0_124 = arith.constant 0 : index
    %c0_125 = arith.constant 0 : index
    %109 = vector.load %arg12[%c0_124, %c0_125] : memref<64x16xf32, #tpu.memory_space<vmem>>, vector<64x16xf32>
    %c3 = arith.constant 3 : index
    %c0_126 = arith.constant 0 : index
    %c0_127 = arith.constant 0 : index
    %110 = vector.load %arg4[%c3, %c0_126, %c0_127] : memref<9x16x64xf32, #tpu.memory_space<vmem>>, vector<1x16x64xf32>
    %111 = vector.shape_cast %110 : vector<1x16x64xf32> to vector<16x64xf32>
    %cst_128 = arith.constant dense<0.000000e+00> : vector<64x64xf32>
    %112 = tpu.matmul %109, %111, %cst_128 {dimension_numbers = #tpu.dot_dimension_numbers<[1], [0], [0], [1], [0, 0, 1, 1], [], []>} : vector<64x16xf32>, vector<16x64xf32>, vector<64x64xf32> -> vector<64x64xf32>
    %113 = arith.addf %92, %112 : vector<64x64xf32>
    %c19 = arith.constant 19 : index
    %c0_129 = arith.constant 0 : index
    %114 = tpu.strided_load %arg11[%c19, %c0_129] {strides = array<i32: 2, 1>} : memref<324x16xf32, #tpu.memory_space<vmem>>, vector<8x16xf32>
    %c0_130 = arith.constant 0 : index
    %c0_131 = arith.constant 0 : index
    %115 = vector.load %arg12[%c0_130, %c0_131] : memref<64x16xf32, #tpu.memory_space<vmem>>, vector<8x16xf32>
    tpu.vector_store %arg12[%c0_130, %c0_131], %114 {strides = array<i32>} : memref<64x16xf32, #tpu.memory_space<vmem>>, vector<8x16xf32>,
    %c55 = arith.constant 55 : index
    %c0_132 = arith.constant 0 : index
    %116 = tpu.strided_load %arg11[%c55, %c0_132] {strides = array<i32: 2, 1>} : memref<324x16xf32, #tpu.memory_space<vmem>>, vector<8x16xf32>
    %c8_133 = arith.constant 8 : index
    %c0_134 = arith.constant 0 : index
    %117 = vector.load %arg12[%c8_133, %c0_134] : memref<64x16xf32, #tpu.memory_space<vmem>>, vector<8x16xf32>
    tpu.vector_store %arg12[%c8_133, %c0_134], %116 {strides = array<i32>} : memref<64x16xf32, #tpu.memory_space<vmem>>, vector<8x16xf32>,
    %c91 = arith.constant 91 : index
    %c0_135 = arith.constant 0 : index
    %118 = tpu.strided_load %arg11[%c91, %c0_135] {strides = array<i32: 2, 1>} : memref<324x16xf32, #tpu.memory_space<vmem>>, vector<8x16xf32>
    %c16_136 = arith.constant 16 : index
    %c0_137 = arith.constant 0 : index
    %119 = vector.load %arg12[%c16_136, %c0_137] : memref<64x16xf32, #tpu.memory_space<vmem>>, vector<8x16xf32>
    tpu.vector_store %arg12[%c16_136, %c0_137], %118 {strides = array<i32>} : memref<64x16xf32, #tpu.memory_space<vmem>>, vector<8x16xf32>,
    %c127 = arith.constant 127 : index
    %c0_138 = arith.constant 0 : index
    %120 = tpu.strided_load %arg11[%c127, %c0_138] {strides = array<i32: 2, 1>} : memref<324x16xf32, #tpu.memory_space<vmem>>, vector<8x16xf32>
    %c24_139 = arith.constant 24 : index
    %c0_140 = arith.constant 0 : index
    %121 = vector.load %arg12[%c24_139, %c0_140] : memref<64x16xf32, #tpu.memory_space<vmem>>, vector<8x16xf32>
    tpu.vector_store %arg12[%c24_139, %c0_140], %120 {strides = array<i32>} : memref<64x16xf32, #tpu.memory_space<vmem>>, vector<8x16xf32>,
    %c163 = arith.constant 163 : index
    %c0_141 = arith.constant 0 : index
    %122 = tpu.strided_load %arg11[%c163, %c0_141] {strides = array<i32: 2, 1>} : memref<324x16xf32, #tpu.memory_space<vmem>>, vector<8x16xf32>
    %c32_142 = arith.constant 32 : index
    %c0_143 = arith.constant 0 : index
    %123 = vector.load %arg12[%c32_142, %c0_143] : memref<64x16xf32, #tpu.memory_space<vmem>>, vector<8x16xf32>
    tpu.vector_store %arg12[%c32_142, %c0_143], %122 {strides = array<i32>} : memref<64x16xf32, #tpu.memory_space<vmem>>, vector<8x16xf32>,
    %c199 = arith.constant 199 : index
    %c0_144 = arith.constant 0 : index
    %124 = tpu.strided_load %arg11[%c199, %c0_144] {strides = array<i32: 2, 1>} : memref<324x16xf32, #tpu.memory_space<vmem>>, vector<8x16xf32>
    %c40_145 = arith.constant 40 : index
    %c0_146 = arith.constant 0 : index
    %125 = vector.load %arg12[%c40_145, %c0_146] : memref<64x16xf32, #tpu.memory_space<vmem>>, vector<8x16xf32>
    tpu.vector_store %arg12[%c40_145, %c0_146], %124 {strides = array<i32>} : memref<64x16xf32, #tpu.memory_space<vmem>>, vector<8x16xf32>,
    %c235 = arith.constant 235 : index
    %c0_147 = arith.constant 0 : index
    %126 = tpu.strided_load %arg11[%c235, %c0_147] {strides = array<i32: 2, 1>} : memref<324x16xf32, #tpu.memory_space<vmem>>, vector<8x16xf32>
    %c48_148 = arith.constant 48 : index
    %c0_149 = arith.constant 0 : index
    %127 = vector.load %arg12[%c48_148, %c0_149] : memref<64x16xf32, #tpu.memory_space<vmem>>, vector<8x16xf32>
    tpu.vector_store %arg12[%c48_148, %c0_149], %126 {strides = array<i32>} : memref<64x16xf32, #tpu.memory_space<vmem>>, vector<8x16xf32>,
    %c271 = arith.constant 271 : index
    %c0_150 = arith.constant 0 : index
    %128 = tpu.strided_load %arg11[%c271, %c0_150] {strides = array<i32: 2, 1>} : memref<324x16xf32, #tpu.memory_space<vmem>>, vector<8x16xf32>
    %c56_151 = arith.constant 56 : index
    %c0_152 = arith.constant 0 : index
    %129 = vector.load %arg12[%c56_151, %c0_152] : memref<64x16xf32, #tpu.memory_space<vmem>>, vector<8x16xf32>
    tpu.vector_store %arg12[%c56_151, %c0_152], %128 {strides = array<i32>} : memref<64x16xf32, #tpu.memory_space<vmem>>, vector<8x16xf32>,
    %c0_153 = arith.constant 0 : index
    %c0_154 = arith.constant 0 : index
    %130 = vector.load %arg12[%c0_153, %c0_154] : memref<64x16xf32, #tpu.memory_space<vmem>>, vector<64x16xf32>
    %c4 = arith.constant 4 : index
    %c0_155 = arith.constant 0 : index
    %c0_156 = arith.constant 0 : index
    %131 = vector.load %arg4[%c4, %c0_155, %c0_156] : memref<9x16x64xf32, #tpu.memory_space<vmem>>, vector<1x16x64xf32>
    %132 = vector.shape_cast %131 : vector<1x16x64xf32> to vector<16x64xf32>
    %cst_157 = arith.constant dense<0.000000e+00> : vector<64x64xf32>
    %133 = tpu.matmul %130, %132, %cst_157 {dimension_numbers = #tpu.dot_dimension_numbers<[1], [0], [0], [1], [0, 0, 1, 1], [], []>} : vector<64x16xf32>, vector<16x64xf32>, vector<64x64xf32> -> vector<64x64xf32>
    %134 = arith.addf %113, %133 : vector<64x64xf32>
    %c20 = arith.constant 20 : index
    %c0_158 = arith.constant 0 : index
    %135 = tpu.strided_load %arg11[%c20, %c0_158] {strides = array<i32: 2, 1>} : memref<324x16xf32, #tpu.memory_space<vmem>>, vector<8x16xf32>
    %c0_159 = arith.constant 0 : index
    %c0_160 = arith.constant 0 : index
    %136 = vector.load %arg12[%c0_159, %c0_160] : memref<64x16xf32, #tpu.memory_space<vmem>>, vector<8x16xf32>
    tpu.vector_store %arg12[%c0_159, %c0_160], %135 {strides = array<i32>} : memref<64x16xf32, #tpu.memory_space<vmem>>, vector<8x16xf32>,
    %c56_161 = arith.constant 56 : index
    %c0_162 = arith.constant 0 : index
    %137 = tpu.strided_load %arg11[%c56_161, %c0_162] {strides = array<i32: 2, 1>} : memref<324x16xf32, #tpu.memory_space<vmem>>, vector<8x16xf32>
    %c8_163 = arith.constant 8 : index
    %c0_164 = arith.constant 0 : index
    %138 = vector.load %arg12[%c8_163, %c0_164] : memref<64x16xf32, #tpu.memory_space<vmem>>, vector<8x16xf32>
    tpu.vector_store %arg12[%c8_163, %c0_164], %137 {strides = array<i32>} : memref<64x16xf32, #tpu.memory_space<vmem>>, vector<8x16xf32>,
    %c92 = arith.constant 92 : index
    %c0_165 = arith.constant 0 : index
    %139 = tpu.strided_load %arg11[%c92, %c0_165] {strides = array<i32: 2, 1>} : memref<324x16xf32, #tpu.memory_space<vmem>>, vector<8x16xf32>
    %c16_166 = arith.constant 16 : index
    %c0_167 = arith.constant 0 : index
    %140 = vector.load %arg12[%c16_166, %c0_167] : memref<64x16xf32, #tpu.memory_space<vmem>>, vector<8x16xf32>
    tpu.vector_store %arg12[%c16_166, %c0_167], %139 {strides = array<i32>} : memref<64x16xf32, #tpu.memory_space<vmem>>, vector<8x16xf32>,
    %c128 = arith.constant 128 : index
    %c0_168 = arith.constant 0 : index
    %141 = tpu.strided_load %arg11[%c128, %c0_168] {strides = array<i32: 2, 1>} : memref<324x16xf32, #tpu.memory_space<vmem>>, vector<8x16xf32>
    %c24_169 = arith.constant 24 : index
    %c0_170 = arith.constant 0 : index
    %142 = vector.load %arg12[%c24_169, %c0_170] : memref<64x16xf32, #tpu.memory_space<vmem>>, vector<8x16xf32>
    tpu.vector_store %arg12[%c24_169, %c0_170], %141 {strides = array<i32>} : memref<64x16xf32, #tpu.memory_space<vmem>>, vector<8x16xf32>,
    %c164 = arith.constant 164 : index
    %c0_171 = arith.constant 0 : index
    %143 = tpu.strided_load %arg11[%c164, %c0_171] {strides = array<i32: 2, 1>} : memref<324x16xf32, #tpu.memory_space<vmem>>, vector<8x16xf32>
    %c32_172 = arith.constant 32 : index
    %c0_173 = arith.constant 0 : index
    %144 = vector.load %arg12[%c32_172, %c0_173] : memref<64x16xf32, #tpu.memory_space<vmem>>, vector<8x16xf32>
    tpu.vector_store %arg12[%c32_172, %c0_173], %143 {strides = array<i32>} : memref<64x16xf32, #tpu.memory_space<vmem>>, vector<8x16xf32>,
    %c200 = arith.constant 200 : index
    %c0_174 = arith.constant 0 : index
    %145 = tpu.strided_load %arg11[%c200, %c0_174] {strides = array<i32: 2, 1>} : memref<324x16xf32, #tpu.memory_space<vmem>>, vector<8x16xf32>
    %c40_175 = arith.constant 40 : index
    %c0_176 = arith.constant 0 : index
    %146 = vector.load %arg12[%c40_175, %c0_176] : memref<64x16xf32, #tpu.memory_space<vmem>>, vector<8x16xf32>
    tpu.vector_store %arg12[%c40_175, %c0_176], %145 {strides = array<i32>} : memref<64x16xf32, #tpu.memory_space<vmem>>, vector<8x16xf32>,
    %c236 = arith.constant 236 : index
    %c0_177 = arith.constant 0 : index
    %147 = tpu.strided_load %arg11[%c236, %c0_177] {strides = array<i32: 2, 1>} : memref<324x16xf32, #tpu.memory_space<vmem>>, vector<8x16xf32>
    %c48_178 = arith.constant 48 : index
    %c0_179 = arith.constant 0 : index
    %148 = vector.load %arg12[%c48_178, %c0_179] : memref<64x16xf32, #tpu.memory_space<vmem>>, vector<8x16xf32>
    tpu.vector_store %arg12[%c48_178, %c0_179], %147 {strides = array<i32>} : memref<64x16xf32, #tpu.memory_space<vmem>>, vector<8x16xf32>,
    %c272 = arith.constant 272 : index
    %c0_180 = arith.constant 0 : index
    %149 = tpu.strided_load %arg11[%c272, %c0_180] {strides = array<i32: 2, 1>} : memref<324x16xf32, #tpu.memory_space<vmem>>, vector<8x16xf32>
    %c56_181 = arith.constant 56 : index
    %c0_182 = arith.constant 0 : index
    %150 = vector.load %arg12[%c56_181, %c0_182] : memref<64x16xf32, #tpu.memory_space<vmem>>, vector<8x16xf32>
    tpu.vector_store %arg12[%c56_181, %c0_182], %149 {strides = array<i32>} : memref<64x16xf32, #tpu.memory_space<vmem>>, vector<8x16xf32>,
    %c0_183 = arith.constant 0 : index
    %c0_184 = arith.constant 0 : index
    %151 = vector.load %arg12[%c0_183, %c0_184] : memref<64x16xf32, #tpu.memory_space<vmem>>, vector<64x16xf32>
    %c5 = arith.constant 5 : index
    %c0_185 = arith.constant 0 : index
    %c0_186 = arith.constant 0 : index
    %152 = vector.load %arg4[%c5, %c0_185, %c0_186] : memref<9x16x64xf32, #tpu.memory_space<vmem>>, vector<1x16x64xf32>
    %153 = vector.shape_cast %152 : vector<1x16x64xf32> to vector<16x64xf32>
    %cst_187 = arith.constant dense<0.000000e+00> : vector<64x64xf32>
    %154 = tpu.matmul %151, %153, %cst_187 {dimension_numbers = #tpu.dot_dimension_numbers<[1], [0], [0], [1], [0, 0, 1, 1], [], []>} : vector<64x16xf32>, vector<16x64xf32>, vector<64x64xf32> -> vector<64x64xf32>
    %155 = arith.addf %134, %154 : vector<64x64xf32>
    %c36_188 = arith.constant 36 : index
    %c0_189 = arith.constant 0 : index
    %156 = tpu.strided_load %arg11[%c36_188, %c0_189] {strides = array<i32: 2, 1>} : memref<324x16xf32, #tpu.memory_space<vmem>>, vector<8x16xf32>
    %c0_190 = arith.constant 0 : index
    %c0_191 = arith.constant 0 : index
    %157 = vector.load %arg12[%c0_190, %c0_191] : memref<64x16xf32, #tpu.memory_space<vmem>>, vector<8x16xf32>
    tpu.vector_store %arg12[%c0_190, %c0_191], %156 {strides = array<i32>} : memref<64x16xf32, #tpu.memory_space<vmem>>, vector<8x16xf32>,
    %c72_192 = arith.constant 72 : index
    %c0_193 = arith.constant 0 : index
    %158 = tpu.strided_load %arg11[%c72_192, %c0_193] {strides = array<i32: 2, 1>} : memref<324x16xf32, #tpu.memory_space<vmem>>, vector<8x16xf32>
    %c8_194 = arith.constant 8 : index
    %c0_195 = arith.constant 0 : index
    %159 = vector.load %arg12[%c8_194, %c0_195] : memref<64x16xf32, #tpu.memory_space<vmem>>, vector<8x16xf32>
    tpu.vector_store %arg12[%c8_194, %c0_195], %158 {strides = array<i32>} : memref<64x16xf32, #tpu.memory_space<vmem>>, vector<8x16xf32>,
    %c108_196 = arith.constant 108 : index
    %c0_197 = arith.constant 0 : index
    %160 = tpu.strided_load %arg11[%c108_196, %c0_197] {strides = array<i32: 2, 1>} : memref<324x16xf32, #tpu.memory_space<vmem>>, vector<8x16xf32>
    %c16_198 = arith.constant 16 : index
    %c0_199 = arith.constant 0 : index
    %161 = vector.load %arg12[%c16_198, %c0_199] : memref<64x16xf32, #tpu.memory_space<vmem>>, vector<8x16xf32>
    tpu.vector_store %arg12[%c16_198, %c0_199], %160 {strides = array<i32>} : memref<64x16xf32, #tpu.memory_space<vmem>>, vector<8x16xf32>,
    %c144_200 = arith.constant 144 : index
    %c0_201 = arith.constant 0 : index
    %162 = tpu.strided_load %arg11[%c144_200, %c0_201] {strides = array<i32: 2, 1>} : memref<324x16xf32, #tpu.memory_space<vmem>>, vector<8x16xf32>
    %c24_202 = arith.constant 24 : index
    %c0_203 = arith.constant 0 : index
    %163 = vector.load %arg12[%c24_202, %c0_203] : memref<64x16xf32, #tpu.memory_space<vmem>>, vector<8x16xf32>
    tpu.vector_store %arg12[%c24_202, %c0_203], %162 {strides = array<i32>} : memref<64x16xf32, #tpu.memory_space<vmem>>, vector<8x16xf32>,
    %c180_204 = arith.constant 180 : index
    %c0_205 = arith.constant 0 : index
    %164 = tpu.strided_load %arg11[%c180_204, %c0_205] {strides = array<i32: 2, 1>} : memref<324x16xf32, #tpu.memory_space<vmem>>, vector<8x16xf32>
    %c32_206 = arith.constant 32 : index
    %c0_207 = arith.constant 0 : index
    %165 = vector.load %arg12[%c32_206, %c0_207] : memref<64x16xf32, #tpu.memory_space<vmem>>, vector<8x16xf32>
    tpu.vector_store %arg12[%c32_206, %c0_207], %164 {strides = array<i32>} : memref<64x16xf32, #tpu.memory_space<vmem>>, vector<8x16xf32>,
    %c216_208 = arith.constant 216 : index
    %c0_209 = arith.constant 0 : index
    %166 = tpu.strided_load %arg11[%c216_208, %c0_209] {strides = array<i32: 2, 1>} : memref<324x16xf32, #tpu.memory_space<vmem>>, vector<8x16xf32>
    %c40_210 = arith.constant 40 : index
    %c0_211 = arith.constant 0 : index
    %167 = vector.load %arg12[%c40_210, %c0_211] : memref<64x16xf32, #tpu.memory_space<vmem>>, vector<8x16xf32>
    tpu.vector_store %arg12[%c40_210, %c0_211], %166 {strides = array<i32>} : memref<64x16xf32, #tpu.memory_space<vmem>>, vector<8x16xf32>,
    %c252_212 = arith.constant 252 : index
    %c0_213 = arith.constant 0 : index
    %168 = tpu.strided_load %arg11[%c252_212, %c0_213] {strides = array<i32: 2, 1>} : memref<324x16xf32, #tpu.memory_space<vmem>>, vector<8x16xf32>
    %c48_214 = arith.constant 48 : index
    %c0_215 = arith.constant 0 : index
    %169 = vector.load %arg12[%c48_214, %c0_215] : memref<64x16xf32, #tpu.memory_space<vmem>>, vector<8x16xf32>
    tpu.vector_store %arg12[%c48_214, %c0_215], %168 {strides = array<i32>} : memref<64x16xf32, #tpu.memory_space<vmem>>, vector<8x16xf32>,
    %c288 = arith.constant 288 : index
    %c0_216 = arith.constant 0 : index
    %170 = tpu.strided_load %arg11[%c288, %c0_216] {strides = array<i32: 2, 1>} : memref<324x16xf32, #tpu.memory_space<vmem>>, vector<8x16xf32>
    %c56_217 = arith.constant 56 : index
    %c0_218 = arith.constant 0 : index
    %171 = vector.load %arg12[%c56_217, %c0_218] : memref<64x16xf32, #tpu.memory_space<vmem>>, vector<8x16xf32>
    tpu.vector_store %arg12[%c56_217, %c0_218], %170 {strides = array<i32>} : memref<64x16xf32, #tpu.memory_space<vmem>>, vector<8x16xf32>,
    %c0_219 = arith.constant 0 : index
    %c0_220 = arith.constant 0 : index
    %172 = vector.load %arg12[%c0_219, %c0_220] : memref<64x16xf32, #tpu.memory_space<vmem>>, vector<64x16xf32>
    %c6 = arith.constant 6 : index
    %c0_221 = arith.constant 0 : index
    %c0_222 = arith.constant 0 : index
    %173 = vector.load %arg4[%c6, %c0_221, %c0_222] : memref<9x16x64xf32, #tpu.memory_space<vmem>>, vector<1x16x64xf32>
    %174 = vector.shape_cast %173 : vector<1x16x64xf32> to vector<16x64xf32>
    %cst_223 = arith.constant dense<0.000000e+00> : vector<64x64xf32>
    %175 = tpu.matmul %172, %174, %cst_223 {dimension_numbers = #tpu.dot_dimension_numbers<[1], [0], [0], [1], [0, 0, 1, 1], [], []>} : vector<64x16xf32>, vector<16x64xf32>, vector<64x64xf32> -> vector<64x64xf32>
    %176 = arith.addf %155, %175 : vector<64x64xf32>
    %c37_224 = arith.constant 37 : index
    %c0_225 = arith.constant 0 : index
    %177 = tpu.strided_load %arg11[%c37_224, %c0_225] {strides = array<i32: 2, 1>} : memref<324x16xf32, #tpu.memory_space<vmem>>, vector<8x16xf32>
    %c0_226 = arith.constant 0 : index
    %c0_227 = arith.constant 0 : index
    %178 = vector.load %arg12[%c0_226, %c0_227] : memref<64x16xf32, #tpu.memory_space<vmem>>, vector<8x16xf32>
    tpu.vector_store %arg12[%c0_226, %c0_227], %177 {strides = array<i32>} : memref<64x16xf32, #tpu.memory_space<vmem>>, vector<8x16xf32>,
    %c73_228 = arith.constant 73 : index
    %c0_229 = arith.constant 0 : index
    %179 = tpu.strided_load %arg11[%c73_228, %c0_229] {strides = array<i32: 2, 1>} : memref<324x16xf32, #tpu.memory_space<vmem>>, vector<8x16xf32>
    %c8_230 = arith.constant 8 : index
    %c0_231 = arith.constant 0 : index
    %180 = vector.load %arg12[%c8_230, %c0_231] : memref<64x16xf32, #tpu.memory_space<vmem>>, vector<8x16xf32>
    tpu.vector_store %arg12[%c8_230, %c0_231], %179 {strides = array<i32>} : memref<64x16xf32, #tpu.memory_space<vmem>>, vector<8x16xf32>,
    %c109_232 = arith.constant 109 : index
    %c0_233 = arith.constant 0 : index
    %181 = tpu.strided_load %arg11[%c109_232, %c0_233] {strides = array<i32: 2, 1>} : memref<324x16xf32, #tpu.memory_space<vmem>>, vector<8x16xf32>
    %c16_234 = arith.constant 16 : index
    %c0_235 = arith.constant 0 : index
    %182 = vector.load %arg12[%c16_234, %c0_235] : memref<64x16xf32, #tpu.memory_space<vmem>>, vector<8x16xf32>
    tpu.vector_store %arg12[%c16_234, %c0_235], %181 {strides = array<i32>} : memref<64x16xf32, #tpu.memory_space<vmem>>, vector<8x16xf32>,
    %c145_236 = arith.constant 145 : index
    %c0_237 = arith.constant 0 : index
    %183 = tpu.strided_load %arg11[%c145_236, %c0_237] {strides = array<i32: 2, 1>} : memref<324x16xf32, #tpu.memory_space<vmem>>, vector<8x16xf32>
    %c24_238 = arith.constant 24 : index
    %c0_239 = arith.constant 0 : index
    %184 = vector.load %arg12[%c24_238, %c0_239] : memref<64x16xf32, #tpu.memory_space<vmem>>, vector<8x16xf32>
    tpu.vector_store %arg12[%c24_238, %c0_239], %183 {strides = array<i32>} : memref<64x16xf32, #tpu.memory_space<vmem>>, vector<8x16xf32>,
    %c181_240 = arith.constant 181 : index
    %c0_241 = arith.constant 0 : index
    %185 = tpu.strided_load %arg11[%c181_240, %c0_241] {strides = array<i32: 2, 1>} : memref<324x16xf32, #tpu.memory_space<vmem>>, vector<8x16xf32>
    %c32_242 = arith.constant 32 : index
    %c0_243 = arith.constant 0 : index
    %186 = vector.load %arg12[%c32_242, %c0_243] : memref<64x16xf32, #tpu.memory_space<vmem>>, vector<8x16xf32>
    tpu.vector_store %arg12[%c32_242, %c0_243], %185 {strides = array<i32>} : memref<64x16xf32, #tpu.memory_space<vmem>>, vector<8x16xf32>,
    %c217_244 = arith.constant 217 : index
    %c0_245 = arith.constant 0 : index
    %187 = tpu.strided_load %arg11[%c217_244, %c0_245] {strides = array<i32: 2, 1>} : memref<324x16xf32, #tpu.memory_space<vmem>>, vector<8x16xf32>
    %c40_246 = arith.constant 40 : index
    %c0_247 = arith.constant 0 : index
    %188 = vector.load %arg12[%c40_246, %c0_247] : memref<64x16xf32, #tpu.memory_space<vmem>>, vector<8x16xf32>
    tpu.vector_store %arg12[%c40_246, %c0_247], %187 {strides = array<i32>} : memref<64x16xf32, #tpu.memory_space<vmem>>, vector<8x16xf32>,
    %c253_248 = arith.constant 253 : index
    %c0_249 = arith.constant 0 : index
    %189 = tpu.strided_load %arg11[%c253_248, %c0_249] {strides = array<i32: 2, 1>} : memref<324x16xf32, #tpu.memory_space<vmem>>, vector<8x16xf32>
    %c48_250 = arith.constant 48 : index
    %c0_251 = arith.constant 0 : index
    %190 = vector.load %arg12[%c48_250, %c0_251] : memref<64x16xf32, #tpu.memory_space<vmem>>, vector<8x16xf32>
    tpu.vector_store %arg12[%c48_250, %c0_251], %189 {strides = array<i32>} : memref<64x16xf32, #tpu.memory_space<vmem>>, vector<8x16xf32>,
    %c289 = arith.constant 289 : index
    %c0_252 = arith.constant 0 : index
    %191 = tpu.strided_load %arg11[%c289, %c0_252] {strides = array<i32: 2, 1>} : memref<324x16xf32, #tpu.memory_space<vmem>>, vector<8x16xf32>
    %c56_253 = arith.constant 56 : index
    %c0_254 = arith.constant 0 : index
    %192 = vector.load %arg12[%c56_253, %c0_254] : memref<64x16xf32, #tpu.memory_space<vmem>>, vector<8x16xf32>
    tpu.vector_store %arg12[%c56_253, %c0_254], %191 {strides = array<i32>} : memref<64x16xf32, #tpu.memory_space<vmem>>, vector<8x16xf32>,
    %c0_255 = arith.constant 0 : index
    %c0_256 = arith.constant 0 : index
    %193 = vector.load %arg12[%c0_255, %c0_256] : memref<64x16xf32, #tpu.memory_space<vmem>>, vector<64x16xf32>
    %c7 = arith.constant 7 : index
    %c0_257 = arith.constant 0 : index
    %c0_258 = arith.constant 0 : index
    %194 = vector.load %arg4[%c7, %c0_257, %c0_258] : memref<9x16x64xf32, #tpu.memory_space<vmem>>, vector<1x16x64xf32>
    %195 = vector.shape_cast %194 : vector<1x16x64xf32> to vector<16x64xf32>
    %cst_259 = arith.constant dense<0.000000e+00> : vector<64x64xf32>
    %196 = tpu.matmul %193, %195, %cst_259 {dimension_numbers = #tpu.dot_dimension_numbers<[1], [0], [0], [1], [0, 0, 1, 1], [], []>} : vector<64x16xf32>, vector<16x64xf32>, vector<64x64xf32> -> vector<64x64xf32>
    %197 = arith.addf %176, %196 : vector<64x64xf32>
    %c38_260 = arith.constant 38 : index
    %c0_261 = arith.constant 0 : index
    %198 = tpu.strided_load %arg11[%c38_260, %c0_261] {strides = array<i32: 2, 1>} : memref<324x16xf32, #tpu.memory_space<vmem>>, vector<8x16xf32>
    %c0_262 = arith.constant 0 : index
    %c0_263 = arith.constant 0 : index
    %199 = vector.load %arg12[%c0_262, %c0_263] : memref<64x16xf32, #tpu.memory_space<vmem>>, vector<8x16xf32>
    tpu.vector_store %arg12[%c0_262, %c0_263], %198 {strides = array<i32>} : memref<64x16xf32, #tpu.memory_space<vmem>>, vector<8x16xf32>,
    %c74_264 = arith.constant 74 : index
    %c0_265 = arith.constant 0 : index
    %200 = tpu.strided_load %arg11[%c74_264, %c0_265] {strides = array<i32: 2, 1>} : memref<324x16xf32, #tpu.memory_space<vmem>>, vector<8x16xf32>
    %c8_266 = arith.constant 8 : index
    %c0_267 = arith.constant 0 : index
    %201 = vector.load %arg12[%c8_266, %c0_267] : memref<64x16xf32, #tpu.memory_space<vmem>>, vector<8x16xf32>
    tpu.vector_store %arg12[%c8_266, %c0_267], %200 {strides = array<i32>} : memref<64x16xf32, #tpu.memory_space<vmem>>, vector<8x16xf32>,
    %c110_268 = arith.constant 110 : index
    %c0_269 = arith.constant 0 : index
    %202 = tpu.strided_load %arg11[%c110_268, %c0_269] {strides = array<i32: 2, 1>} : memref<324x16xf32, #tpu.memory_space<vmem>>, vector<8x16xf32>
    %c16_270 = arith.constant 16 : index
    %c0_271 = arith.constant 0 : index
    %203 = vector.load %arg12[%c16_270, %c0_271] : memref<64x16xf32, #tpu.memory_space<vmem>>, vector<8x16xf32>
    tpu.vector_store %arg12[%c16_270, %c0_271], %202 {strides = array<i32>} : memref<64x16xf32, #tpu.memory_space<vmem>>, vector<8x16xf32>,
    %c146_272 = arith.constant 146 : index
    %c0_273 = arith.constant 0 : index
    %204 = tpu.strided_load %arg11[%c146_272, %c0_273] {strides = array<i32: 2, 1>} : memref<324x16xf32, #tpu.memory_space<vmem>>, vector<8x16xf32>
    %c24_274 = arith.constant 24 : index
    %c0_275 = arith.constant 0 : index
    %205 = vector.load %arg12[%c24_274, %c0_275] : memref<64x16xf32, #tpu.memory_space<vmem>>, vector<8x16xf32>
    tpu.vector_store %arg12[%c24_274, %c0_275], %204 {strides = array<i32>} : memref<64x16xf32, #tpu.memory_space<vmem>>, vector<8x16xf32>,
    %c182_276 = arith.constant 182 : index
    %c0_277 = arith.constant 0 : index
    %206 = tpu.strided_load %arg11[%c182_276, %c0_277] {strides = array<i32: 2, 1>} : memref<324x16xf32, #tpu.memory_space<vmem>>, vector<8x16xf32>
    %c32_278 = arith.constant 32 : index
    %c0_279 = arith.constant 0 : index
    %207 = vector.load %arg12[%c32_278, %c0_279] : memref<64x16xf32, #tpu.memory_space<vmem>>, vector<8x16xf32>
    tpu.vector_store %arg12[%c32_278, %c0_279], %206 {strides = array<i32>} : memref<64x16xf32, #tpu.memory_space<vmem>>, vector<8x16xf32>,
    %c218_280 = arith.constant 218 : index
    %c0_281 = arith.constant 0 : index
    %208 = tpu.strided_load %arg11[%c218_280, %c0_281] {strides = array<i32: 2, 1>} : memref<324x16xf32, #tpu.memory_space<vmem>>, vector<8x16xf32>
    %c40_282 = arith.constant 40 : index
    %c0_283 = arith.constant 0 : index
    %209 = vector.load %arg12[%c40_282, %c0_283] : memref<64x16xf32, #tpu.memory_space<vmem>>, vector<8x16xf32>
    tpu.vector_store %arg12[%c40_282, %c0_283], %208 {strides = array<i32>} : memref<64x16xf32, #tpu.memory_space<vmem>>, vector<8x16xf32>,
    %c254_284 = arith.constant 254 : index
    %c0_285 = arith.constant 0 : index
    %210 = tpu.strided_load %arg11[%c254_284, %c0_285] {strides = array<i32: 2, 1>} : memref<324x16xf32, #tpu.memory_space<vmem>>, vector<8x16xf32>
    %c48_286 = arith.constant 48 : index
    %c0_287 = arith.constant 0 : index
    %211 = vector.load %arg12[%c48_286, %c0_287] : memref<64x16xf32, #tpu.memory_space<vmem>>, vector<8x16xf32>
    tpu.vector_store %arg12[%c48_286, %c0_287], %210 {strides = array<i32>} : memref<64x16xf32, #tpu.memory_space<vmem>>, vector<8x16xf32>,
    %c290 = arith.constant 290 : index
    %c0_288 = arith.constant 0 : index
    %212 = tpu.strided_load %arg11[%c290, %c0_288] {strides = array<i32: 2, 1>} : memref<324x16xf32, #tpu.memory_space<vmem>>, vector<8x16xf32>
    %c56_289 = arith.constant 56 : index
    %c0_290 = arith.constant 0 : index
    %213 = vector.load %arg12[%c56_289, %c0_290] : memref<64x16xf32, #tpu.memory_space<vmem>>, vector<8x16xf32>
    tpu.vector_store %arg12[%c56_289, %c0_290], %212 {strides = array<i32>} : memref<64x16xf32, #tpu.memory_space<vmem>>, vector<8x16xf32>,
    %c0_291 = arith.constant 0 : index
    %c0_292 = arith.constant 0 : index
    %214 = vector.load %arg12[%c0_291, %c0_292] : memref<64x16xf32, #tpu.memory_space<vmem>>, vector<64x16xf32>
    %c8_293 = arith.constant 8 : index
    %c0_294 = arith.constant 0 : index
    %c0_295 = arith.constant 0 : index
    %215 = vector.load %arg4[%c8_293, %c0_294, %c0_295] : memref<9x16x64xf32, #tpu.memory_space<vmem>>, vector<1x16x64xf32>
    %216 = vector.shape_cast %215 : vector<1x16x64xf32> to vector<16x64xf32>
    %cst_296 = arith.constant dense<0.000000e+00> : vector<64x64xf32>
    %217 = tpu.matmul %214, %216, %cst_296 {dimension_numbers = #tpu.dot_dimension_numbers<[1], [0], [0], [1], [0, 0, 1, 1], [], []>} : vector<64x16xf32>, vector<16x64xf32>, vector<64x64xf32> -> vector<64x64xf32>
    %218 = arith.addf %197, %217 : vector<64x64xf32>
    %cst_297 = arith.constant 0.000000e+00 : f32
    %219 = vector.broadcast %cst_297 : f32 to vector<64x64xf32>
    %220 = arith.maximumf %218, %219 : vector<64x64xf32>
    %c0_298 = arith.constant 0 : index
    %c0_299 = arith.constant 0 : index
    %221 = vector.load %arg6[%c0_298, %c0_299] : memref<64x32xf32, #tpu.memory_space<vmem>>, vector<64x32xf32>
    %cst_300 = arith.constant dense<0.000000e+00> : vector<64x32xf32>
    %222 = tpu.matmul %220, %221, %cst_300 {dimension_numbers = #tpu.dot_dimension_numbers<[1], [0], [0], [1], [0, 0, 1, 1], [], []>} : vector<64x64xf32>, vector<64x32xf32>, vector<64x32xf32> -> vector<64x32xf32>
    %c0_301 = arith.constant 0 : index
    %c0_302 = arith.constant 0 : index
    %223 = vector.load %arg7[%c0_301, %c0_302] : memref<1x32xf32, #tpu.memory_space<vmem>>, vector<1x32xf32>
    %224 = vector.broadcast %223 : vector<1x32xf32> to vector<64x32xf32>
    %225 = arith.addf %222, %224 : vector<64x32xf32>
    %cst_303 = arith.constant 0.000000e+00 : f32
    %226 = vector.broadcast %cst_303 : f32 to vector<64x32xf32>
    %227 = arith.maximumf %225, %226 : vector<64x32xf32>
    %c0_304 = arith.constant 0 : index
    %c0_305 = arith.constant 0 : index
    %228 = vector.load %arg7[%c0_304, %c0_305] : memref<1x32xf32, #tpu.memory_space<vmem>>, vector<1x32xf32>
    %cst_306 = arith.constant 0.000000e+00 : f32
    %229 = vector.broadcast %cst_306 : f32 to vector<1x32xf32>
    %230 = arith.maximumf %228, %229 : vector<1x32xf32>
    %231 = vector.shape_cast %230 : vector<1x32xf32> to vector<1x32xf32>
    %232 = vector.broadcast %231 : vector<1x32xf32> to vector<10x32xf32>
    %cst_307 = arith.constant 0.000000e+00 : f32
    %233 = vector.broadcast %cst_307 : f32 to vector<144x32xf32>
    %c0_308 = arith.constant 0 : index
    %c0_309 = arith.constant 0 : index
    %234 = vector.load %arg13[%c0_308, %c0_309] : memref<144x32xf32, #tpu.memory_space<vmem>>, vector<144x32xf32>
    tpu.vector_store %arg13[%c0_308, %c0_309], %233 {strides = array<i32>} : memref<144x32xf32, #tpu.memory_space<vmem>>, vector<144x32xf32>,
    %c13 = arith.constant 13 : index
    %c0_310 = arith.constant 0 : index
    %235 = vector.load %arg13[%c13, %c0_310] : memref<144x32xf32, #tpu.memory_space<vmem>>, vector<10x32xf32>
    tpu.vector_store %arg13[%c13, %c0_310], %232 {strides = array<i32>} : memref<144x32xf32, #tpu.memory_space<vmem>>, vector<10x32xf32>,
    %c25 = arith.constant 25 : index
    %c0_311 = arith.constant 0 : index
    %236 = vector.load %arg13[%c25, %c0_311] : memref<144x32xf32, #tpu.memory_space<vmem>>, vector<10x32xf32>
    tpu.vector_store %arg13[%c25, %c0_311], %232 {strides = array<i32>} : memref<144x32xf32, #tpu.memory_space<vmem>>, vector<10x32xf32>,
    %c37_312 = arith.constant 37 : index
    %c0_313 = arith.constant 0 : index
    %237 = vector.load %arg13[%c37_312, %c0_313] : memref<144x32xf32, #tpu.memory_space<vmem>>, vector<10x32xf32>
    tpu.vector_store %arg13[%c37_312, %c0_313], %232 {strides = array<i32>} : memref<144x32xf32, #tpu.memory_space<vmem>>, vector<10x32xf32>,
    %c49 = arith.constant 49 : index
    %c0_314 = arith.constant 0 : index
    %238 = vector.load %arg13[%c49, %c0_314] : memref<144x32xf32, #tpu.memory_space<vmem>>, vector<10x32xf32>
    tpu.vector_store %arg13[%c49, %c0_314], %232 {strides = array<i32>} : memref<144x32xf32, #tpu.memory_space<vmem>>, vector<10x32xf32>,
    %c61 = arith.constant 61 : index
    %c0_315 = arith.constant 0 : index
    %239 = vector.load %arg13[%c61, %c0_315] : memref<144x32xf32, #tpu.memory_space<vmem>>, vector<10x32xf32>
    tpu.vector_store %arg13[%c61, %c0_315], %232 {strides = array<i32>} : memref<144x32xf32, #tpu.memory_space<vmem>>, vector<10x32xf32>,
    %c73_316 = arith.constant 73 : index
    %c0_317 = arith.constant 0 : index
    %240 = vector.load %arg13[%c73_316, %c0_317] : memref<144x32xf32, #tpu.memory_space<vmem>>, vector<10x32xf32>
    tpu.vector_store %arg13[%c73_316, %c0_317], %232 {strides = array<i32>} : memref<144x32xf32, #tpu.memory_space<vmem>>, vector<10x32xf32>,
    %c85 = arith.constant 85 : index
    %c0_318 = arith.constant 0 : index
    %241 = vector.load %arg13[%c85, %c0_318] : memref<144x32xf32, #tpu.memory_space<vmem>>, vector<10x32xf32>
    tpu.vector_store %arg13[%c85, %c0_318], %232 {strides = array<i32>} : memref<144x32xf32, #tpu.memory_space<vmem>>, vector<10x32xf32>,
    %c97 = arith.constant 97 : index
    %c0_319 = arith.constant 0 : index
    %242 = vector.load %arg13[%c97, %c0_319] : memref<144x32xf32, #tpu.memory_space<vmem>>, vector<10x32xf32>
    tpu.vector_store %arg13[%c97, %c0_319], %232 {strides = array<i32>} : memref<144x32xf32, #tpu.memory_space<vmem>>, vector<10x32xf32>,
    %c109_320 = arith.constant 109 : index
    %c0_321 = arith.constant 0 : index
    %243 = vector.load %arg13[%c109_320, %c0_321] : memref<144x32xf32, #tpu.memory_space<vmem>>, vector<10x32xf32>
    tpu.vector_store %arg13[%c109_320, %c0_321], %232 {strides = array<i32>} : memref<144x32xf32, #tpu.memory_space<vmem>>, vector<10x32xf32>,
    %c121 = arith.constant 121 : index
    %c0_322 = arith.constant 0 : index
    %244 = vector.load %arg13[%c121, %c0_322] : memref<144x32xf32, #tpu.memory_space<vmem>>, vector<10x32xf32>
    tpu.vector_store %arg13[%c121, %c0_322], %232 {strides = array<i32>} : memref<144x32xf32, #tpu.memory_space<vmem>>, vector<10x32xf32>,
    %245 = vector.extract_strided_slice %227 {offsets = [0, 0], sizes = [8, 32], strides = [1, 1]} : vector<64x32xf32> to vector<8x32xf32>
    %c26 = arith.constant 26 : index
    %c0_323 = arith.constant 0 : index
    %246 = vector.load %arg13[%c26, %c0_323] : memref<144x32xf32, #tpu.memory_space<vmem>>, vector<8x32xf32>
    tpu.vector_store %arg13[%c26, %c0_323], %245 {strides = array<i32>} : memref<144x32xf32, #tpu.memory_space<vmem>>, vector<8x32xf32>,
    %247 = vector.extract_strided_slice %227 {offsets = [8, 0], sizes = [8, 32], strides = [1, 1]} : vector<64x32xf32> to vector<8x32xf32>
    %c38_324 = arith.constant 38 : index
    %c0_325 = arith.constant 0 : index
    %248 = vector.load %arg13[%c38_324, %c0_325] : memref<144x32xf32, #tpu.memory_space<vmem>>, vector<8x32xf32>
    tpu.vector_store %arg13[%c38_324, %c0_325], %247 {strides = array<i32>} : memref<144x32xf32, #tpu.memory_space<vmem>>, vector<8x32xf32>,
    %249 = vector.extract_strided_slice %227 {offsets = [16, 0], sizes = [8, 32], strides = [1, 1]} : vector<64x32xf32> to vector<8x32xf32>
    %c50 = arith.constant 50 : index
    %c0_326 = arith.constant 0 : index
    %250 = vector.load %arg13[%c50, %c0_326] : memref<144x32xf32, #tpu.memory_space<vmem>>, vector<8x32xf32>
    tpu.vector_store %arg13[%c50, %c0_326], %249 {strides = array<i32>} : memref<144x32xf32, #tpu.memory_space<vmem>>, vector<8x32xf32>,
    %251 = vector.extract_strided_slice %227 {offsets = [24, 0], sizes = [8, 32], strides = [1, 1]} : vector<64x32xf32> to vector<8x32xf32>
    %c62 = arith.constant 62 : index
    %c0_327 = arith.constant 0 : index
    %252 = vector.load %arg13[%c62, %c0_327] : memref<144x32xf32, #tpu.memory_space<vmem>>, vector<8x32xf32>
    tpu.vector_store %arg13[%c62, %c0_327], %251 {strides = array<i32>} : memref<144x32xf32, #tpu.memory_space<vmem>>, vector<8x32xf32>,
    %253 = vector.extract_strided_slice %227 {offsets = [32, 0], sizes = [8, 32], strides = [1, 1]} : vector<64x32xf32> to vector<8x32xf32>
    %c74_328 = arith.constant 74 : index
    %c0_329 = arith.constant 0 : index
    %254 = vector.load %arg13[%c74_328, %c0_329] : memref<144x32xf32, #tpu.memory_space<vmem>>, vector<8x32xf32>
    tpu.vector_store %arg13[%c74_328, %c0_329], %253 {strides = array<i32>} : memref<144x32xf32, #tpu.memory_space<vmem>>, vector<8x32xf32>,
    %255 = vector.extract_strided_slice %227 {offsets = [40, 0], sizes = [8, 32], strides = [1, 1]} : vector<64x32xf32> to vector<8x32xf32>
    %c86 = arith.constant 86 : index
    %c0_330 = arith.constant 0 : index
    %256 = vector.load %arg13[%c86, %c0_330] : memref<144x32xf32, #tpu.memory_space<vmem>>, vector<8x32xf32>
    tpu.vector_store %arg13[%c86, %c0_330], %255 {strides = array<i32>} : memref<144x32xf32, #tpu.memory_space<vmem>>, vector<8x32xf32>,
    %257 = vector.extract_strided_slice %227 {offsets = [48, 0], sizes = [8, 32], strides = [1, 1]} : vector<64x32xf32> to vector<8x32xf32>
    %c98 = arith.constant 98 : index
    %c0_331 = arith.constant 0 : index
    %258 = vector.load %arg13[%c98, %c0_331] : memref<144x32xf32, #tpu.memory_space<vmem>>, vector<8x32xf32>
    tpu.vector_store %arg13[%c98, %c0_331], %257 {strides = array<i32>} : memref<144x32xf32, #tpu.memory_space<vmem>>, vector<8x32xf32>,
    %259 = vector.extract_strided_slice %227 {offsets = [56, 0], sizes = [8, 32], strides = [1, 1]} : vector<64x32xf32> to vector<8x32xf32>
    %c110_332 = arith.constant 110 : index
    %c0_333 = arith.constant 0 : index
    %260 = vector.load %arg13[%c110_332, %c0_333] : memref<144x32xf32, #tpu.memory_space<vmem>>, vector<8x32xf32>
    tpu.vector_store %arg13[%c110_332, %c0_333], %259 {strides = array<i32>} : memref<144x32xf32, #tpu.memory_space<vmem>>, vector<8x32xf32>,
    %c0_334 = arith.constant 0 : index
    %c0_335 = arith.constant 0 : index
    %261 = vector.load %arg9[%c0_334, %c0_335] : memref<1x64xf32, #tpu.memory_space<vmem>>, vector<1x64xf32>
    %262 = vector.shape_cast %261 : vector<1x64xf32> to vector<1x64xf32>
    %263 = vector.broadcast %262 : vector<1x64xf32> to vector<100x64xf32>
    %c0_336 = arith.constant 0 : index
    %c0_337 = arith.constant 0 : index
    %264 = vector.load %arg13[%c0_336, %c0_337] : memref<144x32xf32, #tpu.memory_space<vmem>>, vector<10x32xf32>
    %c0_338 = arith.constant 0 : index
    %c0_339 = arith.constant 0 : index
    %265 = vector.load %arg14[%c0_338, %c0_339] : memref<100x32xf32, #tpu.memory_space<vmem>>, vector<10x32xf32>
    tpu.vector_store %arg14[%c0_338, %c0_339], %264 {strides = array<i32>} : memref<100x32xf32, #tpu.memory_space<vmem>>, vector<10x32xf32>,
    %c12 = arith.constant 12 : index
    %c0_340 = arith.constant 0 : index
    %266 = vector.load %arg13[%c12, %c0_340] : memref<144x32xf32, #tpu.memory_space<vmem>>, vector<10x32xf32>
    %c10 = arith.constant 10 : index
    %c0_341 = arith.constant 0 : index
    %267 = vector.load %arg14[%c10, %c0_341] : memref<100x32xf32, #tpu.memory_space<vmem>>, vector<10x32xf32>
    tpu.vector_store %arg14[%c10, %c0_341], %266 {strides = array<i32>} : memref<100x32xf32, #tpu.memory_space<vmem>>, vector<10x32xf32>,
    %c24_342 = arith.constant 24 : index
    %c0_343 = arith.constant 0 : index
    %268 = vector.load %arg13[%c24_342, %c0_343] : memref<144x32xf32, #tpu.memory_space<vmem>>, vector<10x32xf32>
    %c20_344 = arith.constant 20 : index
    %c0_345 = arith.constant 0 : index
    %269 = vector.load %arg14[%c20_344, %c0_345] : memref<100x32xf32, #tpu.memory_space<vmem>>, vector<10x32xf32>
    tpu.vector_store %arg14[%c20_344, %c0_345], %268 {strides = array<i32>} : memref<100x32xf32, #tpu.memory_space<vmem>>, vector<10x32xf32>,
    %c36_346 = arith.constant 36 : index
    %c0_347 = arith.constant 0 : index
    %270 = vector.load %arg13[%c36_346, %c0_347] : memref<144x32xf32, #tpu.memory_space<vmem>>, vector<10x32xf32>
    %c30 = arith.constant 30 : index
    %c0_348 = arith.constant 0 : index
    %271 = vector.load %arg14[%c30, %c0_348] : memref<100x32xf32, #tpu.memory_space<vmem>>, vector<10x32xf32>
    tpu.vector_store %arg14[%c30, %c0_348], %270 {strides = array<i32>} : memref<100x32xf32, #tpu.memory_space<vmem>>, vector<10x32xf32>,
    %c48_349 = arith.constant 48 : index
    %c0_350 = arith.constant 0 : index
    %272 = vector.load %arg13[%c48_349, %c0_350] : memref<144x32xf32, #tpu.memory_space<vmem>>, vector<10x32xf32>
    %c40_351 = arith.constant 40 : index
    %c0_352 = arith.constant 0 : index
    %273 = vector.load %arg14[%c40_351, %c0_352] : memref<100x32xf32, #tpu.memory_space<vmem>>, vector<10x32xf32>
    tpu.vector_store %arg14[%c40_351, %c0_352], %272 {strides = array<i32>} : memref<100x32xf32, #tpu.memory_space<vmem>>, vector<10x32xf32>,
    %c60 = arith.constant 60 : index
    %c0_353 = arith.constant 0 : index
    %274 = vector.load %arg13[%c60, %c0_353] : memref<144x32xf32, #tpu.memory_space<vmem>>, vector<10x32xf32>
    %c50_354 = arith.constant 50 : index
    %c0_355 = arith.constant 0 : index
    %275 = vector.load %arg14[%c50_354, %c0_355] : memref<100x32xf32, #tpu.memory_space<vmem>>, vector<10x32xf32>
    tpu.vector_store %arg14[%c50_354, %c0_355], %274 {strides = array<i32>} : memref<100x32xf32, #tpu.memory_space<vmem>>, vector<10x32xf32>,
    %c72_356 = arith.constant 72 : index
    %c0_357 = arith.constant 0 : index
    %276 = vector.load %arg13[%c72_356, %c0_357] : memref<144x32xf32, #tpu.memory_space<vmem>>, vector<10x32xf32>
    %c60_358 = arith.constant 60 : index
    %c0_359 = arith.constant 0 : index
    %277 = vector.load %arg14[%c60_358, %c0_359] : memref<100x32xf32, #tpu.memory_space<vmem>>, vector<10x32xf32>
    tpu.vector_store %arg14[%c60_358, %c0_359], %276 {strides = array<i32>} : memref<100x32xf32, #tpu.memory_space<vmem>>, vector<10x32xf32>,
    %c84 = arith.constant 84 : index
    %c0_360 = arith.constant 0 : index
    %278 = vector.load %arg13[%c84, %c0_360] : memref<144x32xf32, #tpu.memory_space<vmem>>, vector<10x32xf32>
    %c70 = arith.constant 70 : index
    %c0_361 = arith.constant 0 : index
    %279 = vector.load %arg14[%c70, %c0_361] : memref<100x32xf32, #tpu.memory_space<vmem>>, vector<10x32xf32>
    tpu.vector_store %arg14[%c70, %c0_361], %278 {strides = array<i32>} : memref<100x32xf32, #tpu.memory_space<vmem>>, vector<10x32xf32>,
    %c96 = arith.constant 96 : index
    %c0_362 = arith.constant 0 : index
    %280 = vector.load %arg13[%c96, %c0_362] : memref<144x32xf32, #tpu.memory_space<vmem>>, vector<10x32xf32>
    %c80 = arith.constant 80 : index
    %c0_363 = arith.constant 0 : index
    %281 = vector.load %arg14[%c80, %c0_363] : memref<100x32xf32, #tpu.memory_space<vmem>>, vector<10x32xf32>
    tpu.vector_store %arg14[%c80, %c0_363], %280 {strides = array<i32>} : memref<100x32xf32, #tpu.memory_space<vmem>>, vector<10x32xf32>,
    %c108_364 = arith.constant 108 : index
    %c0_365 = arith.constant 0 : index
    %282 = vector.load %arg13[%c108_364, %c0_365] : memref<144x32xf32, #tpu.memory_space<vmem>>, vector<10x32xf32>
    %c90_366 = arith.constant 90 : index
    %c0_367 = arith.constant 0 : index
    %283 = vector.load %arg14[%c90_366, %c0_367] : memref<100x32xf32, #tpu.memory_space<vmem>>, vector<10x32xf32>
    tpu.vector_store %arg14[%c90_366, %c0_367], %282 {strides = array<i32>} : memref<100x32xf32, #tpu.memory_space<vmem>>, vector<10x32xf32>,
    %c0_368 = arith.constant 0 : index
    %c0_369 = arith.constant 0 : index
    %284 = vector.load %arg14[%c0_368, %c0_369] : memref<100x32xf32, #tpu.memory_space<vmem>>, vector<100x32xf32>
    %c0_370 = arith.constant 0 : index
    %c0_371 = arith.constant 0 : index
    %c0_372 = arith.constant 0 : index
    %285 = vector.load %arg8[%c0_370, %c0_371, %c0_372] : memref<9x32x64xf32, #tpu.memory_space<vmem>>, vector<1x32x64xf32>
    %286 = vector.shape_cast %285 : vector<1x32x64xf32> to vector<32x64xf32>
    %cst_373 = arith.constant dense<0.000000e+00> : vector<100x64xf32>
    %287 = tpu.matmul %284, %286, %cst_373 {dimension_numbers = #tpu.dot_dimension_numbers<[1], [0], [0], [1], [0, 0, 1, 1], [], []>} : vector<100x32xf32>, vector<32x64xf32>, vector<100x64xf32> -> vector<100x64xf32>
    %288 = arith.addf %263, %287 : vector<100x64xf32>
    %c1_374 = arith.constant 1 : index
    %c0_375 = arith.constant 0 : index
    %289 = vector.load %arg13[%c1_374, %c0_375] : memref<144x32xf32, #tpu.memory_space<vmem>>, vector<10x32xf32>
    %c0_376 = arith.constant 0 : index
    %c0_377 = arith.constant 0 : index
    %290 = vector.load %arg14[%c0_376, %c0_377] : memref<100x32xf32, #tpu.memory_space<vmem>>, vector<10x32xf32>
    tpu.vector_store %arg14[%c0_376, %c0_377], %289 {strides = array<i32>} : memref<100x32xf32, #tpu.memory_space<vmem>>, vector<10x32xf32>,
    %c13_378 = arith.constant 13 : index
    %c0_379 = arith.constant 0 : index
    %291 = vector.load %arg13[%c13_378, %c0_379] : memref<144x32xf32, #tpu.memory_space<vmem>>, vector<10x32xf32>
    %c10_380 = arith.constant 10 : index
    %c0_381 = arith.constant 0 : index
    %292 = vector.load %arg14[%c10_380, %c0_381] : memref<100x32xf32, #tpu.memory_space<vmem>>, vector<10x32xf32>
    tpu.vector_store %arg14[%c10_380, %c0_381], %291 {strides = array<i32>} : memref<100x32xf32, #tpu.memory_space<vmem>>, vector<10x32xf32>,
    %c25_382 = arith.constant 25 : index
    %c0_383 = arith.constant 0 : index
    %293 = vector.load %arg13[%c25_382, %c0_383] : memref<144x32xf32, #tpu.memory_space<vmem>>, vector<10x32xf32>
    %c20_384 = arith.constant 20 : index
    %c0_385 = arith.constant 0 : index
    %294 = vector.load %arg14[%c20_384, %c0_385] : memref<100x32xf32, #tpu.memory_space<vmem>>, vector<10x32xf32>
    tpu.vector_store %arg14[%c20_384, %c0_385], %293 {strides = array<i32>} : memref<100x32xf32, #tpu.memory_space<vmem>>, vector<10x32xf32>,
    %c37_386 = arith.constant 37 : index
    %c0_387 = arith.constant 0 : index
    %295 = vector.load %arg13[%c37_386, %c0_387] : memref<144x32xf32, #tpu.memory_space<vmem>>, vector<10x32xf32>
    %c30_388 = arith.constant 30 : index
    %c0_389 = arith.constant 0 : index
    %296 = vector.load %arg14[%c30_388, %c0_389] : memref<100x32xf32, #tpu.memory_space<vmem>>, vector<10x32xf32>
    tpu.vector_store %arg14[%c30_388, %c0_389], %295 {strides = array<i32>} : memref<100x32xf32, #tpu.memory_space<vmem>>, vector<10x32xf32>,
    %c49_390 = arith.constant 49 : index
    %c0_391 = arith.constant 0 : index
    %297 = vector.load %arg13[%c49_390, %c0_391] : memref<144x32xf32, #tpu.memory_space<vmem>>, vector<10x32xf32>
    %c40_392 = arith.constant 40 : index
    %c0_393 = arith.constant 0 : index
    %298 = vector.load %arg14[%c40_392, %c0_393] : memref<100x32xf32, #tpu.memory_space<vmem>>, vector<10x32xf32>
    tpu.vector_store %arg14[%c40_392, %c0_393], %297 {strides = array<i32>} : memref<100x32xf32, #tpu.memory_space<vmem>>, vector<10x32xf32>,
    %c61_394 = arith.constant 61 : index
    %c0_395 = arith.constant 0 : index
    %299 = vector.load %arg13[%c61_394, %c0_395] : memref<144x32xf32, #tpu.memory_space<vmem>>, vector<10x32xf32>
    %c50_396 = arith.constant 50 : index
    %c0_397 = arith.constant 0 : index
    %300 = vector.load %arg14[%c50_396, %c0_397] : memref<100x32xf32, #tpu.memory_space<vmem>>, vector<10x32xf32>
    tpu.vector_store %arg14[%c50_396, %c0_397], %299 {strides = array<i32>} : memref<100x32xf32, #tpu.memory_space<vmem>>, vector<10x32xf32>,
    %c73_398 = arith.constant 73 : index
    %c0_399 = arith.constant 0 : index
    %301 = vector.load %arg13[%c73_398, %c0_399] : memref<144x32xf32, #tpu.memory_space<vmem>>, vector<10x32xf32>
    %c60_400 = arith.constant 60 : index
    %c0_401 = arith.constant 0 : index
    %302 = vector.load %arg14[%c60_400, %c0_401] : memref<100x32xf32, #tpu.memory_space<vmem>>, vector<10x32xf32>
    tpu.vector_store %arg14[%c60_400, %c0_401], %301 {strides = array<i32>} : memref<100x32xf32, #tpu.memory_space<vmem>>, vector<10x32xf32>,
    %c85_402 = arith.constant 85 : index
    %c0_403 = arith.constant 0 : index
    %303 = vector.load %arg13[%c85_402, %c0_403] : memref<144x32xf32, #tpu.memory_space<vmem>>, vector<10x32xf32>
    %c70_404 = arith.constant 70 : index
    %c0_405 = arith.constant 0 : index
    %304 = vector.load %arg14[%c70_404, %c0_405] : memref<100x32xf32, #tpu.memory_space<vmem>>, vector<10x32xf32>
    tpu.vector_store %arg14[%c70_404, %c0_405], %303 {strides = array<i32>} : memref<100x32xf32, #tpu.memory_space<vmem>>, vector<10x32xf32>,
    %c97_406 = arith.constant 97 : index
    %c0_407 = arith.constant 0 : index
    %305 = vector.load %arg13[%c97_406, %c0_407] : memref<144x32xf32, #tpu.memory_space<vmem>>, vector<10x32xf32>
    %c80_408 = arith.constant 80 : index
    %c0_409 = arith.constant 0 : index
    %306 = vector.load %arg14[%c80_408, %c0_409] : memref<100x32xf32, #tpu.memory_space<vmem>>, vector<10x32xf32>
    tpu.vector_store %arg14[%c80_408, %c0_409], %305 {strides = array<i32>} : memref<100x32xf32, #tpu.memory_space<vmem>>, vector<10x32xf32>,
    %c109_410 = arith.constant 109 : index
    %c0_411 = arith.constant 0 : index
    %307 = vector.load %arg13[%c109_410, %c0_411] : memref<144x32xf32, #tpu.memory_space<vmem>>, vector<10x32xf32>
    %c90_412 = arith.constant 90 : index
    %c0_413 = arith.constant 0 : index
    %308 = vector.load %arg14[%c90_412, %c0_413] : memref<100x32xf32, #tpu.memory_space<vmem>>, vector<10x32xf32>
    tpu.vector_store %arg14[%c90_412, %c0_413], %307 {strides = array<i32>} : memref<100x32xf32, #tpu.memory_space<vmem>>, vector<10x32xf32>,
    %c0_414 = arith.constant 0 : index
    %c0_415 = arith.constant 0 : index
    %309 = vector.load %arg14[%c0_414, %c0_415] : memref<100x32xf32, #tpu.memory_space<vmem>>, vector<100x32xf32>
    %c1_416 = arith.constant 1 : index
    %c0_417 = arith.constant 0 : index
    %c0_418 = arith.constant 0 : index
    %310 = vector.load %arg8[%c1_416, %c0_417, %c0_418] : memref<9x32x64xf32, #tpu.memory_space<vmem>>, vector<1x32x64xf32>
    %311 = vector.shape_cast %310 : vector<1x32x64xf32> to vector<32x64xf32>
    %cst_419 = arith.constant dense<0.000000e+00> : vector<100x64xf32>
    %312 = tpu.matmul %309, %311, %cst_419 {dimension_numbers = #tpu.dot_dimension_numbers<[1], [0], [0], [1], [0, 0, 1, 1], [], []>} : vector<100x32xf32>, vector<32x64xf32>, vector<100x64xf32> -> vector<100x64xf32>
    %313 = arith.addf %288, %312 : vector<100x64xf32>
    %c2_420 = arith.constant 2 : index
    %c0_421 = arith.constant 0 : index
    %314 = vector.load %arg13[%c2_420, %c0_421] : memref<144x32xf32, #tpu.memory_space<vmem>>, vector<10x32xf32>
    %c0_422 = arith.constant 0 : index
    %c0_423 = arith.constant 0 : index
    %315 = vector.load %arg14[%c0_422, %c0_423] : memref<100x32xf32, #tpu.memory_space<vmem>>, vector<10x32xf32>
    tpu.vector_store %arg14[%c0_422, %c0_423], %314 {strides = array<i32>} : memref<100x32xf32, #tpu.memory_space<vmem>>, vector<10x32xf32>,
    %c14 = arith.constant 14 : index
    %c0_424 = arith.constant 0 : index
    %316 = vector.load %arg13[%c14, %c0_424] : memref<144x32xf32, #tpu.memory_space<vmem>>, vector<10x32xf32>
    %c10_425 = arith.constant 10 : index
    %c0_426 = arith.constant 0 : index
    %317 = vector.load %arg14[%c10_425, %c0_426] : memref<100x32xf32, #tpu.memory_space<vmem>>, vector<10x32xf32>
    tpu.vector_store %arg14[%c10_425, %c0_426], %316 {strides = array<i32>} : memref<100x32xf32, #tpu.memory_space<vmem>>, vector<10x32xf32>,
    %c26_427 = arith.constant 26 : index
    %c0_428 = arith.constant 0 : index
    %318 = vector.load %arg13[%c26_427, %c0_428] : memref<144x32xf32, #tpu.memory_space<vmem>>, vector<10x32xf32>
    %c20_429 = arith.constant 20 : index
    %c0_430 = arith.constant 0 : index
    %319 = vector.load %arg14[%c20_429, %c0_430] : memref<100x32xf32, #tpu.memory_space<vmem>>, vector<10x32xf32>
    tpu.vector_store %arg14[%c20_429, %c0_430], %318 {strides = array<i32>} : memref<100x32xf32, #tpu.memory_space<vmem>>, vector<10x32xf32>,
    %c38_431 = arith.constant 38 : index
    %c0_432 = arith.constant 0 : index
    %320 = vector.load %arg13[%c38_431, %c0_432] : memref<144x32xf32, #tpu.memory_space<vmem>>, vector<10x32xf32>
    %c30_433 = arith.constant 30 : index
    %c0_434 = arith.constant 0 : index
    %321 = vector.load %arg14[%c30_433, %c0_434] : memref<100x32xf32, #tpu.memory_space<vmem>>, vector<10x32xf32>
    tpu.vector_store %arg14[%c30_433, %c0_434], %320 {strides = array<i32>} : memref<100x32xf32, #tpu.memory_space<vmem>>, vector<10x32xf32>,
    %c50_435 = arith.constant 50 : index
    %c0_436 = arith.constant 0 : index
    %322 = vector.load %arg13[%c50_435, %c0_436] : memref<144x32xf32, #tpu.memory_space<vmem>>, vector<10x32xf32>
    %c40_437 = arith.constant 40 : index
    %c0_438 = arith.constant 0 : index
    %323 = vector.load %arg14[%c40_437, %c0_438] : memref<100x32xf32, #tpu.memory_space<vmem>>, vector<10x32xf32>
    tpu.vector_store %arg14[%c40_437, %c0_438], %322 {strides = array<i32>} : memref<100x32xf32, #tpu.memory_space<vmem>>, vector<10x32xf32>,
    %c62_439 = arith.constant 62 : index
    %c0_440 = arith.constant 0 : index
    %324 = vector.load %arg13[%c62_439, %c0_440] : memref<144x32xf32, #tpu.memory_space<vmem>>, vector<10x32xf32>
    %c50_441 = arith.constant 50 : index
    %c0_442 = arith.constant 0 : index
    %325 = vector.load %arg14[%c50_441, %c0_442] : memref<100x32xf32, #tpu.memory_space<vmem>>, vector<10x32xf32>
    tpu.vector_store %arg14[%c50_441, %c0_442], %324 {strides = array<i32>} : memref<100x32xf32, #tpu.memory_space<vmem>>, vector<10x32xf32>,
    %c74_443 = arith.constant 74 : index
    %c0_444 = arith.constant 0 : index
    %326 = vector.load %arg13[%c74_443, %c0_444] : memref<144x32xf32, #tpu.memory_space<vmem>>, vector<10x32xf32>
    %c60_445 = arith.constant 60 : index
    %c0_446 = arith.constant 0 : index
    %327 = vector.load %arg14[%c60_445, %c0_446] : memref<100x32xf32, #tpu.memory_space<vmem>>, vector<10x32xf32>
    tpu.vector_store %arg14[%c60_445, %c0_446], %326 {strides = array<i32>} : memref<100x32xf32, #tpu.memory_space<vmem>>, vector<10x32xf32>,
    %c86_447 = arith.constant 86 : index
    %c0_448 = arith.constant 0 : index
    %328 = vector.load %arg13[%c86_447, %c0_448] : memref<144x32xf32, #tpu.memory_space<vmem>>, vector<10x32xf32>
    %c70_449 = arith.constant 70 : index
    %c0_450 = arith.constant 0 : index
    %329 = vector.load %arg14[%c70_449, %c0_450] : memref<100x32xf32, #tpu.memory_space<vmem>>, vector<10x32xf32>
    tpu.vector_store %arg14[%c70_449, %c0_450], %328 {strides = array<i32>} : memref<100x32xf32, #tpu.memory_space<vmem>>, vector<10x32xf32>,
    %c98_451 = arith.constant 98 : index
    %c0_452 = arith.constant 0 : index
    %330 = vector.load %arg13[%c98_451, %c0_452] : memref<144x32xf32, #tpu.memory_space<vmem>>, vector<10x32xf32>
    %c80_453 = arith.constant 80 : index
    %c0_454 = arith.constant 0 : index
    %331 = vector.load %arg14[%c80_453, %c0_454] : memref<100x32xf32, #tpu.memory_space<vmem>>, vector<10x32xf32>
    tpu.vector_store %arg14[%c80_453, %c0_454], %330 {strides = array<i32>} : memref<100x32xf32, #tpu.memory_space<vmem>>, vector<10x32xf32>,
    %c110_455 = arith.constant 110 : index
    %c0_456 = arith.constant 0 : index
    %332 = vector.load %arg13[%c110_455, %c0_456] : memref<144x32xf32, #tpu.memory_space<vmem>>, vector<10x32xf32>
    %c90_457 = arith.constant 90 : index
    %c0_458 = arith.constant 0 : index
    %333 = vector.load %arg14[%c90_457, %c0_458] : memref<100x32xf32, #tpu.memory_space<vmem>>, vector<10x32xf32>
    tpu.vector_store %arg14[%c90_457, %c0_458], %332 {strides = array<i32>} : memref<100x32xf32, #tpu.memory_space<vmem>>, vector<10x32xf32>,
    %c0_459 = arith.constant 0 : index
    %c0_460 = arith.constant 0 : index
    %334 = vector.load %arg14[%c0_459, %c0_460] : memref<100x32xf32, #tpu.memory_space<vmem>>, vector<100x32xf32>
    %c2_461 = arith.constant 2 : index
    %c0_462 = arith.constant 0 : index
    %c0_463 = arith.constant 0 : index
    %335 = vector.load %arg8[%c2_461, %c0_462, %c0_463] : memref<9x32x64xf32, #tpu.memory_space<vmem>>, vector<1x32x64xf32>
    %336 = vector.shape_cast %335 : vector<1x32x64xf32> to vector<32x64xf32>
    %cst_464 = arith.constant dense<0.000000e+00> : vector<100x64xf32>
    %337 = tpu.matmul %334, %336, %cst_464 {dimension_numbers = #tpu.dot_dimension_numbers<[1], [0], [0], [1], [0, 0, 1, 1], [], []>} : vector<100x32xf32>, vector<32x64xf32>, vector<100x64xf32> -> vector<100x64xf32>
    %338 = arith.addf %313, %337 : vector<100x64xf32>
    %c12_465 = arith.constant 12 : index
    %c0_466 = arith.constant 0 : index
    %339 = vector.load %arg13[%c12_465, %c0_466] : memref<144x32xf32, #tpu.memory_space<vmem>>, vector<10x32xf32>
    %c0_467 = arith.constant 0 : index
    %c0_468 = arith.constant 0 : index
    %340 = vector.load %arg14[%c0_467, %c0_468] : memref<100x32xf32, #tpu.memory_space<vmem>>, vector<10x32xf32>
    tpu.vector_store %arg14[%c0_467, %c0_468], %339 {strides = array<i32>} : memref<100x32xf32, #tpu.memory_space<vmem>>, vector<10x32xf32>,
    %c24_469 = arith.constant 24 : index
    %c0_470 = arith.constant 0 : index
    %341 = vector.load %arg13[%c24_469, %c0_470] : memref<144x32xf32, #tpu.memory_space<vmem>>, vector<10x32xf32>
    %c10_471 = arith.constant 10 : index
    %c0_472 = arith.constant 0 : index
    %342 = vector.load %arg14[%c10_471, %c0_472] : memref<100x32xf32, #tpu.memory_space<vmem>>, vector<10x32xf32>
    tpu.vector_store %arg14[%c10_471, %c0_472], %341 {strides = array<i32>} : memref<100x32xf32, #tpu.memory_space<vmem>>, vector<10x32xf32>,
    %c36_473 = arith.constant 36 : index
    %c0_474 = arith.constant 0 : index
    %343 = vector.load %arg13[%c36_473, %c0_474] : memref<144x32xf32, #tpu.memory_space<vmem>>, vector<10x32xf32>
    %c20_475 = arith.constant 20 : index
    %c0_476 = arith.constant 0 : index
    %344 = vector.load %arg14[%c20_475, %c0_476] : memref<100x32xf32, #tpu.memory_space<vmem>>, vector<10x32xf32>
    tpu.vector_store %arg14[%c20_475, %c0_476], %343 {strides = array<i32>} : memref<100x32xf32, #tpu.memory_space<vmem>>, vector<10x32xf32>,
    %c48_477 = arith.constant 48 : index
    %c0_478 = arith.constant 0 : index
    %345 = vector.load %arg13[%c48_477, %c0_478] : memref<144x32xf32, #tpu.memory_space<vmem>>, vector<10x32xf32>
    %c30_479 = arith.constant 30 : index
    %c0_480 = arith.constant 0 : index
    %346 = vector.load %arg14[%c30_479, %c0_480] : memref<100x32xf32, #tpu.memory_space<vmem>>, vector<10x32xf32>
    tpu.vector_store %arg14[%c30_479, %c0_480], %345 {strides = array<i32>} : memref<100x32xf32, #tpu.memory_space<vmem>>, vector<10x32xf32>,
    %c60_481 = arith.constant 60 : index
    %c0_482 = arith.constant 0 : index
    %347 = vector.load %arg13[%c60_481, %c0_482] : memref<144x32xf32, #tpu.memory_space<vmem>>, vector<10x32xf32>
    %c40_483 = arith.constant 40 : index
    %c0_484 = arith.constant 0 : index
    %348 = vector.load %arg14[%c40_483, %c0_484] : memref<100x32xf32, #tpu.memory_space<vmem>>, vector<10x32xf32>
    tpu.vector_store %arg14[%c40_483, %c0_484], %347 {strides = array<i32>} : memref<100x32xf32, #tpu.memory_space<vmem>>, vector<10x32xf32>,
    %c72_485 = arith.constant 72 : index
    %c0_486 = arith.constant 0 : index
    %349 = vector.load %arg13[%c72_485, %c0_486] : memref<144x32xf32, #tpu.memory_space<vmem>>, vector<10x32xf32>
    %c50_487 = arith.constant 50 : index
    %c0_488 = arith.constant 0 : index
    %350 = vector.load %arg14[%c50_487, %c0_488] : memref<100x32xf32, #tpu.memory_space<vmem>>, vector<10x32xf32>
    tpu.vector_store %arg14[%c50_487, %c0_488], %349 {strides = array<i32>} : memref<100x32xf32, #tpu.memory_space<vmem>>, vector<10x32xf32>,
    %c84_489 = arith.constant 84 : index
    %c0_490 = arith.constant 0 : index
    %351 = vector.load %arg13[%c84_489, %c0_490] : memref<144x32xf32, #tpu.memory_space<vmem>>, vector<10x32xf32>
    %c60_491 = arith.constant 60 : index
    %c0_492 = arith.constant 0 : index
    %352 = vector.load %arg14[%c60_491, %c0_492] : memref<100x32xf32, #tpu.memory_space<vmem>>, vector<10x32xf32>
    tpu.vector_store %arg14[%c60_491, %c0_492], %351 {strides = array<i32>} : memref<100x32xf32, #tpu.memory_space<vmem>>, vector<10x32xf32>,
    %c96_493 = arith.constant 96 : index
    %c0_494 = arith.constant 0 : index
    %353 = vector.load %arg13[%c96_493, %c0_494] : memref<144x32xf32, #tpu.memory_space<vmem>>, vector<10x32xf32>
    %c70_495 = arith.constant 70 : index
    %c0_496 = arith.constant 0 : index
    %354 = vector.load %arg14[%c70_495, %c0_496] : memref<100x32xf32, #tpu.memory_space<vmem>>, vector<10x32xf32>
    tpu.vector_store %arg14[%c70_495, %c0_496], %353 {strides = array<i32>} : memref<100x32xf32, #tpu.memory_space<vmem>>, vector<10x32xf32>,
    %c108_497 = arith.constant 108 : index
    %c0_498 = arith.constant 0 : index
    %355 = vector.load %arg13[%c108_497, %c0_498] : memref<144x32xf32, #tpu.memory_space<vmem>>, vector<10x32xf32>
    %c80_499 = arith.constant 80 : index
    %c0_500 = arith.constant 0 : index
    %356 = vector.load %arg14[%c80_499, %c0_500] : memref<100x32xf32, #tpu.memory_space<vmem>>, vector<10x32xf32>
    tpu.vector_store %arg14[%c80_499, %c0_500], %355 {strides = array<i32>} : memref<100x32xf32, #tpu.memory_space<vmem>>, vector<10x32xf32>,
    %c120 = arith.constant 120 : index
    %c0_501 = arith.constant 0 : index
    %357 = vector.load %arg13[%c120, %c0_501] : memref<144x32xf32, #tpu.memory_space<vmem>>, vector<10x32xf32>
    %c90_502 = arith.constant 90 : index
    %c0_503 = arith.constant 0 : index
    %358 = vector.load %arg14[%c90_502, %c0_503] : memref<100x32xf32, #tpu.memory_space<vmem>>, vector<10x32xf32>
    tpu.vector_store %arg14[%c90_502, %c0_503], %357 {strides = array<i32>} : memref<100x32xf32, #tpu.memory_space<vmem>>, vector<10x32xf32>,
    %c0_504 = arith.constant 0 : index
    %c0_505 = arith.constant 0 : index
    %359 = vector.load %arg14[%c0_504, %c0_505] : memref<100x32xf32, #tpu.memory_space<vmem>>, vector<100x32xf32>
    %c3_506 = arith.constant 3 : index
    %c0_507 = arith.constant 0 : index
    %c0_508 = arith.constant 0 : index
    %360 = vector.load %arg8[%c3_506, %c0_507, %c0_508] : memref<9x32x64xf32, #tpu.memory_space<vmem>>, vector<1x32x64xf32>
    %361 = vector.shape_cast %360 : vector<1x32x64xf32> to vector<32x64xf32>
    %cst_509 = arith.constant dense<0.000000e+00> : vector<100x64xf32>
    %362 = tpu.matmul %359, %361, %cst_509 {dimension_numbers = #tpu.dot_dimension_numbers<[1], [0], [0], [1], [0, 0, 1, 1], [], []>} : vector<100x32xf32>, vector<32x64xf32>, vector<100x64xf32> -> vector<100x64xf32>
    %363 = arith.addf %338, %362 : vector<100x64xf32>
    %c13_510 = arith.constant 13 : index
    %c0_511 = arith.constant 0 : index
    %364 = vector.load %arg13[%c13_510, %c0_511] : memref<144x32xf32, #tpu.memory_space<vmem>>, vector<10x32xf32>
    %c0_512 = arith.constant 0 : index
    %c0_513 = arith.constant 0 : index
    %365 = vector.load %arg14[%c0_512, %c0_513] : memref<100x32xf32, #tpu.memory_space<vmem>>, vector<10x32xf32>
    tpu.vector_store %arg14[%c0_512, %c0_513], %364 {strides = array<i32>} : memref<100x32xf32, #tpu.memory_space<vmem>>, vector<10x32xf32>,
    %c25_514 = arith.constant 25 : index
    %c0_515 = arith.constant 0 : index
    %366 = vector.load %arg13[%c25_514, %c0_515] : memref<144x32xf32, #tpu.memory_space<vmem>>, vector<10x32xf32>
    %c10_516 = arith.constant 10 : index
    %c0_517 = arith.constant 0 : index
    %367 = vector.load %arg14[%c10_516, %c0_517] : memref<100x32xf32, #tpu.memory_space<vmem>>, vector<10x32xf32>
    tpu.vector_store %arg14[%c10_516, %c0_517], %366 {strides = array<i32>} : memref<100x32xf32, #tpu.memory_space<vmem>>, vector<10x32xf32>,
    %c37_518 = arith.constant 37 : index
    %c0_519 = arith.constant 0 : index
    %368 = vector.load %arg13[%c37_518, %c0_519] : memref<144x32xf32, #tpu.memory_space<vmem>>, vector<10x32xf32>
    %c20_520 = arith.constant 20 : index
    %c0_521 = arith.constant 0 : index
    %369 = vector.load %arg14[%c20_520, %c0_521] : memref<100x32xf32, #tpu.memory_space<vmem>>, vector<10x32xf32>
    tpu.vector_store %arg14[%c20_520, %c0_521], %368 {strides = array<i32>} : memref<100x32xf32, #tpu.memory_space<vmem>>, vector<10x32xf32>,
    %c49_522 = arith.constant 49 : index
    %c0_523 = arith.constant 0 : index
    %370 = vector.load %arg13[%c49_522, %c0_523] : memref<144x32xf32, #tpu.memory_space<vmem>>, vector<10x32xf32>
    %c30_524 = arith.constant 30 : index
    %c0_525 = arith.constant 0 : index
    %371 = vector.load %arg14[%c30_524, %c0_525] : memref<100x32xf32, #tpu.memory_space<vmem>>, vector<10x32xf32>
    tpu.vector_store %arg14[%c30_524, %c0_525], %370 {strides = array<i32>} : memref<100x32xf32, #tpu.memory_space<vmem>>, vector<10x32xf32>,
    %c61_526 = arith.constant 61 : index
    %c0_527 = arith.constant 0 : index
    %372 = vector.load %arg13[%c61_526, %c0_527] : memref<144x32xf32, #tpu.memory_space<vmem>>, vector<10x32xf32>
    %c40_528 = arith.constant 40 : index
    %c0_529 = arith.constant 0 : index
    %373 = vector.load %arg14[%c40_528, %c0_529] : memref<100x32xf32, #tpu.memory_space<vmem>>, vector<10x32xf32>
    tpu.vector_store %arg14[%c40_528, %c0_529], %372 {strides = array<i32>} : memref<100x32xf32, #tpu.memory_space<vmem>>, vector<10x32xf32>,
    %c73_530 = arith.constant 73 : index
    %c0_531 = arith.constant 0 : index
    %374 = vector.load %arg13[%c73_530, %c0_531] : memref<144x32xf32, #tpu.memory_space<vmem>>, vector<10x32xf32>
    %c50_532 = arith.constant 50 : index
    %c0_533 = arith.constant 0 : index
    %375 = vector.load %arg14[%c50_532, %c0_533] : memref<100x32xf32, #tpu.memory_space<vmem>>, vector<10x32xf32>
    tpu.vector_store %arg14[%c50_532, %c0_533], %374 {strides = array<i32>} : memref<100x32xf32, #tpu.memory_space<vmem>>, vector<10x32xf32>,
    %c85_534 = arith.constant 85 : index
    %c0_535 = arith.constant 0 : index
    %376 = vector.load %arg13[%c85_534, %c0_535] : memref<144x32xf32, #tpu.memory_space<vmem>>, vector<10x32xf32>
    %c60_536 = arith.constant 60 : index
    %c0_537 = arith.constant 0 : index
    %377 = vector.load %arg14[%c60_536, %c0_537] : memref<100x32xf32, #tpu.memory_space<vmem>>, vector<10x32xf32>
    tpu.vector_store %arg14[%c60_536, %c0_537], %376 {strides = array<i32>} : memref<100x32xf32, #tpu.memory_space<vmem>>, vector<10x32xf32>,
    %c97_538 = arith.constant 97 : index
    %c0_539 = arith.constant 0 : index
    %378 = vector.load %arg13[%c97_538, %c0_539] : memref<144x32xf32, #tpu.memory_space<vmem>>, vector<10x32xf32>
    %c70_540 = arith.constant 70 : index
    %c0_541 = arith.constant 0 : index
    %379 = vector.load %arg14[%c70_540, %c0_541] : memref<100x32xf32, #tpu.memory_space<vmem>>, vector<10x32xf32>
    tpu.vector_store %arg14[%c70_540, %c0_541], %378 {strides = array<i32>} : memref<100x32xf32, #tpu.memory_space<vmem>>, vector<10x32xf32>,
    %c109_542 = arith.constant 109 : index
    %c0_543 = arith.constant 0 : index
    %380 = vector.load %arg13[%c109_542, %c0_543] : memref<144x32xf32, #tpu.memory_space<vmem>>, vector<10x32xf32>
    %c80_544 = arith.constant 80 : index
    %c0_545 = arith.constant 0 : index
    %381 = vector.load %arg14[%c80_544, %c0_545] : memref<100x32xf32, #tpu.memory_space<vmem>>, vector<10x32xf32>
    tpu.vector_store %arg14[%c80_544, %c0_545], %380 {strides = array<i32>} : memref<100x32xf32, #tpu.memory_space<vmem>>, vector<10x32xf32>,
    %c121_546 = arith.constant 121 : index
    %c0_547 = arith.constant 0 : index
    %382 = vector.load %arg13[%c121_546, %c0_547] : memref<144x32xf32, #tpu.memory_space<vmem>>, vector<10x32xf32>
    %c90_548 = arith.constant 90 : index
    %c0_549 = arith.constant 0 : index
    %383 = vector.load %arg14[%c90_548, %c0_549] : memref<100x32xf32, #tpu.memory_space<vmem>>, vector<10x32xf32>
    tpu.vector_store %arg14[%c90_548, %c0_549], %382 {strides = array<i32>} : memref<100x32xf32, #tpu.memory_space<vmem>>, vector<10x32xf32>,
    %c0_550 = arith.constant 0 : index
    %c0_551 = arith.constant 0 : index
    %384 = vector.load %arg14[%c0_550, %c0_551] : memref<100x32xf32, #tpu.memory_space<vmem>>, vector<100x32xf32>
    %c4_552 = arith.constant 4 : index
    %c0_553 = arith.constant 0 : index
    %c0_554 = arith.constant 0 : index
    %385 = vector.load %arg8[%c4_552, %c0_553, %c0_554] : memref<9x32x64xf32, #tpu.memory_space<vmem>>, vector<1x32x64xf32>
    %386 = vector.shape_cast %385 : vector<1x32x64xf32> to vector<32x64xf32>
    %cst_555 = arith.constant dense<0.000000e+00> : vector<100x64xf32>
    %387 = tpu.matmul %384, %386, %cst_555 {dimension_numbers = #tpu.dot_dimension_numbers<[1], [0], [0], [1], [0, 0, 1, 1], [], []>} : vector<100x32xf32>, vector<32x64xf32>, vector<100x64xf32> -> vector<100x64xf32>
    %388 = arith.addf %363, %387 : vector<100x64xf32>
    %c14_556 = arith.constant 14 : index
    %c0_557 = arith.constant 0 : index
    %389 = vector.load %arg13[%c14_556, %c0_557] : memref<144x32xf32, #tpu.memory_space<vmem>>, vector<10x32xf32>
    %c0_558 = arith.constant 0 : index
    %c0_559 = arith.constant 0 : index
    %390 = vector.load %arg14[%c0_558, %c0_559] : memref<100x32xf32, #tpu.memory_space<vmem>>, vector<10x32xf32>
    tpu.vector_store %arg14[%c0_558, %c0_559], %389 {strides = array<i32>} : memref<100x32xf32, #tpu.memory_space<vmem>>, vector<10x32xf32>,
    %c26_560 = arith.constant 26 : index
    %c0_561 = arith.constant 0 : index
    %391 = vector.load %arg13[%c26_560, %c0_561] : memref<144x32xf32, #tpu.memory_space<vmem>>, vector<10x32xf32>
    %c10_562 = arith.constant 10 : index
    %c0_563 = arith.constant 0 : index
    %392 = vector.load %arg14[%c10_562, %c0_563] : memref<100x32xf32, #tpu.memory_space<vmem>>, vector<10x32xf32>
    tpu.vector_store %arg14[%c10_562, %c0_563], %391 {strides = array<i32>} : memref<100x32xf32, #tpu.memory_space<vmem>>, vector<10x32xf32>,
    %c38_564 = arith.constant 38 : index
    %c0_565 = arith.constant 0 : index
    %393 = vector.load %arg13[%c38_564, %c0_565] : memref<144x32xf32, #tpu.memory_space<vmem>>, vector<10x32xf32>
    %c20_566 = arith.constant 20 : index
    %c0_567 = arith.constant 0 : index
    %394 = vector.load %arg14[%c20_566, %c0_567] : memref<100x32xf32, #tpu.memory_space<vmem>>, vector<10x32xf32>
    tpu.vector_store %arg14[%c20_566, %c0_567], %393 {strides = array<i32>} : memref<100x32xf32, #tpu.memory_space<vmem>>, vector<10x32xf32>,
    %c50_568 = arith.constant 50 : index
    %c0_569 = arith.constant 0 : index
    %395 = vector.load %arg13[%c50_568, %c0_569] : memref<144x32xf32, #tpu.memory_space<vmem>>, vector<10x32xf32>
    %c30_570 = arith.constant 30 : index
    %c0_571 = arith.constant 0 : index
    %396 = vector.load %arg14[%c30_570, %c0_571] : memref<100x32xf32, #tpu.memory_space<vmem>>, vector<10x32xf32>
    tpu.vector_store %arg14[%c30_570, %c0_571], %395 {strides = array<i32>} : memref<100x32xf32, #tpu.memory_space<vmem>>, vector<10x32xf32>,
    %c62_572 = arith.constant 62 : index
    %c0_573 = arith.constant 0 : index
    %397 = vector.load %arg13[%c62_572, %c0_573] : memref<144x32xf32, #tpu.memory_space<vmem>>, vector<10x32xf32>
    %c40_574 = arith.constant 40 : index
    %c0_575 = arith.constant 0 : index
    %398 = vector.load %arg14[%c40_574, %c0_575] : memref<100x32xf32, #tpu.memory_space<vmem>>, vector<10x32xf32>
    tpu.vector_store %arg14[%c40_574, %c0_575], %397 {strides = array<i32>} : memref<100x32xf32, #tpu.memory_space<vmem>>, vector<10x32xf32>,
    %c74_576 = arith.constant 74 : index
    %c0_577 = arith.constant 0 : index
    %399 = vector.load %arg13[%c74_576, %c0_577] : memref<144x32xf32, #tpu.memory_space<vmem>>, vector<10x32xf32>
    %c50_578 = arith.constant 50 : index
    %c0_579 = arith.constant 0 : index
    %400 = vector.load %arg14[%c50_578, %c0_579] : memref<100x32xf32, #tpu.memory_space<vmem>>, vector<10x32xf32>
    tpu.vector_store %arg14[%c50_578, %c0_579], %399 {strides = array<i32>} : memref<100x32xf32, #tpu.memory_space<vmem>>, vector<10x32xf32>,
    %c86_580 = arith.constant 86 : index
    %c0_581 = arith.constant 0 : index
    %401 = vector.load %arg13[%c86_580, %c0_581] : memref<144x32xf32, #tpu.memory_space<vmem>>, vector<10x32xf32>
    %c60_582 = arith.constant 60 : index
    %c0_583 = arith.constant 0 : index
    %402 = vector.load %arg14[%c60_582, %c0_583] : memref<100x32xf32, #tpu.memory_space<vmem>>, vector<10x32xf32>
    tpu.vector_store %arg14[%c60_582, %c0_583], %401 {strides = array<i32>} : memref<100x32xf32, #tpu.memory_space<vmem>>, vector<10x32xf32>,
    %c98_584 = arith.constant 98 : index
    %c0_585 = arith.constant 0 : index
    %403 = vector.load %arg13[%c98_584, %c0_585] : memref<144x32xf32, #tpu.memory_space<vmem>>, vector<10x32xf32>
    %c70_586 = arith.constant 70 : index
    %c0_587 = arith.constant 0 : index
    %404 = vector.load %arg14[%c70_586, %c0_587] : memref<100x32xf32, #tpu.memory_space<vmem>>, vector<10x32xf32>
    tpu.vector_store %arg14[%c70_586, %c0_587], %403 {strides = array<i32>} : memref<100x32xf32, #tpu.memory_space<vmem>>, vector<10x32xf32>,
    %c110_588 = arith.constant 110 : index
    %c0_589 = arith.constant 0 : index
    %405 = vector.load %arg13[%c110_588, %c0_589] : memref<144x32xf32, #tpu.memory_space<vmem>>, vector<10x32xf32>
    %c80_590 = arith.constant 80 : index
    %c0_591 = arith.constant 0 : index
    %406 = vector.load %arg14[%c80_590, %c0_591] : memref<100x32xf32, #tpu.memory_space<vmem>>, vector<10x32xf32>
    tpu.vector_store %arg14[%c80_590, %c0_591], %405 {strides = array<i32>} : memref<100x32xf32, #tpu.memory_space<vmem>>, vector<10x32xf32>,
    %c122 = arith.constant 122 : index
    %c0_592 = arith.constant 0 : index
    %407 = vector.load %arg13[%c122, %c0_592] : memref<144x32xf32, #tpu.memory_space<vmem>>, vector<10x32xf32>
    %c90_593 = arith.constant 90 : index
    %c0_594 = arith.constant 0 : index
    %408 = vector.load %arg14[%c90_593, %c0_594] : memref<100x32xf32, #tpu.memory_space<vmem>>, vector<10x32xf32>
    tpu.vector_store %arg14[%c90_593, %c0_594], %407 {strides = array<i32>} : memref<100x32xf32, #tpu.memory_space<vmem>>, vector<10x32xf32>,
    %c0_595 = arith.constant 0 : index
    %c0_596 = arith.constant 0 : index
    %409 = vector.load %arg14[%c0_595, %c0_596] : memref<100x32xf32, #tpu.memory_space<vmem>>, vector<100x32xf32>
    %c5_597 = arith.constant 5 : index
    %c0_598 = arith.constant 0 : index
    %c0_599 = arith.constant 0 : index
    %410 = vector.load %arg8[%c5_597, %c0_598, %c0_599] : memref<9x32x64xf32, #tpu.memory_space<vmem>>, vector<1x32x64xf32>
    %411 = vector.shape_cast %410 : vector<1x32x64xf32> to vector<32x64xf32>
    %cst_600 = arith.constant dense<0.000000e+00> : vector<100x64xf32>
    %412 = tpu.matmul %409, %411, %cst_600 {dimension_numbers = #tpu.dot_dimension_numbers<[1], [0], [0], [1], [0, 0, 1, 1], [], []>} : vector<100x32xf32>, vector<32x64xf32>, vector<100x64xf32> -> vector<100x64xf32>
    %413 = arith.addf %388, %412 : vector<100x64xf32>
    %c24_601 = arith.constant 24 : index
    %c0_602 = arith.constant 0 : index
    %414 = vector.load %arg13[%c24_601, %c0_602] : memref<144x32xf32, #tpu.memory_space<vmem>>, vector<10x32xf32>
    %c0_603 = arith.constant 0 : index
    %c0_604 = arith.constant 0 : index
    %415 = vector.load %arg14[%c0_603, %c0_604] : memref<100x32xf32, #tpu.memory_space<vmem>>, vector<10x32xf32>
    tpu.vector_store %arg14[%c0_603, %c0_604], %414 {strides = array<i32>} : memref<100x32xf32, #tpu.memory_space<vmem>>, vector<10x32xf32>,
    %c36_605 = arith.constant 36 : index
    %c0_606 = arith.constant 0 : index
    %416 = vector.load %arg13[%c36_605, %c0_606] : memref<144x32xf32, #tpu.memory_space<vmem>>, vector<10x32xf32>
    %c10_607 = arith.constant 10 : index
    %c0_608 = arith.constant 0 : index
    %417 = vector.load %arg14[%c10_607, %c0_608] : memref<100x32xf32, #tpu.memory_space<vmem>>, vector<10x32xf32>
    tpu.vector_store %arg14[%c10_607, %c0_608], %416 {strides = array<i32>} : memref<100x32xf32, #tpu.memory_space<vmem>>, vector<10x32xf32>,
    %c48_609 = arith.constant 48 : index
    %c0_610 = arith.constant 0 : index
    %418 = vector.load %arg13[%c48_609, %c0_610] : memref<144x32xf32, #tpu.memory_space<vmem>>, vector<10x32xf32>
    %c20_611 = arith.constant 20 : index
    %c0_612 = arith.constant 0 : index
    %419 = vector.load %arg14[%c20_611, %c0_612] : memref<100x32xf32, #tpu.memory_space<vmem>>, vector<10x32xf32>
    tpu.vector_store %arg14[%c20_611, %c0_612], %418 {strides = array<i32>} : memref<100x32xf32, #tpu.memory_space<vmem>>, vector<10x32xf32>,
    %c60_613 = arith.constant 60 : index
    %c0_614 = arith.constant 0 : index
    %420 = vector.load %arg13[%c60_613, %c0_614] : memref<144x32xf32, #tpu.memory_space<vmem>>, vector<10x32xf32>
    %c30_615 = arith.constant 30 : index
    %c0_616 = arith.constant 0 : index
    %421 = vector.load %arg14[%c30_615, %c0_616] : memref<100x32xf32, #tpu.memory_space<vmem>>, vector<10x32xf32>
    tpu.vector_store %arg14[%c30_615, %c0_616], %420 {strides = array<i32>} : memref<100x32xf32, #tpu.memory_space<vmem>>, vector<10x32xf32>,
    %c72_617 = arith.constant 72 : index
    %c0_618 = arith.constant 0 : index
    %422 = vector.load %arg13[%c72_617, %c0_618] : memref<144x32xf32, #tpu.memory_space<vmem>>, vector<10x32xf32>
    %c40_619 = arith.constant 40 : index
    %c0_620 = arith.constant 0 : index
    %423 = vector.load %arg14[%c40_619, %c0_620] : memref<100x32xf32, #tpu.memory_space<vmem>>, vector<10x32xf32>
    tpu.vector_store %arg14[%c40_619, %c0_620], %422 {strides = array<i32>} : memref<100x32xf32, #tpu.memory_space<vmem>>, vector<10x32xf32>,
    %c84_621 = arith.constant 84 : index
    %c0_622 = arith.constant 0 : index
    %424 = vector.load %arg13[%c84_621, %c0_622] : memref<144x32xf32, #tpu.memory_space<vmem>>, vector<10x32xf32>
    %c50_623 = arith.constant 50 : index
    %c0_624 = arith.constant 0 : index
    %425 = vector.load %arg14[%c50_623, %c0_624] : memref<100x32xf32, #tpu.memory_space<vmem>>, vector<10x32xf32>
    tpu.vector_store %arg14[%c50_623, %c0_624], %424 {strides = array<i32>} : memref<100x32xf32, #tpu.memory_space<vmem>>, vector<10x32xf32>,
    %c96_625 = arith.constant 96 : index
    %c0_626 = arith.constant 0 : index
    %426 = vector.load %arg13[%c96_625, %c0_626] : memref<144x32xf32, #tpu.memory_space<vmem>>, vector<10x32xf32>
    %c60_627 = arith.constant 60 : index
    %c0_628 = arith.constant 0 : index
    %427 = vector.load %arg14[%c60_627, %c0_628] : memref<100x32xf32, #tpu.memory_space<vmem>>, vector<10x32xf32>
    tpu.vector_store %arg14[%c60_627, %c0_628], %426 {strides = array<i32>} : memref<100x32xf32, #tpu.memory_space<vmem>>, vector<10x32xf32>,
    %c108_629 = arith.constant 108 : index
    %c0_630 = arith.constant 0 : index
    %428 = vector.load %arg13[%c108_629, %c0_630] : memref<144x32xf32, #tpu.memory_space<vmem>>, vector<10x32xf32>
    %c70_631 = arith.constant 70 : index
    %c0_632 = arith.constant 0 : index
    %429 = vector.load %arg14[%c70_631, %c0_632] : memref<100x32xf32, #tpu.memory_space<vmem>>, vector<10x32xf32>
    tpu.vector_store %arg14[%c70_631, %c0_632], %428 {strides = array<i32>} : memref<100x32xf32, #tpu.memory_space<vmem>>, vector<10x32xf32>,
    %c120_633 = arith.constant 120 : index
    %c0_634 = arith.constant 0 : index
    %430 = vector.load %arg13[%c120_633, %c0_634] : memref<144x32xf32, #tpu.memory_space<vmem>>, vector<10x32xf32>
    %c80_635 = arith.constant 80 : index
    %c0_636 = arith.constant 0 : index
    %431 = vector.load %arg14[%c80_635, %c0_636] : memref<100x32xf32, #tpu.memory_space<vmem>>, vector<10x32xf32>
    tpu.vector_store %arg14[%c80_635, %c0_636], %430 {strides = array<i32>} : memref<100x32xf32, #tpu.memory_space<vmem>>, vector<10x32xf32>,
    %c132 = arith.constant 132 : index
    %c0_637 = arith.constant 0 : index
    %432 = vector.load %arg13[%c132, %c0_637] : memref<144x32xf32, #tpu.memory_space<vmem>>, vector<10x32xf32>
    %c90_638 = arith.constant 90 : index
    %c0_639 = arith.constant 0 : index
    %433 = vector.load %arg14[%c90_638, %c0_639] : memref<100x32xf32, #tpu.memory_space<vmem>>, vector<10x32xf32>
    tpu.vector_store %arg14[%c90_638, %c0_639], %432 {strides = array<i32>} : memref<100x32xf32, #tpu.memory_space<vmem>>, vector<10x32xf32>,
    %c0_640 = arith.constant 0 : index
    %c0_641 = arith.constant 0 : index
    %434 = vector.load %arg14[%c0_640, %c0_641] : memref<100x32xf32, #tpu.memory_space<vmem>>, vector<100x32xf32>
    %c6_642 = arith.constant 6 : index
    %c0_643 = arith.constant 0 : index
    %c0_644 = arith.constant 0 : index
    %435 = vector.load %arg8[%c6_642, %c0_643, %c0_644] : memref<9x32x64xf32, #tpu.memory_space<vmem>>, vector<1x32x64xf32>
    %436 = vector.shape_cast %435 : vector<1x32x64xf32> to vector<32x64xf32>
    %cst_645 = arith.constant dense<0.000000e+00> : vector<100x64xf32>
    %437 = tpu.matmul %434, %436, %cst_645 {dimension_numbers = #tpu.dot_dimension_numbers<[1], [0], [0], [1], [0, 0, 1, 1], [], []>} : vector<100x32xf32>, vector<32x64xf32>, vector<100x64xf32> -> vector<100x64xf32>
    %438 = arith.addf %413, %437 : vector<100x64xf32>
    %c25_646 = arith.constant 25 : index
    %c0_647 = arith.constant 0 : index
    %439 = vector.load %arg13[%c25_646, %c0_647] : memref<144x32xf32, #tpu.memory_space<vmem>>, vector<10x32xf32>
    %c0_648 = arith.constant 0 : index
    %c0_649 = arith.constant 0 : index
    %440 = vector.load %arg14[%c0_648, %c0_649] : memref<100x32xf32, #tpu.memory_space<vmem>>, vector<10x32xf32>
    tpu.vector_store %arg14[%c0_648, %c0_649], %439 {strides = array<i32>} : memref<100x32xf32, #tpu.memory_space<vmem>>, vector<10x32xf32>,
    %c37_650 = arith.constant 37 : index
    %c0_651 = arith.constant 0 : index
    %441 = vector.load %arg13[%c37_650, %c0_651] : memref<144x32xf32, #tpu.memory_space<vmem>>, vector<10x32xf32>
    %c10_652 = arith.constant 10 : index
    %c0_653 = arith.constant 0 : index
    %442 = vector.load %arg14[%c10_652, %c0_653] : memref<100x32xf32, #tpu.memory_space<vmem>>, vector<10x32xf32>
    tpu.vector_store %arg14[%c10_652, %c0_653], %441 {strides = array<i32>} : memref<100x32xf32, #tpu.memory_space<vmem>>, vector<10x32xf32>,
    %c49_654 = arith.constant 49 : index
    %c0_655 = arith.constant 0 : index
    %443 = vector.load %arg13[%c49_654, %c0_655] : memref<144x32xf32, #tpu.memory_space<vmem>>, vector<10x32xf32>
    %c20_656 = arith.constant 20 : index
    %c0_657 = arith.constant 0 : index
    %444 = vector.load %arg14[%c20_656, %c0_657] : memref<100x32xf32, #tpu.memory_space<vmem>>, vector<10x32xf32>
    tpu.vector_store %arg14[%c20_656, %c0_657], %443 {strides = array<i32>} : memref<100x32xf32, #tpu.memory_space<vmem>>, vector<10x32xf32>,
    %c61_658 = arith.constant 61 : index
    %c0_659 = arith.constant 0 : index
    %445 = vector.load %arg13[%c61_658, %c0_659] : memref<144x32xf32, #tpu.memory_space<vmem>>, vector<10x32xf32>
    %c30_660 = arith.constant 30 : index
    %c0_661 = arith.constant 0 : index
    %446 = vector.load %arg14[%c30_660, %c0_661] : memref<100x32xf32, #tpu.memory_space<vmem>>, vector<10x32xf32>
    tpu.vector_store %arg14[%c30_660, %c0_661], %445 {strides = array<i32>} : memref<100x32xf32, #tpu.memory_space<vmem>>, vector<10x32xf32>,
    %c73_662 = arith.constant 73 : index
    %c0_663 = arith.constant 0 : index
    %447 = vector.load %arg13[%c73_662, %c0_663] : memref<144x32xf32, #tpu.memory_space<vmem>>, vector<10x32xf32>
    %c40_664 = arith.constant 40 : index
    %c0_665 = arith.constant 0 : index
    %448 = vector.load %arg14[%c40_664, %c0_665] : memref<100x32xf32, #tpu.memory_space<vmem>>, vector<10x32xf32>
    tpu.vector_store %arg14[%c40_664, %c0_665], %447 {strides = array<i32>} : memref<100x32xf32, #tpu.memory_space<vmem>>, vector<10x32xf32>,
    %c85_666 = arith.constant 85 : index
    %c0_667 = arith.constant 0 : index
    %449 = vector.load %arg13[%c85_666, %c0_667] : memref<144x32xf32, #tpu.memory_space<vmem>>, vector<10x32xf32>
    %c50_668 = arith.constant 50 : index
    %c0_669 = arith.constant 0 : index
    %450 = vector.load %arg14[%c50_668, %c0_669] : memref<100x32xf32, #tpu.memory_space<vmem>>, vector<10x32xf32>
    tpu.vector_store %arg14[%c50_668, %c0_669], %449 {strides = array<i32>} : memref<100x32xf32, #tpu.memory_space<vmem>>, vector<10x32xf32>,
    %c97_670 = arith.constant 97 : index
    %c0_671 = arith.constant 0 : index
    %451 = vector.load %arg13[%c97_670, %c0_671] : memref<144x32xf32, #tpu.memory_space<vmem>>, vector<10x32xf32>
    %c60_672 = arith.constant 60 : index
    %c0_673 = arith.constant 0 : index
    %452 = vector.load %arg14[%c60_672, %c0_673] : memref<100x32xf32, #tpu.memory_space<vmem>>, vector<10x32xf32>
    tpu.vector_store %arg14[%c60_672, %c0_673], %451 {strides = array<i32>} : memref<100x32xf32, #tpu.memory_space<vmem>>, vector<10x32xf32>,
    %c109_674 = arith.constant 109 : index
    %c0_675 = arith.constant 0 : index
    %453 = vector.load %arg13[%c109_674, %c0_675] : memref<144x32xf32, #tpu.memory_space<vmem>>, vector<10x32xf32>
    %c70_676 = arith.constant 70 : index
    %c0_677 = arith.constant 0 : index
    %454 = vector.load %arg14[%c70_676, %c0_677] : memref<100x32xf32, #tpu.memory_space<vmem>>, vector<10x32xf32>
    tpu.vector_store %arg14[%c70_676, %c0_677], %453 {strides = array<i32>} : memref<100x32xf32, #tpu.memory_space<vmem>>, vector<10x32xf32>,
    %c121_678 = arith.constant 121 : index
    %c0_679 = arith.constant 0 : index
    %455 = vector.load %arg13[%c121_678, %c0_679] : memref<144x32xf32, #tpu.memory_space<vmem>>, vector<10x32xf32>
    %c80_680 = arith.constant 80 : index
    %c0_681 = arith.constant 0 : index
    %456 = vector.load %arg14[%c80_680, %c0_681] : memref<100x32xf32, #tpu.memory_space<vmem>>, vector<10x32xf32>
    tpu.vector_store %arg14[%c80_680, %c0_681], %455 {strides = array<i32>} : memref<100x32xf32, #tpu.memory_space<vmem>>, vector<10x32xf32>,
    %c133 = arith.constant 133 : index
    %c0_682 = arith.constant 0 : index
    %457 = vector.load %arg13[%c133, %c0_682] : memref<144x32xf32, #tpu.memory_space<vmem>>, vector<10x32xf32>
    %c90_683 = arith.constant 90 : index
    %c0_684 = arith.constant 0 : index
    %458 = vector.load %arg14[%c90_683, %c0_684] : memref<100x32xf32, #tpu.memory_space<vmem>>, vector<10x32xf32>
    tpu.vector_store %arg14[%c90_683, %c0_684], %457 {strides = array<i32>} : memref<100x32xf32, #tpu.memory_space<vmem>>, vector<10x32xf32>,
    %c0_685 = arith.constant 0 : index
    %c0_686 = arith.constant 0 : index
    %459 = vector.load %arg14[%c0_685, %c0_686] : memref<100x32xf32, #tpu.memory_space<vmem>>, vector<100x32xf32>
    %c7_687 = arith.constant 7 : index
    %c0_688 = arith.constant 0 : index
    %c0_689 = arith.constant 0 : index
    %460 = vector.load %arg8[%c7_687, %c0_688, %c0_689] : memref<9x32x64xf32, #tpu.memory_space<vmem>>, vector<1x32x64xf32>
    %461 = vector.shape_cast %460 : vector<1x32x64xf32> to vector<32x64xf32>
    %cst_690 = arith.constant dense<0.000000e+00> : vector<100x64xf32>
    %462 = tpu.matmul %459, %461, %cst_690 {dimension_numbers = #tpu.dot_dimension_numbers<[1], [0], [0], [1], [0, 0, 1, 1], [], []>} : vector<100x32xf32>, vector<32x64xf32>, vector<100x64xf32> -> vector<100x64xf32>
    %463 = arith.addf %438, %462 : vector<100x64xf32>
    %c26_691 = arith.constant 26 : index
    %c0_692 = arith.constant 0 : index
    %464 = vector.load %arg13[%c26_691, %c0_692] : memref<144x32xf32, #tpu.memory_space<vmem>>, vector<10x32xf32>
    %c0_693 = arith.constant 0 : index
    %c0_694 = arith.constant 0 : index
    %465 = vector.load %arg14[%c0_693, %c0_694] : memref<100x32xf32, #tpu.memory_space<vmem>>, vector<10x32xf32>
    tpu.vector_store %arg14[%c0_693, %c0_694], %464 {strides = array<i32>} : memref<100x32xf32, #tpu.memory_space<vmem>>, vector<10x32xf32>,
    %c38_695 = arith.constant 38 : index
    %c0_696 = arith.constant 0 : index
    %466 = vector.load %arg13[%c38_695, %c0_696] : memref<144x32xf32, #tpu.memory_space<vmem>>, vector<10x32xf32>
    %c10_697 = arith.constant 10 : index
    %c0_698 = arith.constant 0 : index
    %467 = vector.load %arg14[%c10_697, %c0_698] : memref<100x32xf32, #tpu.memory_space<vmem>>, vector<10x32xf32>
    tpu.vector_store %arg14[%c10_697, %c0_698], %466 {strides = array<i32>} : memref<100x32xf32, #tpu.memory_space<vmem>>, vector<10x32xf32>,
    %c50_699 = arith.constant 50 : index
    %c0_700 = arith.constant 0 : index
    %468 = vector.load %arg13[%c50_699, %c0_700] : memref<144x32xf32, #tpu.memory_space<vmem>>, vector<10x32xf32>
    %c20_701 = arith.constant 20 : index
    %c0_702 = arith.constant 0 : index
    %469 = vector.load %arg14[%c20_701, %c0_702] : memref<100x32xf32, #tpu.memory_space<vmem>>, vector<10x32xf32>
    tpu.vector_store %arg14[%c20_701, %c0_702], %468 {strides = array<i32>} : memref<100x32xf32, #tpu.memory_space<vmem>>, vector<10x32xf32>,
    %c62_703 = arith.constant 62 : index
    %c0_704 = arith.constant 0 : index
    %470 = vector.load %arg13[%c62_703, %c0_704] : memref<144x32xf32, #tpu.memory_space<vmem>>, vector<10x32xf32>
    %c30_705 = arith.constant 30 : index
    %c0_706 = arith.constant 0 : index
    %471 = vector.load %arg14[%c30_705, %c0_706] : memref<100x32xf32, #tpu.memory_space<vmem>>, vector<10x32xf32>
    tpu.vector_store %arg14[%c30_705, %c0_706], %470 {strides = array<i32>} : memref<100x32xf32, #tpu.memory_space<vmem>>, vector<10x32xf32>,
    %c74_707 = arith.constant 74 : index
    %c0_708 = arith.constant 0 : index
    %472 = vector.load %arg13[%c74_707, %c0_708] : memref<144x32xf32, #tpu.memory_space<vmem>>, vector<10x32xf32>
    %c40_709 = arith.constant 40 : index
    %c0_710 = arith.constant 0 : index
    %473 = vector.load %arg14[%c40_709, %c0_710] : memref<100x32xf32, #tpu.memory_space<vmem>>, vector<10x32xf32>
    tpu.vector_store %arg14[%c40_709, %c0_710], %472 {strides = array<i32>} : memref<100x32xf32, #tpu.memory_space<vmem>>, vector<10x32xf32>,
    %c86_711 = arith.constant 86 : index
    %c0_712 = arith.constant 0 : index
    %474 = vector.load %arg13[%c86_711, %c0_712] : memref<144x32xf32, #tpu.memory_space<vmem>>, vector<10x32xf32>
    %c50_713 = arith.constant 50 : index
    %c0_714 = arith.constant 0 : index
    %475 = vector.load %arg14[%c50_713, %c0_714] : memref<100x32xf32, #tpu.memory_space<vmem>>, vector<10x32xf32>
    tpu.vector_store %arg14[%c50_713, %c0_714], %474 {strides = array<i32>} : memref<100x32xf32, #tpu.memory_space<vmem>>, vector<10x32xf32>,
    %c98_715 = arith.constant 98 : index
    %c0_716 = arith.constant 0 : index
    %476 = vector.load %arg13[%c98_715, %c0_716] : memref<144x32xf32, #tpu.memory_space<vmem>>, vector<10x32xf32>
    %c60_717 = arith.constant 60 : index
    %c0_718 = arith.constant 0 : index
    %477 = vector.load %arg14[%c60_717, %c0_718] : memref<100x32xf32, #tpu.memory_space<vmem>>, vector<10x32xf32>
    tpu.vector_store %arg14[%c60_717, %c0_718], %476 {strides = array<i32>} : memref<100x32xf32, #tpu.memory_space<vmem>>, vector<10x32xf32>,
    %c110_719 = arith.constant 110 : index
    %c0_720 = arith.constant 0 : index
    %478 = vector.load %arg13[%c110_719, %c0_720] : memref<144x32xf32, #tpu.memory_space<vmem>>, vector<10x32xf32>
    %c70_721 = arith.constant 70 : index
    %c0_722 = arith.constant 0 : index
    %479 = vector.load %arg14[%c70_721, %c0_722] : memref<100x32xf32, #tpu.memory_space<vmem>>, vector<10x32xf32>
    tpu.vector_store %arg14[%c70_721, %c0_722], %478 {strides = array<i32>} : memref<100x32xf32, #tpu.memory_space<vmem>>, vector<10x32xf32>,
    %c122_723 = arith.constant 122 : index
    %c0_724 = arith.constant 0 : index
    %480 = vector.load %arg13[%c122_723, %c0_724] : memref<144x32xf32, #tpu.memory_space<vmem>>, vector<10x32xf32>
    %c80_725 = arith.constant 80 : index
    %c0_726 = arith.constant 0 : index
    %481 = vector.load %arg14[%c80_725, %c0_726] : memref<100x32xf32, #tpu.memory_space<vmem>>, vector<10x32xf32>
    tpu.vector_store %arg14[%c80_725, %c0_726], %480 {strides = array<i32>} : memref<100x32xf32, #tpu.memory_space<vmem>>, vector<10x32xf32>,
    %c134 = arith.constant 134 : index
    %c0_727 = arith.constant 0 : index
    %482 = vector.load %arg13[%c134, %c0_727] : memref<144x32xf32, #tpu.memory_space<vmem>>, vector<10x32xf32>
    %c90_728 = arith.constant 90 : index
    %c0_729 = arith.constant 0 : index
    %483 = vector.load %arg14[%c90_728, %c0_729] : memref<100x32xf32, #tpu.memory_space<vmem>>, vector<10x32xf32>
    tpu.vector_store %arg14[%c90_728, %c0_729], %482 {strides = array<i32>} : memref<100x32xf32, #tpu.memory_space<vmem>>, vector<10x32xf32>,
    %c0_730 = arith.constant 0 : index
    %c0_731 = arith.constant 0 : index
    %484 = vector.load %arg14[%c0_730, %c0_731] : memref<100x32xf32, #tpu.memory_space<vmem>>, vector<100x32xf32>
    %c8_732 = arith.constant 8 : index
    %c0_733 = arith.constant 0 : index
    %c0_734 = arith.constant 0 : index
    %485 = vector.load %arg8[%c8_732, %c0_733, %c0_734] : memref<9x32x64xf32, #tpu.memory_space<vmem>>, vector<1x32x64xf32>
    %486 = vector.shape_cast %485 : vector<1x32x64xf32> to vector<32x64xf32>
    %cst_735 = arith.constant dense<0.000000e+00> : vector<100x64xf32>
    %487 = tpu.matmul %484, %486, %cst_735 {dimension_numbers = #tpu.dot_dimension_numbers<[1], [0], [0], [1], [0, 0, 1, 1], [], []>} : vector<100x32xf32>, vector<32x64xf32>, vector<100x64xf32> -> vector<100x64xf32>
    %488 = arith.addf %463, %487 : vector<100x64xf32>
    %cst_736 = arith.constant 0.000000e+00 : f32
    %489 = vector.broadcast %cst_736 : f32 to vector<100x64xf32>
    %490 = arith.maximumf %488, %489 : vector<100x64xf32>
    %c0_737 = arith.constant 0 : index
    %c0_738 = arith.constant 0 : index
    %c0_739 = arith.constant 0 : index
    %491 = vector.load %arg10[%c0_737, %c0_738, %c0_739] : memref<1x100x64xf32, #tpu.memory_space<vmem>>, vector<1x100x64xf32>
    %492 = vector.shape_cast %491 : vector<1x100x64xf32> to vector<100x64xf32>
    %493 = vector.shape_cast %490 : vector<100x64xf32> to vector<1x100x64xf32>
    tpu.vector_store %arg10[%c0_737, %c0_738, %c0_739], %493 {strides = array<i32>} : memref<1x100x64xf32, #tpu.memory_space<vmem>>, vector<1x100x64xf32>,
    return
  }
  func.func @transform_0(%arg0: i32) -> (i32, i32, i32) {
    %c0_i32 = arith.constant 0 : i32
    %c0_i32_0 = arith.constant 0 : i32
    %c0_i32_1 = arith.constant 0 : i32
    return %arg0, %c0_i32, %c0_i32_0 : i32, i32, i32
  }
  func.func @transform_1(%arg0: i32) -> (i32, i32) {
    %c0_i32 = arith.constant 0 : i32
    %c0_i32_0 = arith.constant 0 : i32
    %c0_i32_1 = arith.constant 0 : i32
    return %c0_i32, %c0_i32_0 : i32, i32
  }
  func.func @transform_2(%arg0: i32) -> (i32, i32) {
    %c0_i32 = arith.constant 0 : i32
    %c0_i32_0 = arith.constant 0 : i32
    %c0_i32_1 = arith.constant 0 : i32
    return %c0_i32, %c0_i32_0 : i32, i32
  }
  func.func @transform_3(%arg0: i32) -> (i32, i32, i32) {
    %c0_i32 = arith.constant 0 : i32
    %c0_i32_0 = arith.constant 0 : i32
    %c0_i32_1 = arith.constant 0 : i32
    %c0_i32_2 = arith.constant 0 : i32
    return %c0_i32, %c0_i32_0, %c0_i32_1 : i32, i32, i32
  }
  func.func @transform_4(%arg0: i32) -> (i32, i32) {
    %c0_i32 = arith.constant 0 : i32
    %c0_i32_0 = arith.constant 0 : i32
    %c0_i32_1 = arith.constant 0 : i32
    return %c0_i32, %c0_i32_0 : i32, i32
  }
  func.func @transform_5(%arg0: i32) -> (i32, i32) {
    %c0_i32 = arith.constant 0 : i32
    %c0_i32_0 = arith.constant 0 : i32
    %c0_i32_1 = arith.constant 0 : i32
    return %c0_i32, %c0_i32_0 : i32, i32
  }
  func.func @transform_6(%arg0: i32) -> (i32, i32) {
    %c0_i32 = arith.constant 0 : i32
    %c0_i32_0 = arith.constant 0 : i32
    %c0_i32_1 = arith.constant 0 : i32
    return %c0_i32, %c0_i32_0 : i32, i32
  }
  func.func @transform_7(%arg0: i32) -> (i32, i32, i32) {
    %c0_i32 = arith.constant 0 : i32
    %c0_i32_0 = arith.constant 0 : i32
    %c0_i32_1 = arith.constant 0 : i32
    %c0_i32_2 = arith.constant 0 : i32
    return %c0_i32, %c0_i32_0, %c0_i32_1 : i32, i32, i32
  }
  func.func @transform_8(%arg0: i32) -> (i32, i32) {
    %c0_i32 = arith.constant 0 : i32
    %c0_i32_0 = arith.constant 0 : i32
    %c0_i32_1 = arith.constant 0 : i32
    return %c0_i32, %c0_i32_0 : i32, i32
  }
  func.func @transform_9(%arg0: i32) -> (i32, i32, i32) {
    %c0_i32 = arith.constant 0 : i32
    %c0_i32_0 = arith.constant 0 : i32
    %c0_i32_1 = arith.constant 0 : i32
    return %arg0, %c0_i32, %c0_i32_0 : i32, i32, i32
  }
}

</mosaic_0001>

<llo_original>
// kernel: fused_model_forward.1
$region0: #{fused_model_forward.1}
  #allocation0 [shape = 'u32[]', space=smem, size = 0x4, offset = 0x4, fixed_abs, tag = 'smem constant byte address 0x4 - core index']
  #allocation1 [shape = 'u32[72,128]{1,0:T(1,128)}', space=vmem, size = 0x9000, scoped, tag = 'internal scratch']
  #allocation2 [shape = 'f32[324,16]{1,0:T(8,128)}', space=vmem, size = 0x29000, scoped, tag = 'scratch operand']
  #allocation3 [shape = 'f32[64,16]{1,0:T(8,128)}', space=vmem, size = 0x8000, scoped, tag = 'scratch operand']
  #allocation4 [shape = 'f32[144,32]{1,0:T(8,128)}', space=vmem, size = 0x12000, scoped, tag = 'scratch operand']
  #allocation5 [shape = 'f32[100,32]{1,0:T(8,128)}', space=vmem, size = 0xd000, scoped, tag = 'scratch operand']
  %s0 = inlined_call_operand.vmem [shape: f32[2,324,3], index: 0, kind: input, shape index: {}]
  %s1 = inlined_call_operand.vmem [shape: f32[3,16], index: 1, kind: input, shape index: {}]
  %s2 = inlined_call_operand.vmem [shape: f32[1,16], index: 2, kind: input, shape index: {}]
  %s3 = inlined_call_operand.vmem [shape: f32[9,16,64], index: 3, kind: input, shape index: {}]
  %s4 = inlined_call_operand.vmem [shape: f32[1,64], index: 4, kind: input, shape index: {}]
  %s5 = inlined_call_operand.vmem [shape: f32[64,32], index: 5, kind: input, shape index: {}]
  %s6 = inlined_call_operand.vmem [shape: f32[1,32], index: 6, kind: input, shape index: {}]
  %s7 = inlined_call_operand.vmem [shape: f32[9,32,64], index: 7, kind: input, shape index: {}]
  %s8 = inlined_call_operand.vmem [shape: f32[1,64], index: 8, kind: input, shape index: {}]
  %s9 = inlined_call_operand.vmem [shape: f32[2,100,64], index: 9, kind: output, shape index: {}]
  %s10 = sld [smem:[#allocation0]]
  $region69: #{fused_model_forward.1} parent=0
    _
  %s12 = ssub.s32 1, %s10
  %s13 = scalar_select 0, %s12, %s10
  loop: start=0, step=1, limit=4
  $region2: #{fused_model_forward.1} parent=0 // loop_pre_header
    _
  $region3: #{fused_model_forward.1} parent=0 // loop_header
    %s15 = sphi 0, %s19
    %p16 = scmp.ge.s32.totalorder %s15, 4
    %s25 = sphi 0, %s27
    %s28 = sphi 0, %s25
    %s29 = sphi 0, %s28
    %s45 = sphi 0, %s29
    %s49 = sphi 0, %s49
    %s51 = sphi 0, %s49
    %s52 = sphi 0, %s51
    %s66 = sphi 0, %s52
    %s70 = sphi 0, %s70
    %s72 = sphi 0, %s70
    %s73 = sphi 0, %s72
    %s87 = sphi 0, %s73
    %s91 = sphi 0, %s91
    %s93 = sphi 0, %s91
    %s94 = sphi 0, %s93
    %s108 = sphi 0, %s94
    %s112 = sphi 0, %s112
    %s114 = sphi 0, %s112
    %s115 = sphi 0, %s114
    %s129 = sphi 0, %s115
    %s133 = sphi 0, %s133
    %s135 = sphi 0, %s133
    %s136 = sphi 0, %s135
    %s150 = sphi 0, %s136
    %s154 = sphi 0, %s154
    %s156 = sphi 0, %s154
    %s157 = sphi 0, %s156
    %s171 = sphi 0, %s157
    %s175 = sphi 0, %s175
    %s177 = sphi 0, %s175
    %s178 = sphi 0, %s177
    %s192 = sphi 0, %s178
    %s196 = sphi 0, %s196
    %s198 = sphi 0, %s196
    %s199 = sphi 0, %s198
    %s213 = sphi 0, %s199
    %s219 = sphi 0, %s221
    %s222 = sphi 0, %s219
    %s223 = sphi 0, %s222
    %s239 = sphi 0, %s223
  $region4: #{fused_model_forward.1} parent=0 // loop_header_branch
    %18 = sbr.rel (%p16) target = $region8
  $region5: #{fused_model_forward.1} parent=0 // loop_body
    %s20 = ssub.s32 %s15, 1
    %s21 = ssub.s32 %s15, 2
    %s22 = sadd.s32 %s15, 1
    %s23 = ssub.s32 %s15, %s22
    %p24 = scmp.eq.s32.totalorder %s23, 0
    %s26 = sadd.s32 %s25, 1
    %s27 = scalar_select %p24, %s25, %s26
    %p30 = pneg %p24
    %p31 = scmp.eq.s32.totalorder %s15, 1
    %p32 = por %p30, %p31
    %p33 = scmp.ne.s32.totalorder %s25, %s28
    %p34 = scmp.eq.s32.totalorder %s15, 0
    %p35 = por %p33, %p34
    %p36 = scmp.ne.s32.totalorder %s25, %s28
    %p37 = scmp.eq.s32.totalorder %s20, 1
    %p38 = por %p36, %p37
    %p39 = scmp.ne.s32.totalorder %s28, %s29
    %p40 = scmp.eq.s32.totalorder %s20, 0
    %p41 = por %p39, %p40
    %p42 = scmp.ne.s32.totalorder %s28, %s29
    %p43 = scmp.eq.s32.totalorder %s21, 1
    %p44 = por %p42, %p43
    %p46 = scmp.ne.s32.totalorder %s29, %s45
    %p47 = scmp.eq.s32.totalorder %s21, 0
    %p48 = por %p46, %p47
    %s50 = sadd.s32 %s49, 1
    %p53 = scmp.eq.s32.totalorder %s15, 1
    %p54 = scmp.ne.s32.totalorder %s49, %s51
    %p55 = scmp.eq.s32.totalorder %s15, 0
    %p56 = por %p54, %p55
    %p57 = scmp.ne.s32.totalorder %s49, %s51
    %p58 = scmp.eq.s32.totalorder %s20, 1
    %p59 = por %p57, %p58
    %p60 = scmp.ne.s32.totalorder %s51, %s52
    %p61 = scmp.eq.s32.totalorder %s20, 0
    %p62 = por %p60, %p61
    %p63 = scmp.ne.s32.totalorder %s51, %s52
    %p64 = scmp.eq.s32.totalorder %s21, 1
    %p65 = por %p63, %p64
    %p67 = scmp.ne.s32.totalorder %s52, %s66
    %p68 = scmp.eq.s32.totalorder %s21, 0
    %p69 = por %p67, %p68
    %s71 = sadd.s32 %s70, 1
    %p74 = scmp.eq.s32.totalorder %s15, 1
    %p75 = scmp.ne.s32.totalorder %s70, %s72
    %p76 = scmp.eq.s32.totalorder %s15, 0
    %p77 = por %p75, %p76
    %p78 = scmp.ne.s32.totalorder %s70, %s72
    %p79 = scmp.eq.s32.totalorder %s20, 1
    %p80 = por %p78, %p79
    %p81 = scmp.ne.s32.totalorder %s72, %s73
    %p82 = scmp.eq.s32.totalorder %s20, 0
    %p83 = por %p81, %p82
    %p84 = scmp.ne.s32.totalorder %s72, %s73
    %p85 = scmp.eq.s32.totalorder %s21, 1
    %p86 = por %p84, %p85
    %p88 = scmp.ne.s32.totalorder %s73, %s87
    %p89 = scmp.eq.s32.totalorder %s21, 0
    %p90 = por %p88, %p89
    %s92 = sadd.s32 %s91, 1
    %p95 = scmp.eq.s32.totalorder %s15, 1
    %p96 = scmp.ne.s32.totalorder %s91, %s93
    %p97 = scmp.eq.s32.totalorder %s15, 0
    %p98 = por %p96, %p97
    %p99 = scmp.ne.s32.totalorder %s91, %s93
    %p100 = scmp.eq.s32.totalorder %s20, 1
    %p101 = por %p99, %p100
    %p102 = scmp.ne.s32.totalorder %s93, %s94
    %p103 = scmp.eq.s32.totalorder %s20, 0
    %p104 = por %p102, %p103
    %p105 = scmp.ne.s32.totalorder %s93, %s94
    %p106 = scmp.eq.s32.totalorder %s21, 1
    %p107 = por %p105, %p106
    %p109 = scmp.ne.s32.totalorder %s94, %s108
    %p110 = scmp.eq.s32.totalorder %s21, 0
    %p111 = por %p109, %p110
    %s113 = sadd.s32 %s112, 1
    %p116 = scmp.eq.s32.totalorder %s15, 1
    %p117 = scmp.ne.s32.totalorder %s112, %s114
    %p118 = scmp.eq.s32.totalorder %s15, 0
    %p119 = por %p117, %p118
    %p120 = scmp.ne.s32.totalorder %s112, %s114
    %p121 = scmp.eq.s32.totalorder %s20, 1
    %p122 = por %p120, %p121
    %p123 = scmp.ne.s32.totalorder %s114, %s115
    %p124 = scmp.eq.s32.totalorder %s20, 0
    %p125 = por %p123, %p124
    %p126 = scmp.ne.s32.totalorder %s114, %s115
    %p127 = scmp.eq.s32.totalorder %s21, 1
    %p128 = por %p126, %p127
    %p130 = scmp.ne.s32.totalorder %s115, %s129
    %p131 = scmp.eq.s32.totalorder %s21, 0
    %p132 = por %p130, %p131
    %s134 = sadd.s32 %s133, 1
    %p137 = scmp.eq.s32.totalorder %s15, 1
    %p138 = scmp.ne.s32.totalorder %s133, %s135
    %p139 = scmp.eq.s32.totalorder %s15, 0
    %p140 = por %p138, %p139
    %p141 = scmp.ne.s32.totalorder %s133, %s135
    %p142 = scmp.eq.s32.totalorder %s20, 1
    %p143 = por %p141, %p142
    %p144 = scmp.ne.s32.totalorder %s135, %s136
    %p145 = scmp.eq.s32.totalorder %s20, 0
    %p146 = por %p144, %p145
    %p147 = scmp.ne.s32.totalorder %s135, %s136
    %p148 = scmp.eq.s32.totalorder %s21, 1
    %p149 = por %p147, %p148
    %p151 = scmp.ne.s32.totalorder %s136, %s150
    %p152 = scmp.eq.s32.totalorder %s21, 0
    %p153 = por %p151, %p152
    %s155 = sadd.s32 %s154, 1
    %p158 = scmp.eq.s32.totalorder %s15, 1
    %p159 = scmp.ne.s32.totalorder %s154, %s156
    %p160 = scmp.eq.s32.totalorder %s15, 0
    %p161 = por %p159, %p160
    %p162 = scmp.ne.s32.totalorder %s154, %s156
    %p163 = scmp.eq.s32.totalorder %s20, 1
    %p164 = por %p162, %p163
    %p165 = scmp.ne.s32.totalorder %s156, %s157
    %p166 = scmp.eq.s32.totalorder %s20, 0
    %p167 = por %p165, %p166
    %p168 = scmp.ne.s32.totalorder %s156, %s157
    %p169 = scmp.eq.s32.totalorder %s21, 1
    %p170 = por %p168, %p169
    %p172 = scmp.ne.s32.totalorder %s157, %s171
    %p173 = scmp.eq.s32.totalorder %s21, 0
    %p174 = por %p172, %p173
    %s176 = sadd.s32 %s175, 1
    %p179 = scmp.eq.s32.totalorder %s15, 1
    %p180 = scmp.ne.s32.totalorder %s175, %s177
    %p181 = scmp.eq.s32.totalorder %s15, 0
    %p182 = por %p180, %p181
    %p183 = scmp.ne.s32.totalorder %s175, %s177
    %p184 = scmp.eq.s32.totalorder %s20, 1
    %p185 = por %p183, %p184
    %p186 = scmp.ne.s32.totalorder %s177, %s178
    %p187 = scmp.eq.s32.totalorder %s20, 0
    %p188 = por %p186, %p187
    %p189 = scmp.ne.s32.totalorder %s177, %s178
    %p190 = scmp.eq.s32.totalorder %s21, 1
    %p191 = por %p189, %p190
    %p193 = scmp.ne.s32.totalorder %s178, %s192
    %p194 = scmp.eq.s32.totalorder %s21, 0
    %p195 = por %p193, %p194
    %s197 = sadd.s32 %s196, 1
    %p200 = scmp.eq.s32.totalorder %s15, 1
    %p201 = scmp.ne.s32.totalorder %s196, %s198
    %p202 = scmp.eq.s32.totalorder %s15, 0
    %p203 = por %p201, %p202
    %p204 = scmp.ne.s32.totalorder %s196, %s198
    %p205 = scmp.eq.s32.totalorder %s20, 1
    %p206 = por %p204, %p205
    %p207 = scmp.ne.s32.totalorder %s198, %s199
    %p208 = scmp.eq.s32.totalorder %s20, 0
    %p209 = por %p207, %p208
    %p210 = scmp.ne.s32.totalorder %s198, %s199
    %p211 = scmp.eq.s32.totalorder %s21, 1
    %p212 = por %p210, %p211
    %p214 = scmp.ne.s32.totalorder %s199, %s213
    %p215 = scmp.eq.s32.totalorder %s21, 0
    %p216 = por %p214, %p215
    %s217 = ssub.s32 %s15, %s22
    %p218 = scmp.eq.s32.totalorder %s217, 0
    %s220 = sadd.s32 %s219, 1
    %s221 = scalar_select %p218, %s219, %s220
    %p224 = pneg %p218
    %p225 = scmp.eq.s32.totalorder %s15, 1
    %p226 = por %p224, %p225
    %p227 = scmp.ne.s32.totalorder %s219, %s222
    %p228 = scmp.eq.s32.totalorder %s15, 0
    %p229 = por %p227, %p228
    %p230 = scmp.ne.s32.totalorder %s219, %s222
    %p231 = scmp.eq.s32.totalorder %s20, 1
    %p232 = por %p230, %p231
    %p233 = scmp.ne.s32.totalorder %s222, %s223
    %p234 = scmp.eq.s32.totalorder %s20, 0
    %p235 = por %p233, %p234
    %p236 = scmp.ne.s32.totalorder %s222, %s223
    %p237 = scmp.eq.s32.totalorder %s21, 1
    %p238 = por %p236, %p237
    %p240 = scmp.ne.s32.totalorder %s223, %s239
    %p241 = scmp.eq.s32.totalorder %s21, 0
    %p242 = por %p240, %p241
    %p243 = scmp.le.s32.totalorder 1, %s15
    %p244 = scmp.lt.s32.totalorder %s15, 3
    %p245 = pnand %p243, %p244
    %p246 = pneg %p245
    // Predicated region
    $region9: #{fused_model_forward.1} parent=5 // pred_check
      _
    $region10: #{fused_model_forward.1} parent=5 // pred_check_branch
      %248 = sbr.rel (%p245) target = $region12
    $region11: #{fused_model_forward.1} parent=5 // pred_region
      %s249 = ssub.s32 %s15, 1
      // Predicated region
      $region13: #{fused_model_forward.1} parent=11 // pred_check
        %p250 = pneg %p62
      $region14: #{fused_model_forward.1} parent=11 // pred_check_branch
        %252 = sbr.rel (%p250) target = $region16
      $region15: #{fused_model_forward.1} parent=11 // pred_region
        _
      $region16: #{fused_model_forward.1} parent=11 // pred_fallthru
        _
      // Predicated region
      $region17: #{fused_model_forward.1} parent=11 // pred_check
        %p253 = pneg %p83
      $region18: #{fused_model_forward.1} parent=11 // pred_check_branch
        %255 = sbr.rel (%p253) target = $region20
      $region19: #{fused_model_forward.1} parent=11 // pred_region
        _
      $region20: #{fused_model_forward.1} parent=11 // pred_fallthru
        _
      // Predicated region
      $region21: #{fused_model_forward.1} parent=11 // pred_check
        %p256 = pneg %p104
      $region22: #{fused_model_forward.1} parent=11 // pred_check_branch
        %258 = sbr.rel (%p256) target = $region24
      $region23: #{fused_model_forward.1} parent=11 // pred_region
        _
      $region24: #{fused_model_forward.1} parent=11 // pred_fallthru
        _
      // Predicated region
      $region25: #{fused_model_forward.1} parent=11 // pred_check
        %p259 = pneg %p125
      $region26: #{fused_model_forward.1} parent=11 // pred_check_branch
        %261 = sbr.rel (%p259) target = $region28
      $region27: #{fused_model_forward.1} parent=11 // pred_region
        _
      $region28: #{fused_model_forward.1} parent=11 // pred_fallthru
        _
      // Predicated region
      $region29: #{fused_model_forward.1} parent=11 // pred_check
        %p262 = pneg %p146
      $region30: #{fused_model_forward.1} parent=11 // pred_check_branch
        %264 = sbr.rel (%p262) target = $region32
      $region31: #{fused_model_forward.1} parent=11 // pred_region
        _
      $region32: #{fused_model_forward.1} parent=11 // pred_fallthru
        _
      // Predicated region
      $region33: #{fused_model_forward.1} parent=11 // pred_check
        %p265 = pneg %p167
      $region34: #{fused_model_forward.1} parent=11 // pred_check_branch
        %267 = sbr.rel (%p265) target = $region36
      $region35: #{fused_model_forward.1} parent=11 // pred_region
        _
      $region36: #{fused_model_forward.1} parent=11 // pred_fallthru
        _
      // Predicated region
      $region37: #{fused_model_forward.1} parent=11 // pred_check
        %p268 = pneg %p188
      $region38: #{fused_model_forward.1} parent=11 // pred_check_branch
        %270 = sbr.rel (%p268) target = $region40
      $region39: #{fused_model_forward.1} parent=11 // pred_region
        _
      $region40: #{fused_model_forward.1} parent=11 // pred_fallthru
        _
      // Predicated region
      $region41: #{fused_model_forward.1} parent=11 // pred_check
        %p271 = pneg %p209
      $region42: #{fused_model_forward.1} parent=11 // pred_check_branch
        %273 = sbr.rel (%p271) target = $region44
      $region43: #{fused_model_forward.1} parent=11 // pred_region
        _
      $region44: #{fused_model_forward.1} parent=11 // pred_fallthru
        _
    $region12: #{fused_model_forward.1} parent=5 // pred_fallthru
      _
    %p274 = scmp.lt.s32.totalorder %s15, 2
    // Predicated region
    $region45: #{fused_model_forward.1} parent=5 // pred_check
      %p275 = pneg %p274
    $region46: #{fused_model_forward.1} parent=5 // pred_check_branch
      %277 = sbr.rel (%p275) target = $region48
    $region47: #{fused_model_forward.1} parent=5 // pred_region
      // Predicated region
      $region49: #{fused_model_forward.1} parent=47 // pred_check
        %p278 = pneg %p35
      $region50: #{fused_model_forward.1} parent=47 // pred_check_branch
        %280 = sbr.rel (%p278) target = $region52
      $region51: #{fused_model_forward.1} parent=47 // pred_region
        %p281 = scmp.lt.s32.totalorder %s15, 1
        %s282 = scalar_select %p281, %s15, 1
        %s283 = smul.addr %s282, 41
        %s284 = smul.addr %s283, 8
        %s285 = scalar_lea.vmem %s0, %s284
      $region52: #{fused_model_forward.1} parent=47 // pred_fallthru
        _
    $region48: #{fused_model_forward.1} parent=5 // pred_fallthru
      _
    %p286 = scmp.le.s32.totalorder 1, %s15
    %p287 = scmp.lt.s32.totalorder %s15, 3
    %p288 = pnand %p286, %p287
    %p289 = pneg %p288
    // Predicated region
    $region53: #{fused_model_forward.1} parent=5 // pred_check
      _
    $region54: #{fused_model_forward.1} parent=5 // pred_check_branch
      %291 = sbr.rel (%p288) target = $region56
    $region55: #{fused_model_forward.1} parent=5 // pred_region
      %s292 = ssub.s32 %s15, 1
      %p293 = scmp.lt.s32.totalorder %s20, 1
      %s294 = scalar_select %p293, %s20, 1
      %s295 = smul.addr %s294, 41
      %s296 = smul.addr %s295, 8
      %s297 = scalar_lea.vmem %s0, %s296
      %p298 = pneg %p41
      %p299 = pneg %p38
      %p300 = pneg %p62
      %p301 = pneg %p59
      %p302 = pneg %p83
      %p303 = pneg %p80
      %p304 = pneg %p104
      %p305 = pneg %p101
      %p306 = pneg %p125
      %p307 = pneg %p122
      %p308 = pneg %p146
      %p309 = pneg %p143
      %p310 = pneg %p167
      %p311 = pneg %p164
      %p312 = pneg %p188
      %p313 = pneg %p185
      %p314 = pneg %p209
      %p315 = pneg %p206
      %p316 = pneg %p235
      %p317 = pneg %p232
      %p318 = scmp.lt.s32.totalorder %s20, 1
      %s319 = scalar_select %p318, %s20, 1
      %s320 = smul.addr %s319, 13
      %s321 = smul.addr %s320, 8
      %s322 = scalar_lea.vmem %s9, %s321
      %p323 = scmp.lt.s32.totalorder %s20, 1
      %s324 = scalar_select %p323, %s20, 1
      %s325 = smul.addr %s324, 41
      %s326 = smul.addr %s325, 8
      %s327 = scalar_lea.vmem %s0, %s326
      %p328 = scmp.lt.s32.totalorder %s20, 1
      %s329 = scalar_select %p328, %s20, 1
      %s330 = smul.addr %s329, 13
      %s331 = smul.addr %s330, 8
      %s332 = scalar_lea.vmem %s9, %s331
      %v333 = vld [vmem:[%s1] sm:$0x7]
      %v334 = vld [vmem:[%s327] sm:$0xff]
      %v335 = vld [vmem:[%s327 + $0x8] sm:$0xff]
      %v336 = vld [vmem:[%s327 + $0x10] sm:$0xff]
      %v337 = vld [vmem:[%s327 + $0x18] sm:$0xff]
      %v338 = vld [vmem:[%s327 + $0x20] sm:$0xff]
      %v339 = vld [vmem:[%s327 + $0x28] sm:$0xff]
      %v340 = vld [vmem:[%s327 + $0x30] sm:$0xff]
      %v341 = vld [vmem:[%s327 + $0x38] sm:$0xff]
      %v342 = vld [vmem:[%s327 + $0x40] sm:$0xff]
      %v343 = vld [vmem:[%s327 + $0x48] sm:$0xff]
      %v344 = vld [vmem:[%s327 + $0x50] sm:$0xff]
      %v345 = vld [vmem:[%s327 + $0x58] sm:$0xff]
      %v346 = vld [vmem:[%s327 + $0x60] sm:$0xff]
      %v347 = vld [vmem:[%s327 + $0x68] sm:$0xff]
      %v348 = vld [vmem:[%s327 + $0x70] sm:$0xff]
      %v349 = vld [vmem:[%s327 + $0x78] sm:$0xff]
      %v350 = vld [vmem:[%s327 + $0x80] sm:$0xff]
      %v351 = vld [vmem:[%s327 + $0x88] sm:$0xff]
      %v352 = vld [vmem:[%s327 + $0x90] sm:$0xff]
      %v353 = vld [vmem:[%s327 + $0x98] sm:$0xff]
      %v354 = vld [vmem:[%s327 + $0xa0] sm:$0xff]
      %v355 = vld [vmem:[%s327 + $0xa8] sm:$0xff]
      %v356 = vld [vmem:[%s327 + $0xb0] sm:$0xff]
      %v357 = vld [vmem:[%s327 + $0xb8] sm:$0xff]
      %v358 = vld [vmem:[%s327 + $0xc0] sm:$0xff]
      %v359 = vld [vmem:[%s327 + $0xc8] sm:$0xff]
      %v360 = vld [vmem:[%s327 + $0xd0] sm:$0xff]
      %v361 = vld [vmem:[%s327 + $0xd8] sm:$0xff]
      %v362 = vld [vmem:[%s327 + $0xe0] sm:$0xff]
      %v363 = vld [vmem:[%s327 + $0xe8] sm:$0xff]
      %v364 = vld [vmem:[%s327 + $0xf0] sm:$0xff]
      %v365 = vld [vmem:[%s327 + $0xf8] sm:$0xff]
      %v366 = vld [vmem:[%s327 + $0x100] sm:$0xff]
      %v367 = vld [vmem:[%s327 + $0x108] sm:$0xff]
      %v368 = vld [vmem:[%s327 + $0x110] sm:$0xff]
      %v369 = vld [vmem:[%s327 + $0x118] sm:$0xff]
      %v370 = vld [vmem:[%s327 + $0x120] sm:$0xff]
      %v371 = vld [vmem:[%s327 + $0x128] sm:$0xff]
      %v372 = vld [vmem:[%s327 + $0x130] sm:$0xff]
      %v373 = vld [vmem:[%s327 + $0x138] sm:$0xff]
      %v374 = vld [vmem:[%s327 + $0x140] sm:$0xf]
      %376 = vset.pattern.permute.xlu0 0
      %377 = vperm.xlu0 %376, %v334
      %v378 = vpop.permute.xlu0 %377
      %381 = vset.pattern.permute.xlu0 0
      %382 = vperm.xlu0 %381, %v335
      %v383 = vpop.permute.xlu0 %382
      %386 = vset.pattern.permute.xlu0 0
      %387 = vperm.xlu0 %386, %v336
      %v388 = vpop.permute.xlu0 %387
      %391 = vset.pattern.permute.xlu0 0
      %392 = vperm.xlu0 %391, %v337
      %v393 = vpop.permute.xlu0 %392
      %396 = vset.pattern.permute.xlu0 0
      %397 = vperm.xlu0 %396, %v338
      %v398 = vpop.permute.xlu0 %397
      %401 = vset.pattern.permute.xlu0 0
      %402 = vperm.xlu0 %401, %v339
      %v403 = vpop.permute.xlu0 %402
      %406 = vset.pattern.permute.xlu0 0
      %407 = vperm.xlu0 %406, %v340
      %v408 = vpop.permute.xlu0 %407
      %411 = vset.pattern.permute.xlu0 0
      %412 = vperm.xlu0 %411, %v341
      %v413 = vpop.permute.xlu0 %412
      %416 = vset.pattern.permute.xlu0 0
      %417 = vperm.xlu0 %416, %v342
      %v418 = vpop.permute.xlu0 %417
      %421 = vset.pattern.permute.xlu0 0
      %422 = vperm.xlu0 %421, %v343
      %v423 = vpop.permute.xlu0 %422
      %426 = vset.pattern.permute.xlu0 0
      %427 = vperm.xlu0 %426, %v344
      %v428 = vpop.permute.xlu0 %427
      %431 = vset.pattern.permute.xlu0 0
      %432 = vperm.xlu0 %431, %v345
      %v433 = vpop.permute.xlu0 %432
      %436 = vset.pattern.permute.xlu0 0
      %437 = vperm.xlu0 %436, %v346
      %v438 = vpop.permute.xlu0 %437
      %441 = vset.pattern.permute.xlu0 0
      %442 = vperm.xlu0 %441, %v347
      %v443 = vpop.permute.xlu0 %442
      %446 = vset.pattern.permute.xlu0 0
      %447 = vperm.xlu0 %446, %v348
      %v448 = vpop.permute.xlu0 %447
      %451 = vset.pattern.permute.xlu0 0
      %452 = vperm.xlu0 %451, %v349
      %v453 = vpop.permute.xlu0 %452
      %456 = vset.pattern.permute.xlu0 0
      %457 = vperm.xlu0 %456, %v350
      %v458 = vpop.permute.xlu0 %457
      %461 = vset.pattern.permute.xlu0 0
      %462 = vperm.xlu0 %461, %v351
      %v463 = vpop.permute.xlu0 %462
      %466 = vset.pattern.permute.xlu0 0
      %467 = vperm.xlu0 %466, %v352
      %v468 = vpop.permute.xlu0 %467
      %471 = vset.pattern.permute.xlu0 0
      %472 = vperm.xlu0 %471, %v353
      %v473 = vpop.permute.xlu0 %472
      %476 = vset.pattern.permute.xlu0 0
      %477 = vperm.xlu0 %476, %v354
      %v478 = vpop.permute.xlu0 %477
      %481 = vset.pattern.permute.xlu0 0
      %482 = vperm.xlu0 %481, %v355
      %v483 = vpop.permute.xlu0 %482
      %486 = vset.pattern.permute.xlu0 0
      %487 = vperm.xlu0 %486, %v356
      %v488 = vpop.permute.xlu0 %487
      %491 = vset.pattern.permute.xlu0 0
      %492 = vperm.xlu0 %491, %v357
      %v493 = vpop.permute.xlu0 %492
      %496 = vset.pattern.permute.xlu0 0
      %497 = vperm.xlu0 %496, %v358
      %v498 = vpop.permute.xlu0 %497
      %501 = vset.pattern.permute.xlu0 0
      %502 = vperm.xlu0 %501, %v359
      %v503 = vpop.permute.xlu0 %502
      %506 = vset.pattern.permute.xlu0 0
      %507 = vperm.xlu0 %506, %v360
      %v508 = vpop.permute.xlu0 %507
      %511 = vset.pattern.permute.xlu0 0
      %512 = vperm.xlu0 %511, %v361
      %v513 = vpop.permute.xlu0 %512
      %516 = vset.pattern.permute.xlu0 0
      %517 = vperm.xlu0 %516, %v362
      %v518 = vpop.permute.xlu0 %517
      %521 = vset.pattern.permute.xlu0 0
      %522 = vperm.xlu0 %521, %v363
      %v523 = vpop.permute.xlu0 %522
      %526 = vset.pattern.permute.xlu0 0
      %527 = vperm.xlu0 %526, %v364
      %v528 = vpop.permute.xlu0 %527
      %531 = vset.pattern.permute.xlu0 0
      %532 = vperm.xlu0 %531, %v365
      %v533 = vpop.permute.xlu0 %532
      %536 = vset.pattern.permute.xlu0 0
      %537 = vperm.xlu0 %536, %v366
      %v538 = vpop.permute.xlu0 %537
      %541 = vset.pattern.permute.xlu0 0
      %542 = vperm.xlu0 %541, %v367
      %v543 = vpop.permute.xlu0 %542
      %546 = vset.pattern.permute.xlu0 0
      %547 = vperm.xlu0 %546, %v368
      %v548 = vpop.permute.xlu0 %547
      %551 = vset.pattern.permute.xlu0 0
      %552 = vperm.xlu0 %551, %v369
      %v553 = vpop.permute.xlu0 %552
      %556 = vset.pattern.permute.xlu0 0
      %557 = vperm.xlu0 %556, %v370
      %v558 = vpop.permute.xlu0 %557
      %561 = vset.pattern.permute.xlu0 0
      %562 = vperm.xlu0 %561, %v371
      %v563 = vpop.permute.xlu0 %562
      %566 = vset.pattern.permute.xlu0 0
      %567 = vperm.xlu0 %566, %v372
      %v568 = vpop.permute.xlu0 %567
      %571 = vset.pattern.permute.xlu0 0
      %572 = vperm.xlu0 %571, %v373
      %v573 = vpop.permute.xlu0 %572
      %576 = vset.pattern.permute.xlu0 0
      %577 = vperm.xlu0 %576, %v374
      %v578 = vpop.permute.xlu0 %577
      %v580 = vperm.slane %v333, 0
      %v581 = vmul.f32 %v378, %v580
      %v582 = vmul.f32 %v383, %v580
      %v583 = vmul.f32 %v388, %v580
      %v584 = vmul.f32 %v393, %v580
      %v585 = vmul.f32 %v398, %v580
      %v586 = vmul.f32 %v403, %v580
      %v587 = vmul.f32 %v408, %v580
      %v588 = vmul.f32 %v413, %v580
      %v589 = vmul.f32 %v418, %v580
      %v590 = vmul.f32 %v423, %v580
      %v591 = vmul.f32 %v428, %v580
      %v592 = vmul.f32 %v433, %v580
      %v593 = vmul.f32 %v438, %v580
      %v594 = vmul.f32 %v443, %v580
      %v595 = vmul.f32 %v448, %v580
      %v596 = vmul.f32 %v453, %v580
      %v597 = vmul.f32 %v458, %v580
      %v598 = vmul.f32 %v463, %v580
      %v599 = vmul.f32 %v468, %v580
      %v600 = vmul.f32 %v473, %v580
      %v601 = vmul.f32 %v478, %v580
      %v602 = vmul.f32 %v483, %v580
      %v603 = vmul.f32 %v488, %v580
      %v604 = vmul.f32 %v493, %v580
      %v605 = vmul.f32 %v498, %v580
      %v606 = vmul.f32 %v503, %v580
      %v607 = vmul.f32 %v508, %v580
      %v608 = vmul.f32 %v513, %v580
      %v609 = vmul.f32 %v518, %v580
      %v610 = vmul.f32 %v523, %v580
      %v611 = vmul.f32 %v528, %v580
      %v612 = vmul.f32 %v533, %v580
      %v613 = vmul.f32 %v538, %v580
      %v614 = vmul.f32 %v543, %v580
      %v615 = vmul.f32 %v548, %v580
      %v616 = vmul.f32 %v553, %v580
      %v617 = vmul.f32 %v558, %v580
      %v618 = vmul.f32 %v563, %v580
      %v619 = vmul.f32 %v568, %v580
      %v620 = vmul.f32 %v573, %v580
      %v621 = vmul.f32 %v578, %v580
      %622 = vset.pattern.permute.xlu0 1
      %623 = vperm.xlu0 %622, %v334
      %v624 = vpop.permute.xlu0 %623
      %626 = vset.pattern.permute.xlu0 1
      %627 = vperm.xlu0 %626, %v335
      %v628 = vpop.permute.xlu0 %627
      %630 = vset.pattern.permute.xlu0 1
      %631 = vperm.xlu0 %630, %v336
      %v632 = vpop.permute.xlu0 %631
      %634 = vset.pattern.permute.xlu0 1
      %635 = vperm.xlu0 %634, %v337
      %v636 = vpop.permute.xlu0 %635
      %638 = vset.pattern.permute.xlu0 1
      %639 = vperm.xlu0 %638, %v338
      %v640 = vpop.permute.xlu0 %639
      %642 = vset.pattern.permute.xlu0 1
      %643 = vperm.xlu0 %642, %v339
      %v644 = vpop.permute.xlu0 %643
      %646 = vset.pattern.permute.xlu0 1
      %647 = vperm.xlu0 %646, %v340
      %v648 = vpop.permute.xlu0 %647
      %650 = vset.pattern.permute.xlu0 1
      %651 = vperm.xlu0 %650, %v341
      %v652 = vpop.permute.xlu0 %651
      %654 = vset.pattern.permute.xlu0 1
      %655 = vperm.xlu0 %654, %v342
      %v656 = vpop.permute.xlu0 %655
      %658 = vset.pattern.permute.xlu0 1
      %659 = vperm.xlu0 %658, %v343
      %v660 = vpop.permute.xlu0 %659
      %662 = vset.pattern.permute.xlu0 1
      %663 = vperm.xlu0 %662, %v344
      %v664 = vpop.permute.xlu0 %663
      %666 = vset.pattern.permute.xlu0 1
      %667 = vperm.xlu0 %666, %v345
      %v668 = vpop.permute.xlu0 %667
      %670 = vset.pattern.permute.xlu0 1
      %671 = vperm.xlu0 %670, %v346
      %v672 = vpop.permute.xlu0 %671
      %674 = vset.pattern.permute.xlu0 1
      %675 = vperm.xlu0 %674, %v347
      %v676 = vpop.permute.xlu0 %675
      %678 = vset.pattern.permute.xlu0 1
      %679 = vperm.xlu0 %678, %v348
      %v680 = vpop.permute.xlu0 %679
      %682 = vset.pattern.permute.xlu0 1
      %683 = vperm.xlu0 %682, %v349
      %v684 = vpop.permute.xlu0 %683
      %686 = vset.pattern.permute.xlu0 1
      %687 = vperm.xlu0 %686, %v350
      %v688 = vpop.permute.xlu0 %687
      %690 = vset.pattern.permute.xlu0 1
      %691 = vperm.xlu0 %690, %v351
      %v692 = vpop.permute.xlu0 %691
      %694 = vset.pattern.permute.xlu0 1
      %695 = vperm.xlu0 %694, %v352
      %v696 = vpop.permute.xlu0 %695
      %698 = vset.pattern.permute.xlu0 1
      %699 = vperm.xlu0 %698, %v353
      %v700 = vpop.permute.xlu0 %699
      %702 = vset.pattern.permute.xlu0 1
      %703 = vperm.xlu0 %702, %v354
      %v704 = vpop.permute.xlu0 %703
      %706 = vset.pattern.permute.xlu0 1
      %707 = vperm.xlu0 %706, %v355
      %v708 = vpop.permute.xlu0 %707
      %710 = vset.pattern.permute.xlu0 1
      %711 = vperm.xlu0 %710, %v356
      %v712 = vpop.permute.xlu0 %711
      %714 = vset.pattern.permute.xlu0 1
      %715 = vperm.xlu0 %714, %v357
      %v716 = vpop.permute.xlu0 %715
      %718 = vset.pattern.permute.xlu0 1
      %719 = vperm.xlu0 %718, %v358
      %v720 = vpop.permute.xlu0 %719
      %722 = vset.pattern.permute.xlu0 1
      %723 = vperm.xlu0 %722, %v359
      %v724 = vpop.permute.xlu0 %723
      %726 = vset.pattern.permute.xlu0 1
      %727 = vperm.xlu0 %726, %v360
      %v728 = vpop.permute.xlu0 %727
      %730 = vset.pattern.permute.xlu0 1
      %731 = vperm.xlu0 %730, %v361
      %v732 = vpop.permute.xlu0 %731
      %734 = vset.pattern.permute.xlu0 1
      %735 = vperm.xlu0 %734, %v362
      %v736 = vpop.permute.xlu0 %735
      %738 = vset.pattern.permute.xlu0 1
      %739 = vperm.xlu0 %738, %v363
      %v740 = vpop.permute.xlu0 %739
      %742 = vset.pattern.permute.xlu0 1
      %743 = vperm.xlu0 %742, %v364
      %v744 = vpop.permute.xlu0 %743
      %746 = vset.pattern.permute.xlu0 1
      %747 = vperm.xlu0 %746, %v365
      %v748 = vpop.permute.xlu0 %747
      %750 = vset.pattern.permute.xlu0 1
      %751 = vperm.xlu0 %750, %v366
      %v752 = vpop.permute.xlu0 %751
      %754 = vset.pattern.permute.xlu0 1
      %755 = vperm.xlu0 %754, %v367
      %v756 = vpop.permute.xlu0 %755
      %758 = vset.pattern.permute.xlu0 1
      %759 = vperm.xlu0 %758, %v368
      %v760 = vpop.permute.xlu0 %759
      %762 = vset.pattern.permute.xlu0 1
      %763 = vperm.xlu0 %762, %v369
      %v764 = vpop.permute.xlu0 %763
      %766 = vset.pattern.permute.xlu0 1
      %767 = vperm.xlu0 %766, %v370
      %v768 = vpop.permute.xlu0 %767
      %770 = vset.pattern.permute.xlu0 1
      %771 = vperm.xlu0 %770, %v371
      %v772 = vpop.permute.xlu0 %771
      %774 = vset.pattern.permute.xlu0 1
      %775 = vperm.xlu0 %774, %v372
      %v776 = vpop.permute.xlu0 %775
      %778 = vset.pattern.permute.xlu0 1
      %779 = vperm.xlu0 %778, %v373
      %v780 = vpop.permute.xlu0 %779
      %782 = vset.pattern.permute.xlu0 1
      %783 = vperm.xlu0 %782, %v374
      %v784 = vpop.permute.xlu0 %783
      %v786 = vperm.slane %v333, 1
      %v787 = vmul.f32 %v624, %v786
      %v788 = vmul.f32 %v628, %v786
      %v789 = vmul.f32 %v632, %v786
      %v790 = vmul.f32 %v636, %v786
      %v791 = vmul.f32 %v640, %v786
      %v792 = vmul.f32 %v644, %v786
      %v793 = vmul.f32 %v648, %v786
      %v794 = vmul.f32 %v652, %v786
      %v795 = vmul.f32 %v656, %v786
      %v796 = vmul.f32 %v660, %v786
      %v797 = vmul.f32 %v664, %v786
      %v798 = vmul.f32 %v668, %v786
      %v799 = vmul.f32 %v672, %v786
      %v800 = vmul.f32 %v676, %v786
      %v801 = vmul.f32 %v680, %v786
      %v802 = vmul.f32 %v684, %v786
      %v803 = vmul.f32 %v688, %v786
      %v804 = vmul.f32 %v692, %v786
      %v805 = vmul.f32 %v696, %v786
      %v806 = vmul.f32 %v700, %v786
      %v807 = vmul.f32 %v704, %v786
      %v808 = vmul.f32 %v708, %v786
      %v809 = vmul.f32 %v712, %v786
      %v810 = vmul.f32 %v716, %v786
      %v811 = vmul.f32 %v720, %v786
      %v812 = vmul.f32 %v724, %v786
      %v813 = vmul.f32 %v728, %v786
      %v814 = vmul.f32 %v732, %v786
      %v815 = vmul.f32 %v736, %v786
      %v816 = vmul.f32 %v740, %v786
      %v817 = vmul.f32 %v744, %v786
      %v818 = vmul.f32 %v748, %v786
      %v819 = vmul.f32 %v752, %v786
      %v820 = vmul.f32 %v756, %v786
      %v821 = vmul.f32 %v760, %v786
      %v822 = vmul.f32 %v764, %v786
      %v823 = vmul.f32 %v768, %v786
      %v824 = vmul.f32 %v772, %v786
      %v825 = vmul.f32 %v776, %v786
      %v826 = vmul.f32 %v780, %v786
      %v827 = vmul.f32 %v784, %v786
      %v828 = vadd.f32 %v581, %v787
      %v829 = vadd.f32 %v582, %v788
      %v830 = vadd.f32 %v583, %v789
      %v831 = vadd.f32 %v584, %v790
      %v832 = vadd.f32 %v585, %v791
      %v833 = vadd.f32 %v586, %v792
      %v834 = vadd.f32 %v587, %v793
      %v835 = vadd.f32 %v588, %v794
      %v836 = vadd.f32 %v589, %v795
      %v837 = vadd.f32 %v590, %v796
      %v838 = vadd.f32 %v591, %v797
      %v839 = vadd.f32 %v592, %v798
      %v840 = vadd.f32 %v593, %v799
      %v841 = vadd.f32 %v594, %v800
      %v842 = vadd.f32 %v595, %v801
      %v843 = vadd.f32 %v596, %v802
      %v844 = vadd.f32 %v597, %v803
      %v845 = vadd.f32 %v598, %v804
      %v846 = vadd.f32 %v599, %v805
      %v847 = vadd.f32 %v600, %v806
      %v848 = vadd.f32 %v601, %v807
      %v849 = vadd.f32 %v602, %v808
      %v850 = vadd.f32 %v603, %v809
      %v851 = vadd.f32 %v604, %v810
      %v852 = vadd.f32 %v605, %v811
      %v853 = vadd.f32 %v606, %v812
      %v854 = vadd.f32 %v607, %v813
      %v855 = vadd.f32 %v608, %v814
      %v856 = vadd.f32 %v609, %v815
      %v857 = vadd.f32 %v610, %v816
      %v858 = vadd.f32 %v611, %v817
      %v859 = vadd.f32 %v612, %v818
      %v860 = vadd.f32 %v613, %v819
      %v861 = vadd.f32 %v614, %v820
      %v862 = vadd.f32 %v615, %v821
      %v863 = vadd.f32 %v616, %v822
      %v864 = vadd.f32 %v617, %v823
      %v865 = vadd.f32 %v618, %v824
      %v866 = vadd.f32 %v619, %v825
      %v867 = vadd.f32 %v620, %v826
      %v868 = vadd.f32 %v621, %v827
      %869 = vset.pattern.permute.xlu0 2
      %870 = vperm.xlu0 %869, %v334
      %v871 = vpop.permute.xlu0 %870
      %873 = vset.pattern.permute.xlu0 2
      %874 = vperm.xlu0 %873, %v335
      %v875 = vpop.permute.xlu0 %874
      %877 = vset.pattern.permute.xlu0 2
      %878 = vperm.xlu0 %877, %v336
      %v879 = vpop.permute.xlu0 %878
      %881 = vset.pattern.permute.xlu0 2
      %882 = vperm.xlu0 %881, %v337
      %v883 = vpop.permute.xlu0 %882
      %885 = vset.pattern.permute.xlu0 2
      %886 = vperm.xlu0 %885, %v338
      %v887 = vpop.permute.xlu0 %886
      %889 = vset.pattern.permute.xlu0 2
      %890 = vperm.xlu0 %889, %v339
      %v891 = vpop.permute.xlu0 %890
      %893 = vset.pattern.permute.xlu0 2
      %894 = vperm.xlu0 %893, %v340
      %v895 = vpop.permute.xlu0 %894
      %897 = vset.pattern.permute.xlu0 2
      %898 = vperm.xlu0 %897, %v341
      %v899 = vpop.permute.xlu0 %898
      %901 = vset.pattern.permute.xlu0 2
      %902 = vperm.xlu0 %901, %v342
      %v903 = vpop.permute.xlu0 %902
      %905 = vset.pattern.permute.xlu0 2
      %906 = vperm.xlu0 %905, %v343
      %v907 = vpop.permute.xlu0 %906
      %909 = vset.pattern.permute.xlu0 2
      %910 = vperm.xlu0 %909, %v344
      %v911 = vpop.permute.xlu0 %910
      %913 = vset.pattern.permute.xlu0 2
      %914 = vperm.xlu0 %913, %v345
      %v915 = vpop.permute.xlu0 %914
      %917 = vset.pattern.permute.xlu0 2
      %918 = vperm.xlu0 %917, %v346
      %v919 = vpop.permute.xlu0 %918
      %921 = vset.pattern.permute.xlu0 2
      %922 = vperm.xlu0 %921, %v347
      %v923 = vpop.permute.xlu0 %922
      %925 = vset.pattern.permute.xlu0 2
      %926 = vperm.xlu0 %925, %v348
      %v927 = vpop.permute.xlu0 %926
      %929 = vset.pattern.permute.xlu0 2
      %930 = vperm.xlu0 %929, %v349
      %v931 = vpop.permute.xlu0 %930
      %933 = vset.pattern.permute.xlu0 2
      %934 = vperm.xlu0 %933, %v350
      %v935 = vpop.permute.xlu0 %934
      %937 = vset.pattern.permute.xlu0 2
      %938 = vperm.xlu0 %937, %v351
      %v939 = vpop.permute.xlu0 %938
      %941 = vset.pattern.permute.xlu0 2
      %942 = vperm.xlu0 %941, %v352
      %v943 = vpop.permute.xlu0 %942
      %945 = vset.pattern.permute.xlu0 2
      %946 = vperm.xlu0 %945, %v353
      %v947 = vpop.permute.xlu0 %946
      %949 = vset.pattern.permute.xlu0 2
      %950 = vperm.xlu0 %949, %v354
      %v951 = vpop.permute.xlu0 %950
      %953 = vset.pattern.permute.xlu0 2
      %954 = vperm.xlu0 %953, %v355
      %v955 = vpop.permute.xlu0 %954
      %957 = vset.pattern.permute.xlu0 2
      %958 = vperm.xlu0 %957, %v356
      %v959 = vpop.permute.xlu0 %958
      %961 = vset.pattern.permute.xlu0 2
      %962 = vperm.xlu0 %961, %v357
      %v963 = vpop.permute.xlu0 %962
      %965 = vset.pattern.permute.xlu0 2
      %966 = vperm.xlu0 %965, %v358
      %v967 = vpop.permute.xlu0 %966
      %969 = vset.pattern.permute.xlu0 2
      %970 = vperm.xlu0 %969, %v359
      %v971 = vpop.permute.xlu0 %970
      %973 = vset.pattern.permute.xlu0 2
      %974 = vperm.xlu0 %973, %v360
      %v975 = vpop.permute.xlu0 %974
      %977 = vset.pattern.permute.xlu0 2
      %978 = vperm.xlu0 %977, %v361
      %v979 = vpop.permute.xlu0 %978
      %981 = vset.pattern.permute.xlu0 2
      %982 = vperm.xlu0 %981, %v362
      %v983 = vpop.permute.xlu0 %982
      %985 = vset.pattern.permute.xlu0 2
      %986 = vperm.xlu0 %985, %v363
      %v987 = vpop.permute.xlu0 %986
      %989 = vset.pattern.permute.xlu0 2
      %990 = vperm.xlu0 %989, %v364
      %v991 = vpop.permute.xlu0 %990
      %993 = vset.pattern.permute.xlu0 2
      %994 = vperm.xlu0 %993, %v365
      %v995 = vpop.permute.xlu0 %994
      %997 = vset.pattern.permute.xlu0 2
      %998 = vperm.xlu0 %997, %v366
      %v999 = vpop.permute.xlu0 %998
      %1001 = vset.pattern.permute.xlu0 2
      %1002 = vperm.xlu0 %1001, %v367
      %v1003 = vpop.permute.xlu0 %1002
      %1005 = vset.pattern.permute.xlu0 2
      %1006 = vperm.xlu0 %1005, %v368
      %v1007 = vpop.permute.xlu0 %1006
      %1009 = vset.pattern.permute.xlu0 2
      %1010 = vperm.xlu0 %1009, %v369
      %v1011 = vpop.permute.xlu0 %1010
      %1013 = vset.pattern.permute.xlu0 2
      %1014 = vperm.xlu0 %1013, %v370
      %v1015 = vpop.permute.xlu0 %1014
      %1017 = vset.pattern.permute.xlu0 2
      %1018 = vperm.xlu0 %1017, %v371
      %v1019 = vpop.permute.xlu0 %1018
      %1021 = vset.pattern.permute.xlu0 2
      %1022 = vperm.xlu0 %1021, %v372
      %v1023 = vpop.permute.xlu0 %1022
      %1025 = vset.pattern.permute.xlu0 2
      %1026 = vperm.xlu0 %1025, %v373
      %v1027 = vpop.permute.xlu0 %1026
      %1029 = vset.pattern.permute.xlu0 2
      %1030 = vperm.xlu0 %1029, %v374
      %v1031 = vpop.permute.xlu0 %1030
      %v1033 = vperm.slane %v333, 2
      %v1034 = vmul.f32 %v871, %v1033
      %v1035 = vmul.f32 %v875, %v1033
      %v1036 = vmul.f32 %v879, %v1033
      %v1037 = vmul.f32 %v883, %v1033
      %v1038 = vmul.f32 %v887, %v1033
      %v1039 = vmul.f32 %v891, %v1033
      %v1040 = vmul.f32 %v895, %v1033
      %v1041 = vmul.f32 %v899, %v1033
      %v1042 = vmul.f32 %v903, %v1033
      %v1043 = vmul.f32 %v907, %v1033
      %v1044 = vmul.f32 %v911, %v1033
      %v1045 = vmul.f32 %v915, %v1033
      %v1046 = vmul.f32 %v919, %v1033
      %v1047 = vmul.f32 %v923, %v1033
      %v1048 = vmul.f32 %v927, %v1033
      %v1049 = vmul.f32 %v931, %v1033
      %v1050 = vmul.f32 %v935, %v1033
      %v1051 = vmul.f32 %v939, %v1033
      %v1052 = vmul.f32 %v943, %v1033
      %v1053 = vmul.f32 %v947, %v1033
      %v1054 = vmul.f32 %v951, %v1033
      %v1055 = vmul.f32 %v955, %v1033
      %v1056 = vmul.f32 %v959, %v1033
      %v1057 = vmul.f32 %v963, %v1033
      %v1058 = vmul.f32 %v967, %v1033
      %v1059 = vmul.f32 %v971, %v1033
      %v1060 = vmul.f32 %v975, %v1033
      %v1061 = vmul.f32 %v979, %v1033
      %v1062 = vmul.f32 %v983, %v1033
      %v1063 = vmul.f32 %v987, %v1033
      %v1064 = vmul.f32 %v991, %v1033
      %v1065 = vmul.f32 %v995, %v1033
      %v1066 = vmul.f32 %v999, %v1033
      %v1067 = vmul.f32 %v1003, %v1033
      %v1068 = vmul.f32 %v1007, %v1033
      %v1069 = vmul.f32 %v1011, %v1033
      %v1070 = vmul.f32 %v1015, %v1033
      %v1071 = vmul.f32 %v1019, %v1033
      %v1072 = vmul.f32 %v1023, %v1033
      %v1073 = vmul.f32 %v1027, %v1033
      %v1074 = vmul.f32 %v1031, %v1033
      %v1075 = vadd.f32 %v828, %v1034
      %v1076 = vadd.f32 %v829, %v1035
      %v1077 = vadd.f32 %v830, %v1036
      %v1078 = vadd.f32 %v831, %v1037
      %v1079 = vadd.f32 %v832, %v1038
      %v1080 = vadd.f32 %v833, %v1039
      %v1081 = vadd.f32 %v834, %v1040
      %v1082 = vadd.f32 %v835, %v1041
      %v1083 = vadd.f32 %v836, %v1042
      %v1084 = vadd.f32 %v837, %v1043
      %v1085 = vadd.f32 %v838, %v1044
      %v1086 = vadd.f32 %v839, %v1045
      %v1087 = vadd.f32 %v840, %v1046
      %v1088 = vadd.f32 %v841, %v1047
      %v1089 = vadd.f32 %v842, %v1048
      %v1090 = vadd.f32 %v843, %v1049
      %v1091 = vadd.f32 %v844, %v1050
      %v1092 = vadd.f32 %v845, %v1051
      %v1093 = vadd.f32 %v846, %v1052
      %v1094 = vadd.f32 %v847, %v1053
      %v1095 = vadd.f32 %v848, %v1054
      %v1096 = vadd.f32 %v849, %v1055
      %v1097 = vadd.f32 %v850, %v1056
      %v1098 = vadd.f32 %v851, %v1057
      %v1099 = vadd.f32 %v852, %v1058
      %v1100 = vadd.f32 %v853, %v1059
      %v1101 = vadd.f32 %v854, %v1060
      %v1102 = vadd.f32 %v855, %v1061
      %v1103 = vadd.f32 %v856, %v1062
      %v1104 = vadd.f32 %v857, %v1063
      %v1105 = vadd.f32 %v858, %v1064
      %v1106 = vadd.f32 %v859, %v1065
      %v1107 = vadd.f32 %v860, %v1066
      %v1108 = vadd.f32 %v861, %v1067
      %v1109 = vadd.f32 %v862, %v1068
      %v1110 = vadd.f32 %v863, %v1069
      %v1111 = vadd.f32 %v864, %v1070
      %v1112 = vadd.f32 %v865, %v1071
      %v1113 = vadd.f32 %v866, %v1072
      %v1114 = vadd.f32 %v867, %v1073
      %v1115 = vadd.f32 %v868, %v1074
      %v1116 = vld [vmem:[%s2] sm:$0x1]
      %v1118 = vperm.slane %v1116, 0
      %v1120 = vadd.f32 %v1075, %v1118
      %v1121 = vadd.f32 %v1076, %v1118
      %v1122 = vadd.f32 %v1077, %v1118
      %v1123 = vadd.f32 %v1078, %v1118
      %v1124 = vadd.f32 %v1079, %v1118
      %v1125 = vadd.f32 %v1080, %v1118
      %v1126 = vadd.f32 %v1081, %v1118
      %v1127 = vadd.f32 %v1082, %v1118
      %v1128 = vadd.f32 %v1083, %v1118
      %v1129 = vadd.f32 %v1084, %v1118
      %v1130 = vadd.f32 %v1085, %v1118
      %v1131 = vadd.f32 %v1086, %v1118
      %v1132 = vadd.f32 %v1087, %v1118
      %v1133 = vadd.f32 %v1088, %v1118
      %v1134 = vadd.f32 %v1089, %v1118
      %v1135 = vadd.f32 %v1090, %v1118
      %v1136 = vadd.f32 %v1091, %v1118
      %v1137 = vadd.f32 %v1092, %v1118
      %v1138 = vadd.f32 %v1093, %v1118
      %v1139 = vadd.f32 %v1094, %v1118
      %v1140 = vadd.f32 %v1095, %v1118
      %v1141 = vadd.f32 %v1096, %v1118
      %v1142 = vadd.f32 %v1097, %v1118
      %v1143 = vadd.f32 %v1098, %v1118
      %v1144 = vadd.f32 %v1099, %v1118
      %v1145 = vadd.f32 %v1100, %v1118
      %v1146 = vadd.f32 %v1101, %v1118
      %v1147 = vadd.f32 %v1102, %v1118
      %v1148 = vadd.f32 %v1103, %v1118
      %v1149 = vadd.f32 %v1104, %v1118
      %v1150 = vadd.f32 %v1105, %v1118
      %v1151 = vadd.f32 %v1106, %v1118
      %v1152 = vadd.f32 %v1107, %v1118
      %v1153 = vadd.f32 %v1108, %v1118
      %v1154 = vadd.f32 %v1109, %v1118
      %v1155 = vadd.f32 %v1110, %v1118
      %v1156 = vadd.f32 %v1111, %v1118
      %v1157 = vadd.f32 %v1112, %v1118
      %v1158 = vadd.f32 %v1113, %v1118
      %v1159 = vadd.f32 %v1114, %v1118
      %v1160 = vadd.f32 %v1115, %v1118
      %v1161 = vmax.f32 %v1120, 0.0
      %v1162 = vmax.f32 %v1121, 0.0
      %v1163 = vmax.f32 %v1122, 0.0
      %v1164 = vmax.f32 %v1123, 0.0
      %v1165 = vmax.f32 %v1124, 0.0
      %v1166 = vmax.f32 %v1125, 0.0
      %v1167 = vmax.f32 %v1126, 0.0
      %v1168 = vmax.f32 %v1127, 0.0
      %v1169 = vmax.f32 %v1128, 0.0
      %v1170 = vmax.f32 %v1129, 0.0
      %v1171 = vmax.f32 %v1130, 0.0
      %v1172 = vmax.f32 %v1131, 0.0
      %v1173 = vmax.f32 %v1132, 0.0
      %v1174 = vmax.f32 %v1133, 0.0
      %v1175 = vmax.f32 %v1134, 0.0
      %v1176 = vmax.f32 %v1135, 0.0
      %v1177 = vmax.f32 %v1136, 0.0
      %v1178 = vmax.f32 %v1137, 0.0
      %v1179 = vmax.f32 %v1138, 0.0
      %v1180 = vmax.f32 %v1139, 0.0
      %v1181 = vmax.f32 %v1140, 0.0
      %v1182 = vmax.f32 %v1141, 0.0
      %v1183 = vmax.f32 %v1142, 0.0
      %v1184 = vmax.f32 %v1143, 0.0
      %v1185 = vmax.f32 %v1144, 0.0
      %v1186 = vmax.f32 %v1145, 0.0
      %v1187 = vmax.f32 %v1146, 0.0
      %v1188 = vmax.f32 %v1147, 0.0
      %v1189 = vmax.f32 %v1148, 0.0
      %v1190 = vmax.f32 %v1149, 0.0
      %v1191 = vmax.f32 %v1150, 0.0
      %v1192 = vmax.f32 %v1151, 0.0
      %v1193 = vmax.f32 %v1152, 0.0
      %v1194 = vmax.f32 %v1153, 0.0
      %v1195 = vmax.f32 %v1154, 0.0
      %v1196 = vmax.f32 %v1155, 0.0
      %v1197 = vmax.f32 %v1156, 0.0
      %v1198 = vmax.f32 %v1157, 0.0
      %v1199 = vmax.f32 %v1158, 0.0
      %v1200 = vmax.f32 %v1159, 0.0
      %v1201 = vmax.f32 %v1160, 0.0
      %vm1202 = vcmask 130048
      %1203 = vst.msk [vmem:[#allocation2] sm:$0xff] %vm1202, %v1161
      %1204 = vst.msk [vmem:[#allocation2 + $0x8] sm:$0xff] %vm1202, %v1162
      %1205 = vst.msk [vmem:[#allocation2 + $0x10] sm:$0xff] %vm1202, %v1163
      %1206 = vst.msk [vmem:[#allocation2 + $0x18] sm:$0xff] %vm1202, %v1164
      %1207 = vst.msk [vmem:[#allocation2 + $0x20] sm:$0xff] %vm1202, %v1165
      %1208 = vst.msk [vmem:[#allocation2 + $0x28] sm:$0xff] %vm1202, %v1166
      %1209 = vst.msk [vmem:[#allocation2 + $0x30] sm:$0xff] %vm1202, %v1167
      %1210 = vst.msk [vmem:[#allocation2 + $0x38] sm:$0xff] %vm1202, %v1168
      %1211 = vst.msk [vmem:[#allocation2 + $0x40] sm:$0xff] %vm1202, %v1169
      %1212 = vst.msk [vmem:[#allocation2 + $0x48] sm:$0xff] %vm1202, %v1170
      %1213 = vst.msk [vmem:[#allocation2 + $0x50] sm:$0xff] %vm1202, %v1171
      %1214 = vst.msk [vmem:[#allocation2 + $0x58] sm:$0xff] %vm1202, %v1172
      %1215 = vst.msk [vmem:[#allocation2 + $0x60] sm:$0xff] %vm1202, %v1173
      %1216 = vst.msk [vmem:[#allocation2 + $0x68] sm:$0xff] %vm1202, %v1174
      %1217 = vst.msk [vmem:[#allocation2 + $0x70] sm:$0xff] %vm1202, %v1175
      %1218 = vst.msk [vmem:[#allocation2 + $0x78] sm:$0xff] %vm1202, %v1176
      %1219 = vst.msk [vmem:[#allocation2 + $0x80] sm:$0xff] %vm1202, %v1177
      %1220 = vst.msk [vmem:[#allocation2 + $0x88] sm:$0xff] %vm1202, %v1178
      %1221 = vst.msk [vmem:[#allocation2 + $0x90] sm:$0xff] %vm1202, %v1179
      %1222 = vst.msk [vmem:[#allocation2 + $0x98] sm:$0xff] %vm1202, %v1180
      %1223 = vst.msk [vmem:[#allocation2 + $0xa0] sm:$0xff] %vm1202, %v1181
      %1224 = vst.msk [vmem:[#allocation2 + $0xa8] sm:$0xff] %vm1202, %v1182
      %1225 = vst.msk [vmem:[#allocation2 + $0xb0] sm:$0xff] %vm1202, %v1183
      %1226 = vst.msk [vmem:[#allocation2 + $0xb8] sm:$0xff] %vm1202, %v1184
      %1227 = vst.msk [vmem:[#allocation2 + $0xc0] sm:$0xff] %vm1202, %v1185
      %1228 = vst.msk [vmem:[#allocation2 + $0xc8] sm:$0xff] %vm1202, %v1186
      %1229 = vst.msk [vmem:[#allocation2 + $0xd0] sm:$0xff] %vm1202, %v1187
      %1230 = vst.msk [vmem:[#allocation2 + $0xd8] sm:$0xff] %vm1202, %v1188
      %1231 = vst.msk [vmem:[#allocation2 + $0xe0] sm:$0xff] %vm1202, %v1189
      %1232 = vst.msk [vmem:[#allocation2 + $0xe8] sm:$0xff] %vm1202, %v1190
      %1233 = vst.msk [vmem:[#allocation2 + $0xf0] sm:$0xff] %vm1202, %v1191
      %1234 = vst.msk [vmem:[#allocation2 + $0xf8] sm:$0xff] %vm1202, %v1192
      %1235 = vst.msk [vmem:[#allocation2 + $0x100] sm:$0xff] %vm1202, %v1193
      %1236 = vst.msk [vmem:[#allocation2 + $0x108] sm:$0xff] %vm1202, %v1194
      %1237 = vst.msk [vmem:[#allocation2 + $0x110] sm:$0xff] %vm1202, %v1195
      %1238 = vst.msk [vmem:[#allocation2 + $0x118] sm:$0xff] %vm1202, %v1196
      %1239 = vst.msk [vmem:[#allocation2 + $0x120] sm:$0xff] %vm1202, %v1197
      %1240 = vst.msk [vmem:[#allocation2 + $0x128] sm:$0xff] %vm1202, %v1198
      %1241 = vst.msk [vmem:[#allocation2 + $0x130] sm:$0xff] %vm1202, %v1199
      %1242 = vst.msk [vmem:[#allocation2 + $0x138] sm:$0xff] %vm1202, %v1200
      %vm1243 = vcmask 125952
      %1244 = vst.msk [vmem:[#allocation2 + $0x140] sm:$0xf] %vm1243, %v1201
      %v1245 = vld [vmem:[%s4] sm:$0x1]
      %v1247 = vperm.slane %v1245, 0
      %v1249 = vld [vmem:[#allocation2] ss:$2 sm:$0xff]
      %1250 = vst.msk [vmem:[#allocation3] sm:$0xff] %vm1202, %v1249
      %s1251 = scalar_lea.vmem [#allocation2], 36
      %v1252 = vld [vmem:[%s1251] ss:$2 sm:$0xff]
      %1253 = vst.msk [vmem:[#allocation3 + $0x8] sm:$0xff] %vm1202, %v1252
      %s1254 = scalar_lea.vmem [#allocation2], 72
      %v1255 = vld [vmem:[%s1254] ss:$2 sm:$0xff]
      %1256 = vst.msk [vmem:[#allocation3 + $0x10] sm:$0xff] %vm1202, %v1255
      %s1257 = scalar_lea.vmem [#allocation2], 108
      %v1258 = vld [vmem:[%s1257] ss:$2 sm:$0xff]
      %1259 = vst.msk [vmem:[#allocation3 + $0x18] sm:$0xff] %vm1202, %v1258
      %s1260 = scalar_lea.vmem [#allocation2], 144
      %v1261 = vld [vmem:[%s1260] ss:$2 sm:$0xff]
      %1262 = vst.msk [vmem:[#allocation3 + $0x20] sm:$0xff] %vm1202, %v1261
      %s1263 = scalar_lea.vmem [#allocation2], 180
      %v1264 = vld [vmem:[%s1263] ss:$2 sm:$0xff]
      %1265 = vst.msk [vmem:[#allocation3 + $0x28] sm:$0xff] %vm1202, %v1264
      %s1266 = scalar_lea.vmem [#allocation2], 216
      %v1267 = vld [vmem:[%s1266] ss:$2 sm:$0xff]
      %1268 = vst.msk [vmem:[#allocation3 + $0x30] sm:$0xff] %vm1202, %v1267
      %s1269 = scalar_lea.vmem [#allocation2], 252
      %v1270 = vld [vmem:[%s1269] ss:$2 sm:$0xff]
      %1271 = vst.msk [vmem:[#allocation3 + $0x38] sm:$0xff] %vm1202, %v1270
      %v1272 = vld [vmem:[#allocation3] sm:$0xff]
      %v1273 = vld [vmem:[#allocation3 + $0x8] sm:$0xff]
      %v1274 = vld [vmem:[#allocation3 + $0x10] sm:$0xff]
      %v1275 = vld [vmem:[#allocation3 + $0x18] sm:$0xff]
      %v1276 = vld [vmem:[#allocation3 + $0x20] sm:$0xff]
      %v1277 = vld [vmem:[#allocation3 + $0x28] sm:$0xff]
      %v1278 = vld [vmem:[#allocation3 + $0x30] sm:$0xff]
      %v1279 = vld [vmem:[#allocation3 + $0x38] sm:$0xff]
      %v1280 = vld [vmem:[%s3] sm:$0xff]
      %v1281 = vld [vmem:[%s3 + $0x8] sm:$0xff]
      %v1283 = vsel %vm1202, %v1272, 0
      %v1286 = vsel %vm1202, %v1273, 0
      %v1289 = vsel %vm1202, %v1274, 0
      %v1292 = vsel %vm1202, %v1275, 0
      %v1295 = vsel %vm1202, %v1276, 0
      %v1298 = vsel %vm1202, %v1277, 0
      %v1301 = vsel %vm1202, %v1278, 0
      %v1304 = vsel %vm1202, %v1279, 0
      %1306 = vmatpush.msra.mxu0 0.0
      %1307 = vmatpush.msra.mxu0 0.0
      %1308 = vmatpush.msra.mxu0 0.0
      %1309 = vmatpush.msra.mxu0 0.0
      %1310 = vmatpush.msra.mxu0 0.0
      %1311 = vmatpush.msra.mxu0 0.0
      %1312 = vmatpush.msra.mxu0 0.0
      %1313 = vmatpush.msra.mxu0 0.0
      %1314 = vmatpush.msra.mxu0 0.0
      %1315 = vmatpush.msra.mxu0 0.0
      %1316 = vmatpush.msra.mxu0 0.0
      %1317 = vmatpush.msra.mxu0 0.0
      %1318 = vmatpush.msra.mxu0 0.0
      %1319 = vmatpush.msra.mxu0 0.0
      %1320 = vmatpush.msra.mxu0 %v1281
      %1321 = vmatpush.msra.mxu0 %v1280
      %1322 = vmatmul.f32.gmra.mxu0 %v1283
      %v1323 = vpop.f32.mrf.mxu0
      %v1324 = vadd.f32 0.0, %v1323
      %1325 = vmatmul.f32.gmra.mxu0 %v1286
      %v1326 = vpop.f32.mrf.mxu0
      %v1327 = vadd.f32 0.0, %v1326
      %1328 = vmatmul.f32.gmra.mxu0 %v1289
      %v1329 = vpop.f32.mrf.mxu0
      %v1330 = vadd.f32 0.0, %v1329
      %1331 = vmatmul.f32.gmra.mxu0 %v1292
      %v1332 = vpop.f32.mrf.mxu0
      %v1333 = vadd.f32 0.0, %v1332
      %1334 = vmatmul.f32.gmra.mxu0 %v1295
      %v1335 = vpop.f32.mrf.mxu0
      %v1336 = vadd.f32 0.0, %v1335
      %1337 = vmatmul.f32.gmra.mxu0 %v1298
      %v1338 = vpop.f32.mrf.mxu0
      %v1339 = vadd.f32 0.0, %v1338
      %1340 = vmatmul.f32.gmra.mxu0 %v1301
      %v1341 = vpop.f32.mrf.mxu0
      %v1342 = vadd.f32 0.0, %v1341
      %1343 = vmatmul.f32.gmra.mxu0 %v1304
      %v1344 = vpop.f32.mrf.mxu0
      %v1345 = vadd.f32 0.0, %v1344
      %1346 = vdwg.mxu0
      %v1347 = vadd.f32 %v1247, %v1324
      %v1348 = vadd.f32 %v1247, %v1327
      %v1349 = vadd.f32 %v1247, %v1330
      %v1350 = vadd.f32 %v1247, %v1333
      %v1351 = vadd.f32 %v1247, %v1336
      %v1352 = vadd.f32 %v1247, %v1339
      %v1353 = vadd.f32 %v1247, %v1342
      %v1354 = vadd.f32 %v1247, %v1345
      %s1355 = scalar_lea.vmem [#allocation2], 1
      %v1356 = vld [vmem:[%s1355] ss:$2 sm:$0xff]
      %1357 = vst.msk [vmem:[#allocation3] sm:$0xff] %vm1202, %v1356
      %s1358 = scalar_lea.vmem [#allocation2], 37
      %v1359 = vld [vmem:[%s1358] ss:$2 sm:$0xff]
      %1360 = vst.msk [vmem:[#allocation3 + $0x8] sm:$0xff] %vm1202, %v1359
      %s1361 = scalar_lea.vmem [#allocation2], 73
      %v1362 = vld [vmem:[%s1361] ss:$2 sm:$0xff]
      %1363 = vst.msk [vmem:[#allocation3 + $0x10] sm:$0xff] %vm1202, %v1362
      %s1364 = scalar_lea.vmem [#allocation2], 109
      %v1365 = vld [vmem:[%s1364] ss:$2 sm:$0xff]
      %1366 = vst.msk [vmem:[#allocation3 + $0x18] sm:$0xff] %vm1202, %v1365
      %s1367 = scalar_lea.vmem [#allocation2], 145
      %v1368 = vld [vmem:[%s1367] ss:$2 sm:$0xff]
      %1369 = vst.msk [vmem:[#allocation3 + $0x20] sm:$0xff] %vm1202, %v1368
      %s1370 = scalar_lea.vmem [#allocation2], 181
      %v1371 = vld [vmem:[%s1370] ss:$2 sm:$0xff]
      %1372 = vst.msk [vmem:[#allocation3 + $0x28] sm:$0xff] %vm1202, %v1371
      %s1373 = scalar_lea.vmem [#allocation2], 217
      %v1374 = vld [vmem:[%s1373] ss:$2 sm:$0xff]
      %1375 = vst.msk [vmem:[#allocation3 + $0x30] sm:$0xff] %vm1202, %v1374
      %s1376 = scalar_lea.vmem [#allocation2], 253
      %v1377 = vld [vmem:[%s1376] ss:$2 sm:$0xff]
      %1378 = vst.msk [vmem:[#allocation3 + $0x38] sm:$0xff] %vm1202, %v1377
      %v1379 = vld [vmem:[#allocation3] sm:$0xff]
      %v1380 = vld [vmem:[#allocation3 + $0x8] sm:$0xff]
      %v1381 = vld [vmem:[#allocation3 + $0x10] sm:$0xff]
      %v1382 = vld [vmem:[#allocation3 + $0x18] sm:$0xff]
      %v1383 = vld [vmem:[#allocation3 + $0x20] sm:$0xff]
      %v1384 = vld [vmem:[#allocation3 + $0x28] sm:$0xff]
      %v1385 = vld [vmem:[#allocation3 + $0x30] sm:$0xff]
      %v1386 = vld [vmem:[#allocation3 + $0x38] sm:$0xff]
      %s1387 = scalar_lea.vmem %s3, 16
      %v1388 = vld [vmem:[%s1387] sm:$0xff]
      %v1389 = vld [vmem:[%s1387 + $0x8] sm:$0xff]
      %v1391 = vsel %vm1202, %v1379, 0
      %v1394 = vsel %vm1202, %v1380, 0
      %v1397 = vsel %vm1202, %v1381, 0
      %v1400 = vsel %vm1202, %v1382, 0
      %v1403 = vsel %vm1202, %v1383, 0
      %v1406 = vsel %vm1202, %v1384, 0
      %v1409 = vsel %vm1202, %v1385, 0
      %v1412 = vsel %vm1202, %v1386, 0
      %1414 = vmatpush.msra.mxu0 0.0
      %1415 = vmatpush.msra.mxu0 0.0
      %1416 = vmatpush.msra.mxu0 0.0
      %1417 = vmatpush.msra.mxu0 0.0
      %1418 = vmatpush.msra.mxu0 0.0
      %1419 = vmatpush.msra.mxu0 0.0
      %1420 = vmatpush.msra.mxu0 0.0
      %1421 = vmatpush.msra.mxu0 0.0
      %1422 = vmatpush.msra.mxu0 0.0
      %1423 = vmatpush.msra.mxu0 0.0
      %1424 = vmatpush.msra.mxu0 0.0
      %1425 = vmatpush.msra.mxu0 0.0
      %1426 = vmatpush.msra.mxu0 0.0
      %1427 = vmatpush.msra.mxu0 0.0
      %1428 = vmatpush.msra.mxu0 %v1389
      %1429 = vmatpush.msra.mxu0 %v1388
      %1430 = vmatmul.f32.gmra.mxu0 %v1391
      %v1431 = vpop.f32.mrf.mxu0
      %v1432 = vadd.f32 0.0, %v1431
      %1433 = vmatmul.f32.gmra.mxu0 %v1394
      %v1434 = vpop.f32.mrf.mxu0
      %v1435 = vadd.f32 0.0, %v1434
      %1436 = vmatmul.f32.gmra.mxu0 %v1397
      %v1437 = vpop.f32.mrf.mxu0
      %v1438 = vadd.f32 0.0, %v1437
      %1439 = vmatmul.f32.gmra.mxu0 %v1400
      %v1440 = vpop.f32.mrf.mxu0
      %v1441 = vadd.f32 0.0, %v1440
      %1442 = vmatmul.f32.gmra.mxu0 %v1403
      %v1443 = vpop.f32.mrf.mxu0
      %v1444 = vadd.f32 0.0, %v1443
      %1445 = vmatmul.f32.gmra.mxu0 %v1406
      %v1446 = vpop.f32.mrf.mxu0
      %v1447 = vadd.f32 0.0, %v1446
      %1448 = vmatmul.f32.gmra.mxu0 %v1409
      %v1449 = vpop.f32.mrf.mxu0
      %v1450 = vadd.f32 0.0, %v1449
      %1451 = vmatmul.f32.gmra.mxu0 %v1412
      %v1452 = vpop.f32.mrf.mxu0
      %v1453 = vadd.f32 0.0, %v1452
      %1454 = vdwg.mxu0
      %v1455 = vadd.f32 %v1347, %v1432
      %v1456 = vadd.f32 %v1348, %v1435
      %v1457 = vadd.f32 %v1349, %v1438
      %v1458 = vadd.f32 %v1350, %v1441
      %v1459 = vadd.f32 %v1351, %v1444
      %v1460 = vadd.f32 %v1352, %v1447
      %v1461 = vadd.f32 %v1353, %v1450
      %v1462 = vadd.f32 %v1354, %v1453
      %s1463 = scalar_lea.vmem [#allocation2], 2
      %v1464 = vld [vmem:[%s1463] ss:$2 sm:$0xff]
      %1465 = vst.msk [vmem:[#allocation3] sm:$0xff] %vm1202, %v1464
      %s1466 = scalar_lea.vmem [#allocation2], 38
      %v1467 = vld [vmem:[%s1466] ss:$2 sm:$0xff]
      %1468 = vst.msk [vmem:[#allocation3 + $0x8] sm:$0xff] %vm1202, %v1467
      %s1469 = scalar_lea.vmem [#allocation2], 74
      %v1470 = vld [vmem:[%s1469] ss:$2 sm:$0xff]
      %1471 = vst.msk [vmem:[#allocation3 + $0x10] sm:$0xff] %vm1202, %v1470
      %s1472 = scalar_lea.vmem [#allocation2], 110
      %v1473 = vld [vmem:[%s1472] ss:$2 sm:$0xff]
      %1474 = vst.msk [vmem:[#allocation3 + $0x18] sm:$0xff] %vm1202, %v1473
      %s1475 = scalar_lea.vmem [#allocation2], 146
      %v1476 = vld [vmem:[%s1475] ss:$2 sm:$0xff]
      %1477 = vst.msk [vmem:[#allocation3 + $0x20] sm:$0xff] %vm1202, %v1476
      %s1478 = scalar_lea.vmem [#allocation2], 182
      %v1479 = vld [vmem:[%s1478] ss:$2 sm:$0xff]
      %1480 = vst.msk [vmem:[#allocation3 + $0x28] sm:$0xff] %vm1202, %v1479
      %s1481 = scalar_lea.vmem [#allocation2], 218
      %v1482 = vld [vmem:[%s1481] ss:$2 sm:$0xff]
      %1483 = vst.msk [vmem:[#allocation3 + $0x30] sm:$0xff] %vm1202, %v1482
      %s1484 = scalar_lea.vmem [#allocation2], 254
      %v1485 = vld [vmem:[%s1484] ss:$2 sm:$0xff]
      %1486 = vst.msk [vmem:[#allocation3 + $0x38] sm:$0xff] %vm1202, %v1485
      %v1487 = vld [vmem:[#allocation3] sm:$0xff]
      %v1488 = vld [vmem:[#allocation3 + $0x8] sm:$0xff]
      %v1489 = vld [vmem:[#allocation3 + $0x10] sm:$0xff]
      %v1490 = vld [vmem:[#allocation3 + $0x18] sm:$0xff]
      %v1491 = vld [vmem:[#allocation3 + $0x20] sm:$0xff]
      %v1492 = vld [vmem:[#allocation3 + $0x28] sm:$0xff]
      %v1493 = vld [vmem:[#allocation3 + $0x30] sm:$0xff]
      %v1494 = vld [vmem:[#allocation3 + $0x38] sm:$0xff]
      %s1495 = scalar_lea.vmem %s3, 32
      %v1496 = vld [vmem:[%s1495] sm:$0xff]
      %v1497 = vld [vmem:[%s1495 + $0x8] sm:$0xff]
      %v1499 = vsel %vm1202, %v1487, 0
      %v1502 = vsel %vm1202, %v1488, 0
      %v1505 = vsel %vm1202, %v1489, 0
      %v1508 = vsel %vm1202, %v1490, 0
      %v1511 = vsel %vm1202, %v1491, 0
      %v1514 = vsel %vm1202, %v1492, 0
      %v1517 = vsel %vm1202, %v1493, 0
      %v1520 = vsel %vm1202, %v1494, 0
      %1522 = vmatpush.msra.mxu0 0.0
      %1523 = vmatpush.msra.mxu0 0.0
      %1524 = vmatpush.msra.mxu0 0.0
      %1525 = vmatpush.msra.mxu0 0.0
      %1526 = vmatpush.msra.mxu0 0.0
      %1527 = vmatpush.msra.mxu0 0.0
      %1528 = vmatpush.msra.mxu0 0.0
      %1529 = vmatpush.msra.mxu0 0.0
      %1530 = vmatpush.msra.mxu0 0.0
      %1531 = vmatpush.msra.mxu0 0.0
      %1532 = vmatpush.msra.mxu0 0.0
      %1533 = vmatpush.msra.mxu0 0.0
      %1534 = vmatpush.msra.mxu0 0.0
      %1535 = vmatpush.msra.mxu0 0.0
      %1536 = vmatpush.msra.mxu0 %v1497
      %1537 = vmatpush.msra.mxu0 %v1496
      %1538 = vmatmul.f32.gmra.mxu0 %v1499
      %v1539 = vpop.f32.mrf.mxu0
      %v1540 = vadd.f32 0.0, %v1539
      %1541 = vmatmul.f32.gmra.mxu0 %v1502
      %v1542 = vpop.f32.mrf.mxu0
      %v1543 = vadd.f32 0.0, %v1542
      %1544 = vmatmul.f32.gmra.mxu0 %v1505
      %v1545 = vpop.f32.mrf.mxu0
      %v1546 = vadd.f32 0.0, %v1545
      %1547 = vmatmul.f32.gmra.mxu0 %v1508
      %v1548 = vpop.f32.mrf.mxu0
      %v1549 = vadd.f32 0.0, %v1548
      %1550 = vmatmul.f32.gmra.mxu0 %v1511
      %v1551 = vpop.f32.mrf.mxu0
      %v1552 = vadd.f32 0.0, %v1551
      %1553 = vmatmul.f32.gmra.mxu0 %v1514
      %v1554 = vpop.f32.mrf.mxu0
      %v1555 = vadd.f32 0.0, %v1554
      %1556 = vmatmul.f32.gmra.mxu0 %v1517
      %v1557 = vpop.f32.mrf.mxu0
      %v1558 = vadd.f32 0.0, %v1557
      %1559 = vmatmul.f32.gmra.mxu0 %v1520
      %v1560 = vpop.f32.mrf.mxu0
      %v1561 = vadd.f32 0.0, %v1560
      %1562 = vdwg.mxu0
      %v1563 = vadd.f32 %v1455, %v1540
      %v1564 = vadd.f32 %v1456, %v1543
      %v1565 = vadd.f32 %v1457, %v1546
      %v1566 = vadd.f32 %v1458, %v1549
      %v1567 = vadd.f32 %v1459, %v1552
      %v1568 = vadd.f32 %v1460, %v1555
      %v1569 = vadd.f32 %v1461, %v1558
      %v1570 = vadd.f32 %v1462, %v1561
      %s1571 = scalar_lea.vmem [#allocation2], 18
      %v1572 = vld [vmem:[%s1571] ss:$2 sm:$0xff]
      %1573 = vst.msk [vmem:[#allocation3] sm:$0xff] %vm1202, %v1572
      %s1574 = scalar_lea.vmem [#allocation2], 54
      %v1575 = vld [vmem:[%s1574] ss:$2 sm:$0xff]
      %1576 = vst.msk [vmem:[#allocation3 + $0x8] sm:$0xff] %vm1202, %v1575
      %s1577 = scalar_lea.vmem [#allocation2], 90
      %v1578 = vld [vmem:[%s1577] ss:$2 sm:$0xff]
      %1579 = vst.msk [vmem:[#allocation3 + $0x10] sm:$0xff] %vm1202, %v1578
      %s1580 = scalar_lea.vmem [#allocation2], 126
      %v1581 = vld [vmem:[%s1580] ss:$2 sm:$0xff]
      %1582 = vst.msk [vmem:[#allocation3 + $0x18] sm:$0xff] %vm1202, %v1581
      %s1583 = scalar_lea.vmem [#allocation2], 162
      %v1584 = vld [vmem:[%s1583] ss:$2 sm:$0xff]
      %1585 = vst.msk [vmem:[#allocation3 + $0x20] sm:$0xff] %vm1202, %v1584
      %s1586 = scalar_lea.vmem [#allocation2], 198
      %v1587 = vld [vmem:[%s1586] ss:$2 sm:$0xff]
      %1588 = vst.msk [vmem:[#allocation3 + $0x28] sm:$0xff] %vm1202, %v1587
      %s1589 = scalar_lea.vmem [#allocation2], 234
      %v1590 = vld [vmem:[%s1589] ss:$2 sm:$0xff]
      %1591 = vst.msk [vmem:[#allocation3 + $0x30] sm:$0xff] %vm1202, %v1590
      %s1592 = scalar_lea.vmem [#allocation2], 270
      %v1593 = vld [vmem:[%s1592] ss:$2 sm:$0xff]
      %1594 = vst.msk [vmem:[#allocation3 + $0x38] sm:$0xff] %vm1202, %v1593
      %v1595 = vld [vmem:[#allocation3] sm:$0xff]
      %v1596 = vld [vmem:[#allocation3 + $0x8] sm:$0xff]
      %v1597 = vld [vmem:[#allocation3 + $0x10] sm:$0xff]
      %v1598 = vld [vmem:[#allocation3 + $0x18] sm:$0xff]
      %v1599 = vld [vmem:[#allocation3 + $0x20] sm:$0xff]
      %v1600 = vld [vmem:[#allocation3 + $0x28] sm:$0xff]
      %v1601 = vld [vmem:[#allocation3 + $0x30] sm:$0xff]
      %v1602 = vld [vmem:[#allocation3 + $0x38] sm:$0xff]
      %s1603 = scalar_lea.vmem %s3, 48
      %v1604 = vld [vmem:[%s1603] sm:$0xff]
      %v1605 = vld [vmem:[%s1603 + $0x8] sm:$0xff]
      %v1607 = vsel %vm1202, %v1595, 0
      %v1610 = vsel %vm1202, %v1596, 0
      %v1613 = vsel %vm1202, %v1597, 0
      %v1616 = vsel %vm1202, %v1598, 0
      %v1619 = vsel %vm1202, %v1599, 0
      %v1622 = vsel %vm1202, %v1600, 0
      %v1625 = vsel %vm1202, %v1601, 0
      %v1628 = vsel %vm1202, %v1602, 0
      %1630 = vmatpush.msra.mxu0 0.0
      %1631 = vmatpush.msra.mxu0 0.0
      %1632 = vmatpush.msra.mxu0 0.0
      %1633 = vmatpush.msra.mxu0 0.0
      %1634 = vmatpush.msra.mxu0 0.0
      %1635 = vmatpush.msra.mxu0 0.0
      %1636 = vmatpush.msra.mxu0 0.0
      %1637 = vmatpush.msra.mxu0 0.0
      %1638 = vmatpush.msra.mxu0 0.0
      %1639 = vmatpush.msra.mxu0 0.0
      %1640 = vmatpush.msra.mxu0 0.0
      %1641 = vmatpush.msra.mxu0 0.0
      %1642 = vmatpush.msra.mxu0 0.0
      %1643 = vmatpush.msra.mxu0 0.0
      %1644 = vmatpush.msra.mxu0 %v1605
      %1645 = vmatpush.msra.mxu0 %v1604
      %1646 = vmatmul.f32.gmra.mxu0 %v1607
      %v1647 = vpop.f32.mrf.mxu0
      %v1648 = vadd.f32 0.0, %v1647
      %1649 = vmatmul.f32.gmra.mxu0 %v1610
      %v1650 = vpop.f32.mrf.mxu0
      %v1651 = vadd.f32 0.0, %v1650
      %1652 = vmatmul.f32.gmra.mxu0 %v1613
      %v1653 = vpop.f32.mrf.mxu0
      %v1654 = vadd.f32 0.0, %v1653
      %1655 = vmatmul.f32.gmra.mxu0 %v1616
      %v1656 = vpop.f32.mrf.mxu0
      %v1657 = vadd.f32 0.0, %v1656
      %1658 = vmatmul.f32.gmra.mxu0 %v1619
      %v1659 = vpop.f32.mrf.mxu0
      %v1660 = vadd.f32 0.0, %v1659
      %1661 = vmatmul.f32.gmra.mxu0 %v1622
      %v1662 = vpop.f32.mrf.mxu0
      %v1663 = vadd.f32 0.0, %v1662
      %1664 = vmatmul.f32.gmra.mxu0 %v1625
      %v1665 = vpop.f32.mrf.mxu0
      %v1666 = vadd.f32 0.0, %v1665
      %1667 = vmatmul.f32.gmra.mxu0 %v1628
      %v1668 = vpop.f32.mrf.mxu0
      %v1669 = vadd.f32 0.0, %v1668
      %1670 = vdwg.mxu0
      %v1671 = vadd.f32 %v1563, %v1648
      %v1672 = vadd.f32 %v1564, %v1651
      %v1673 = vadd.f32 %v1565, %v1654
      %v1674 = vadd.f32 %v1566, %v1657
      %v1675 = vadd.f32 %v1567, %v1660
      %v1676 = vadd.f32 %v1568, %v1663
      %v1677 = vadd.f32 %v1569, %v1666
      %v1678 = vadd.f32 %v1570, %v1669
      %s1679 = scalar_lea.vmem [#allocation2], 19
      %v1680 = vld [vmem:[%s1679] ss:$2 sm:$0xff]
      %1681 = vst.msk [vmem:[#allocation3] sm:$0xff] %vm1202, %v1680
      %s1682 = scalar_lea.vmem [#allocation2], 55
      %v1683 = vld [vmem:[%s1682] ss:$2 sm:$0xff]
      %1684 = vst.msk [vmem:[#allocation3 + $0x8] sm:$0xff] %vm1202, %v1683
      %s1685 = scalar_lea.vmem [#allocation2], 91
      %v1686 = vld [vmem:[%s1685] ss:$2 sm:$0xff]
      %1687 = vst.msk [vmem:[#allocation3 + $0x10] sm:$0xff] %vm1202, %v1686
      %s1688 = scalar_lea.vmem [#allocation2], 127
      %v1689 = vld [vmem:[%s1688] ss:$2 sm:$0xff]
      %1690 = vst.msk [vmem:[#allocation3 + $0x18] sm:$0xff] %vm1202, %v1689
      %s1691 = scalar_lea.vmem [#allocation2], 163
      %v1692 = vld [vmem:[%s1691] ss:$2 sm:$0xff]
      %1693 = vst.msk [vmem:[#allocation3 + $0x20] sm:$0xff] %vm1202, %v1692
      %s1694 = scalar_lea.vmem [#allocation2], 199
      %v1695 = vld [vmem:[%s1694] ss:$2 sm:$0xff]
      %1696 = vst.msk [vmem:[#allocation3 + $0x28] sm:$0xff] %vm1202, %v1695
      %s1697 = scalar_lea.vmem [#allocation2], 235
      %v1698 = vld [vmem:[%s1697] ss:$2 sm:$0xff]
      %1699 = vst.msk [vmem:[#allocation3 + $0x30] sm:$0xff] %vm1202, %v1698
      %s1700 = scalar_lea.vmem [#allocation2], 271
      %v1701 = vld [vmem:[%s1700] ss:$2 sm:$0xff]
      %1702 = vst.msk [vmem:[#allocation3 + $0x38] sm:$0xff] %vm1202, %v1701
      %v1703 = vld [vmem:[#allocation3] sm:$0xff]
      %v1704 = vld [vmem:[#allocation3 + $0x8] sm:$0xff]
      %v1705 = vld [vmem:[#allocation3 + $0x10] sm:$0xff]
      %v1706 = vld [vmem:[#allocation3 + $0x18] sm:$0xff]
      %v1707 = vld [vmem:[#allocation3 + $0x20] sm:$0xff]
      %v1708 = vld [vmem:[#allocation3 + $0x28] sm:$0xff]
      %v1709 = vld [vmem:[#allocation3 + $0x30] sm:$0xff]
      %v1710 = vld [vmem:[#allocation3 + $0x38] sm:$0xff]
      %s1711 = scalar_lea.vmem %s3, 64
      %v1712 = vld [vmem:[%s1711] sm:$0xff]
      %v1713 = vld [vmem:[%s1711 + $0x8] sm:$0xff]
      %v1715 = vsel %vm1202, %v1703, 0
      %v1718 = vsel %vm1202, %v1704, 0
      %v1721 = vsel %vm1202, %v1705, 0
      %v1724 = vsel %vm1202, %v1706, 0
      %v1727 = vsel %vm1202, %v1707, 0
      %v1730 = vsel %vm1202, %v1708, 0
      %v1733 = vsel %vm1202, %v1709, 0
      %v1736 = vsel %vm1202, %v1710, 0
      %1738 = vmatpush.msra.mxu0 0.0
      %1739 = vmatpush.msra.mxu0 0.0
      %1740 = vmatpush.msra.mxu0 0.0
      %1741 = vmatpush.msra.mxu0 0.0
      %1742 = vmatpush.msra.mxu0 0.0
      %1743 = vmatpush.msra.mxu0 0.0
      %1744 = vmatpush.msra.mxu0 0.0
      %1745 = vmatpush.msra.mxu0 0.0
      %1746 = vmatpush.msra.mxu0 0.0
      %1747 = vmatpush.msra.mxu0 0.0
      %1748 = vmatpush.msra.mxu0 0.0
      %1749 = vmatpush.msra.mxu0 0.0
      %1750 = vmatpush.msra.mxu0 0.0
      %1751 = vmatpush.msra.mxu0 0.0
      %1752 = vmatpush.msra.mxu0 %v1713
      %1753 = vmatpush.msra.mxu0 %v1712
      %1754 = vmatmul.f32.gmra.mxu0 %v1715
      %v1755 = vpop.f32.mrf.mxu0
      %v1756 = vadd.f32 0.0, %v1755
      %1757 = vmatmul.f32.gmra.mxu0 %v1718
      %v1758 = vpop.f32.mrf.mxu0
      %v1759 = vadd.f32 0.0, %v1758
      %1760 = vmatmul.f32.gmra.mxu0 %v1721
      %v1761 = vpop.f32.mrf.mxu0
      %v1762 = vadd.f32 0.0, %v1761
      %1763 = vmatmul.f32.gmra.mxu0 %v1724
      %v1764 = vpop.f32.mrf.mxu0
      %v1765 = vadd.f32 0.0, %v1764
      %1766 = vmatmul.f32.gmra.mxu0 %v1727
      %v1767 = vpop.f32.mrf.mxu0
      %v1768 = vadd.f32 0.0, %v1767
      %1769 = vmatmul.f32.gmra.mxu0 %v1730
      %v1770 = vpop.f32.mrf.mxu0
      %v1771 = vadd.f32 0.0, %v1770
      %1772 = vmatmul.f32.gmra.mxu0 %v1733
      %v1773 = vpop.f32.mrf.mxu0
      %v1774 = vadd.f32 0.0, %v1773
      %1775 = vmatmul.f32.gmra.mxu0 %v1736
      %v1776 = vpop.f32.mrf.mxu0
      %v1777 = vadd.f32 0.0, %v1776
      %1778 = vdwg.mxu0
      %v1779 = vadd.f32 %v1671, %v1756
      %v1780 = vadd.f32 %v1672, %v1759
      %v1781 = vadd.f32 %v1673, %v1762
      %v1782 = vadd.f32 %v1674, %v1765
      %v1783 = vadd.f32 %v1675, %v1768
      %v1784 = vadd.f32 %v1676, %v1771
      %v1785 = vadd.f32 %v1677, %v1774
      %v1786 = vadd.f32 %v1678, %v1777
      %s1787 = scalar_lea.vmem [#allocation2], 20
      %v1788 = vld [vmem:[%s1787] ss:$2 sm:$0xff]
      %1789 = vst.msk [vmem:[#allocation3] sm:$0xff] %vm1202, %v1788
      %s1790 = scalar_lea.vmem [#allocation2], 56
      %v1791 = vld [vmem:[%s1790] ss:$2 sm:$0xff]
      %1792 = vst.msk [vmem:[#allocation3 + $0x8] sm:$0xff] %vm1202, %v1791
      %s1793 = scalar_lea.vmem [#allocation2], 92
      %v1794 = vld [vmem:[%s1793] ss:$2 sm:$0xff]
      %1795 = vst.msk [vmem:[#allocation3 + $0x10] sm:$0xff] %vm1202, %v1794
      %s1796 = scalar_lea.vmem [#allocation2], 128
      %v1797 = vld [vmem:[%s1796] ss:$2 sm:$0xff]
      %1798 = vst.msk [vmem:[#allocation3 + $0x18] sm:$0xff] %vm1202, %v1797
      %s1799 = scalar_lea.vmem [#allocation2], 164
      %v1800 = vld [vmem:[%s1799] ss:$2 sm:$0xff]
      %1801 = vst.msk [vmem:[#allocation3 + $0x20] sm:$0xff] %vm1202, %v1800
      %s1802 = scalar_lea.vmem [#allocation2], 200
      %v1803 = vld [vmem:[%s1802] ss:$2 sm:$0xff]
      %1804 = vst.msk [vmem:[#allocation3 + $0x28] sm:$0xff] %vm1202, %v1803
      %s1805 = scalar_lea.vmem [#allocation2], 236
      %v1806 = vld [vmem:[%s1805] ss:$2 sm:$0xff]
      %1807 = vst.msk [vmem:[#allocation3 + $0x30] sm:$0xff] %vm1202, %v1806
      %s1808 = scalar_lea.vmem [#allocation2], 272
      %v1809 = vld [vmem:[%s1808] ss:$2 sm:$0xff]
      %1810 = vst.msk [vmem:[#allocation3 + $0x38] sm:$0xff] %vm1202, %v1809
      %v1811 = vld [vmem:[#allocation3] sm:$0xff]
      %v1812 = vld [vmem:[#allocation3 + $0x8] sm:$0xff]
      %v1813 = vld [vmem:[#allocation3 + $0x10] sm:$0xff]
      %v1814 = vld [vmem:[#allocation3 + $0x18] sm:$0xff]
      %v1815 = vld [vmem:[#allocation3 + $0x20] sm:$0xff]
      %v1816 = vld [vmem:[#allocation3 + $0x28] sm:$0xff]
      %v1817 = vld [vmem:[#allocation3 + $0x30] sm:$0xff]
      %v1818 = vld [vmem:[#allocation3 + $0x38] sm:$0xff]
      %s1819 = scalar_lea.vmem %s3, 80
      %v1820 = vld [vmem:[%s1819] sm:$0xff]
      %v1821 = vld [vmem:[%s1819 + $0x8] sm:$0xff]
      %v1823 = vsel %vm1202, %v1811, 0
      %v1826 = vsel %vm1202, %v1812, 0
      %v1829 = vsel %vm1202, %v1813, 0
      %v1832 = vsel %vm1202, %v1814, 0
      %v1835 = vsel %vm1202, %v1815, 0
      %v1838 = vsel %vm1202, %v1816, 0
      %v1841 = vsel %vm1202, %v1817, 0
      %v1844 = vsel %vm1202, %v1818, 0
      %1846 = vmatpush.msra.mxu0 0.0
      %1847 = vmatpush.msra.mxu0 0.0
      %1848 = vmatpush.msra.mxu0 0.0
      %1849 = vmatpush.msra.mxu0 0.0
      %1850 = vmatpush.msra.mxu0 0.0
      %1851 = vmatpush.msra.mxu0 0.0
      %1852 = vmatpush.msra.mxu0 0.0
      %1853 = vmatpush.msra.mxu0 0.0
      %1854 = vmatpush.msra.mxu0 0.0
      %1855 = vmatpush.msra.mxu0 0.0
      %1856 = vmatpush.msra.mxu0 0.0
      %1857 = vmatpush.msra.mxu0 0.0
      %1858 = vmatpush.msra.mxu0 0.0
      %1859 = vmatpush.msra.mxu0 0.0
      %1860 = vmatpush.msra.mxu0 %v1821
      %1861 = vmatpush.msra.mxu0 %v1820
      %1862 = vmatmul.f32.gmra.mxu0 %v1823
      %v1863 = vpop.f32.mrf.mxu0
      %v1864 = vadd.f32 0.0, %v1863
      %1865 = vmatmul.f32.gmra.mxu0 %v1826
      %v1866 = vpop.f32.mrf.mxu0
      %v1867 = vadd.f32 0.0, %v1866
      %1868 = vmatmul.f32.gmra.mxu0 %v1829
      %v1869 = vpop.f32.mrf.mxu0
      %v1870 = vadd.f32 0.0, %v1869
      %1871 = vmatmul.f32.gmra.mxu0 %v1832
      %v1872 = vpop.f32.mrf.mxu0
      %v1873 = vadd.f32 0.0, %v1872
      %1874 = vmatmul.f32.gmra.mxu0 %v1835
      %v1875 = vpop.f32.mrf.mxu0
      %v1876 = vadd.f32 0.0, %v1875
      %1877 = vmatmul.f32.gmra.mxu0 %v1838
      %v1878 = vpop.f32.mrf.mxu0
      %v1879 = vadd.f32 0.0, %v1878
      %1880 = vmatmul.f32.gmra.mxu0 %v1841
      %v1881 = vpop.f32.mrf.mxu0
      %v1882 = vadd.f32 0.0, %v1881
      %1883 = vmatmul.f32.gmra.mxu0 %v1844
      %v1884 = vpop.f32.mrf.mxu0
      %v1885 = vadd.f32 0.0, %v1884
      %1886 = vdwg.mxu0
      %v1887 = vadd.f32 %v1779, %v1864
      %v1888 = vadd.f32 %v1780, %v1867
      %v1889 = vadd.f32 %v1781, %v1870
      %v1890 = vadd.f32 %v1782, %v1873
      %v1891 = vadd.f32 %v1783, %v1876
      %v1892 = vadd.f32 %v1784, %v1879
      %v1893 = vadd.f32 %v1785, %v1882
      %v1894 = vadd.f32 %v1786, %v1885
      %v1895 = vld [vmem:[%s1251] ss:$2 sm:$0xff]
      %1896 = vst.msk [vmem:[#allocation3] sm:$0xff] %vm1202, %v1895
      %v1897 = vld [vmem:[%s1254] ss:$2 sm:$0xff]
      %1898 = vst.msk [vmem:[#allocation3 + $0x8] sm:$0xff] %vm1202, %v1897
      %v1899 = vld [vmem:[%s1257] ss:$2 sm:$0xff]
      %1900 = vst.msk [vmem:[#allocation3 + $0x10] sm:$0xff] %vm1202, %v1899
      %v1901 = vld [vmem:[%s1260] ss:$2 sm:$0xff]
      %1902 = vst.msk [vmem:[#allocation3 + $0x18] sm:$0xff] %vm1202, %v1901
      %v1903 = vld [vmem:[%s1263] ss:$2 sm:$0xff]
      %1904 = vst.msk [vmem:[#allocation3 + $0x20] sm:$0xff] %vm1202, %v1903
      %v1905 = vld [vmem:[%s1266] ss:$2 sm:$0xff]
      %1906 = vst.msk [vmem:[#allocation3 + $0x28] sm:$0xff] %vm1202, %v1905
      %v1907 = vld [vmem:[%s1269] ss:$2 sm:$0xff]
      %1908 = vst.msk [vmem:[#allocation3 + $0x30] sm:$0xff] %vm1202, %v1907
      %s1909 = scalar_lea.vmem [#allocation2], 288
      %v1910 = vld [vmem:[%s1909] ss:$2 sm:$0xff]
      %1911 = vst.msk [vmem:[#allocation3 + $0x38] sm:$0xff] %vm1202, %v1910
      %v1912 = vld [vmem:[#allocation3] sm:$0xff]
      %v1913 = vld [vmem:[#allocation3 + $0x8] sm:$0xff]
      %v1914 = vld [vmem:[#allocation3 + $0x10] sm:$0xff]
      %v1915 = vld [vmem:[#allocation3 + $0x18] sm:$0xff]
      %v1916 = vld [vmem:[#allocation3 + $0x20] sm:$0xff]
      %v1917 = vld [vmem:[#allocation3 + $0x28] sm:$0xff]
      %v1918 = vld [vmem:[#allocation3 + $0x30] sm:$0xff]
      %v1919 = vld [vmem:[#allocation3 + $0x38] sm:$0xff]
      %s1920 = scalar_lea.vmem %s3, 96
      %v1921 = vld [vmem:[%s1920] sm:$0xff]
      %v1922 = vld [vmem:[%s1920 + $0x8] sm:$0xff]
      %v1924 = vsel %vm1202, %v1912, 0
      %v1927 = vsel %vm1202, %v1913, 0
      %v1930 = vsel %vm1202, %v1914, 0
      %v1933 = vsel %vm1202, %v1915, 0
      %v1936 = vsel %vm1202, %v1916, 0
      %v1939 = vsel %vm1202, %v1917, 0
      %v1942 = vsel %vm1202, %v1918, 0
      %v1945 = vsel %vm1202, %v1919, 0
      %1947 = vmatpush.msra.mxu0 0.0
      %1948 = vmatpush.msra.mxu0 0.0
      %1949 = vmatpush.msra.mxu0 0.0
      %1950 = vmatpush.msra.mxu0 0.0
      %1951 = vmatpush.msra.mxu0 0.0
      %1952 = vmatpush.msra.mxu0 0.0
      %1953 = vmatpush.msra.mxu0 0.0
      %1954 = vmatpush.msra.mxu0 0.0
      %1955 = vmatpush.msra.mxu0 0.0
      %1956 = vmatpush.msra.mxu0 0.0
      %1957 = vmatpush.msra.mxu0 0.0
      %1958 = vmatpush.msra.mxu0 0.0
      %1959 = vmatpush.msra.mxu0 0.0
      %1960 = vmatpush.msra.mxu0 0.0
      %1961 = vmatpush.msra.mxu0 %v1922
      %1962 = vmatpush.msra.mxu0 %v1921
      %1963 = vmatmul.f32.gmra.mxu0 %v1924
      %v1964 = vpop.f32.mrf.mxu0
      %v1965 = vadd.f32 0.0, %v1964
      %1966 = vmatmul.f32.gmra.mxu0 %v1927
      %v1967 = vpop.f32.mrf.mxu0
      %v1968 = vadd.f32 0.0, %v1967
      %1969 = vmatmul.f32.gmra.mxu0 %v1930
      %v1970 = vpop.f32.mrf.mxu0
      %v1971 = vadd.f32 0.0, %v1970
      %1972 = vmatmul.f32.gmra.mxu0 %v1933
      %v1973 = vpop.f32.mrf.mxu0
      %v1974 = vadd.f32 0.0, %v1973
      %1975 = vmatmul.f32.gmra.mxu0 %v1936
      %v1976 = vpop.f32.mrf.mxu0
      %v1977 = vadd.f32 0.0, %v1976
      %1978 = vmatmul.f32.gmra.mxu0 %v1939
      %v1979 = vpop.f32.mrf.mxu0
      %v1980 = vadd.f32 0.0, %v1979
      %1981 = vmatmul.f32.gmra.mxu0 %v1942
      %v1982 = vpop.f32.mrf.mxu0
      %v1983 = vadd.f32 0.0, %v1982
      %1984 = vmatmul.f32.gmra.mxu0 %v1945
      %v1985 = vpop.f32.mrf.mxu0
      %v1986 = vadd.f32 0.0, %v1985
      %1987 = vdwg.mxu0
      %v1988 = vadd.f32 %v1887, %v1965
      %v1989 = vadd.f32 %v1888, %v1968
      %v1990 = vadd.f32 %v1889, %v1971
      %v1991 = vadd.f32 %v1890, %v1974
      %v1992 = vadd.f32 %v1891, %v1977
      %v1993 = vadd.f32 %v1892, %v1980
      %v1994 = vadd.f32 %v1893, %v1983
      %v1995 = vadd.f32 %v1894, %v1986
      %v1996 = vld [vmem:[%s1358] ss:$2 sm:$0xff]
      %1997 = vst.msk [vmem:[#allocation3] sm:$0xff] %vm1202, %v1996
      %v1998 = vld [vmem:[%s1361] ss:$2 sm:$0xff]
      %1999 = vst.msk [vmem:[#allocation3 + $0x8] sm:$0xff] %vm1202, %v1998
      %v2000 = vld [vmem:[%s1364] ss:$2 sm:$0xff]
      %2001 = vst.msk [vmem:[#allocation3 + $0x10] sm:$0xff] %vm1202, %v2000
      %v2002 = vld [vmem:[%s1367] ss:$2 sm:$0xff]
      %2003 = vst.msk [vmem:[#allocation3 + $0x18] sm:$0xff] %vm1202, %v2002
      %v2004 = vld [vmem:[%s1370] ss:$2 sm:$0xff]
      %2005 = vst.msk [vmem:[#allocation3 + $0x20] sm:$0xff] %vm1202, %v2004
      %v2006 = vld [vmem:[%s1373] ss:$2 sm:$0xff]
      %2007 = vst.msk [vmem:[#allocation3 + $0x28] sm:$0xff] %vm1202, %v2006
      %v2008 = vld [vmem:[%s1376] ss:$2 sm:$0xff]
      %2009 = vst.msk [vmem:[#allocation3 + $0x30] sm:$0xff] %vm1202, %v2008
      %s2010 = scalar_lea.vmem [#allocation2], 289
      %v2011 = vld [vmem:[%s2010] ss:$2 sm:$0xff]
      %2012 = vst.msk [vmem:[#allocation3 + $0x38] sm:$0xff] %vm1202, %v2011
      %v2013 = vld [vmem:[#allocation3] sm:$0xff]
      %v2014 = vld [vmem:[#allocation3 + $0x8] sm:$0xff]
      %v2015 = vld [vmem:[#allocation3 + $0x10] sm:$0xff]
      %v2016 = vld [vmem:[#allocation3 + $0x18] sm:$0xff]
      %v2017 = vld [vmem:[#allocation3 + $0x20] sm:$0xff]
      %v2018 = vld [vmem:[#allocation3 + $0x28] sm:$0xff]
      %v2019 = vld [vmem:[#allocation3 + $0x30] sm:$0xff]
      %v2020 = vld [vmem:[#allocation3 + $0x38] sm:$0xff]
      %s2021 = scalar_lea.vmem %s3, 112
      %v2022 = vld [vmem:[%s2021] sm:$0xff]
      %v2023 = vld [vmem:[%s2021 + $0x8] sm:$0xff]
      %v2025 = vsel %vm1202, %v2013, 0
      %v2028 = vsel %vm1202, %v2014, 0
      %v2031 = vsel %vm1202, %v2015, 0
      %v2034 = vsel %vm1202, %v2016, 0
      %v2037 = vsel %vm1202, %v2017, 0
      %v2040 = vsel %vm1202, %v2018, 0
      %v2043 = vsel %vm1202, %v2019, 0
      %v2046 = vsel %vm1202, %v2020, 0
      %2048 = vmatpush.msra.mxu0 0.0
      %2049 = vmatpush.msra.mxu0 0.0
      %2050 = vmatpush.msra.mxu0 0.0
      %2051 = vmatpush.msra.mxu0 0.0
      %2052 = vmatpush.msra.mxu0 0.0
      %2053 = vmatpush.msra.mxu0 0.0
      %2054 = vmatpush.msra.mxu0 0.0
      %2055 = vmatpush.msra.mxu0 0.0
      %2056 = vmatpush.msra.mxu0 0.0
      %2057 = vmatpush.msra.mxu0 0.0
      %2058 = vmatpush.msra.mxu0 0.0
      %2059 = vmatpush.msra.mxu0 0.0
      %2060 = vmatpush.msra.mxu0 0.0
      %2061 = vmatpush.msra.mxu0 0.0
      %2062 = vmatpush.msra.mxu0 %v2023
      %2063 = vmatpush.msra.mxu0 %v2022
      %2064 = vmatmul.f32.gmra.mxu0 %v2025
      %v2065 = vpop.f32.mrf.mxu0
      %v2066 = vadd.f32 0.0, %v2065
      %2067 = vmatmul.f32.gmra.mxu0 %v2028
      %v2068 = vpop.f32.mrf.mxu0
      %v2069 = vadd.f32 0.0, %v2068
      %2070 = vmatmul.f32.gmra.mxu0 %v2031
      %v2071 = vpop.f32.mrf.mxu0
      %v2072 = vadd.f32 0.0, %v2071
      %2073 = vmatmul.f32.gmra.mxu0 %v2034
      %v2074 = vpop.f32.mrf.mxu0
      %v2075 = vadd.f32 0.0, %v2074
      %2076 = vmatmul.f32.gmra.mxu0 %v2037
      %v2077 = vpop.f32.mrf.mxu0
      %v2078 = vadd.f32 0.0, %v2077
      %2079 = vmatmul.f32.gmra.mxu0 %v2040
      %v2080 = vpop.f32.mrf.mxu0
      %v2081 = vadd.f32 0.0, %v2080
      %2082 = vmatmul.f32.gmra.mxu0 %v2043
      %v2083 = vpop.f32.mrf.mxu0
      %v2084 = vadd.f32 0.0, %v2083
      %2085 = vmatmul.f32.gmra.mxu0 %v2046
      %v2086 = vpop.f32.mrf.mxu0
      %v2087 = vadd.f32 0.0, %v2086
      %2088 = vdwg.mxu0
      %v2089 = vadd.f32 %v1988, %v2066
      %v2090 = vadd.f32 %v1989, %v2069
      %v2091 = vadd.f32 %v1990, %v2072
      %v2092 = vadd.f32 %v1991, %v2075
      %v2093 = vadd.f32 %v1992, %v2078
      %v2094 = vadd.f32 %v1993, %v2081
      %v2095 = vadd.f32 %v1994, %v2084
      %v2096 = vadd.f32 %v1995, %v2087
      %v2097 = vld [vmem:[%s1466] ss:$2 sm:$0xff]
      %2098 = vst.msk [vmem:[#allocation3] sm:$0xff] %vm1202, %v2097
      %v2099 = vld [vmem:[%s1469] ss:$2 sm:$0xff]
      %2100 = vst.msk [vmem:[#allocation3 + $0x8] sm:$0xff] %vm1202, %v2099
      %v2101 = vld [vmem:[%s1472] ss:$2 sm:$0xff]
      %2102 = vst.msk [vmem:[#allocation3 + $0x10] sm:$0xff] %vm1202, %v2101
      %v2103 = vld [vmem:[%s1475] ss:$2 sm:$0xff]
      %2104 = vst.msk [vmem:[#allocation3 + $0x18] sm:$0xff] %vm1202, %v2103
      %v2105 = vld [vmem:[%s1478] ss:$2 sm:$0xff]
      %2106 = vst.msk [vmem:[#allocation3 + $0x20] sm:$0xff] %vm1202, %v2105
      %v2107 = vld [vmem:[%s1481] ss:$2 sm:$0xff]
      %2108 = vst.msk [vmem:[#allocation3 + $0x28] sm:$0xff] %vm1202, %v2107
      %v2109 = vld [vmem:[%s1484] ss:$2 sm:$0xff]
      %2110 = vst.msk [vmem:[#allocation3 + $0x30] sm:$0xff] %vm1202, %v2109
      %s2111 = scalar_lea.vmem [#allocation2], 290
      %v2112 = vld [vmem:[%s2111] ss:$2 sm:$0xff]
      %2113 = vst.msk [vmem:[#allocation3 + $0x38] sm:$0xff] %vm1202, %v2112
      %v2114 = vld [vmem:[#allocation3] sm:$0xff]
      %v2115 = vld [vmem:[#allocation3 + $0x8] sm:$0xff]
      %v2116 = vld [vmem:[#allocation3 + $0x10] sm:$0xff]
      %v2117 = vld [vmem:[#allocation3 + $0x18] sm:$0xff]
      %v2118 = vld [vmem:[#allocation3 + $0x20] sm:$0xff]
      %v2119 = vld [vmem:[#allocation3 + $0x28] sm:$0xff]
      %v2120 = vld [vmem:[#allocation3 + $0x30] sm:$0xff]
      %v2121 = vld [vmem:[#allocation3 + $0x38] sm:$0xff]
      %s2122 = scalar_lea.vmem %s3, 128
      %v2123 = vld [vmem:[%s2122] sm:$0xff]
      %v2124 = vld [vmem:[%s2122 + $0x8] sm:$0xff]
      %v2126 = vsel %vm1202, %v2114, 0
      %v2129 = vsel %vm1202, %v2115, 0
      %v2132 = vsel %vm1202, %v2116, 0
      %v2135 = vsel %vm1202, %v2117, 0
      %v2138 = vsel %vm1202, %v2118, 0
      %v2141 = vsel %vm1202, %v2119, 0
      %v2144 = vsel %vm1202, %v2120, 0
      %v2147 = vsel %vm1202, %v2121, 0
      %2149 = vmatpush.msra.mxu0 0.0
      %2150 = vmatpush.msra.mxu0 0.0
      %2151 = vmatpush.msra.mxu0 0.0
      %2152 = vmatpush.msra.mxu0 0.0
      %2153 = vmatpush.msra.mxu0 0.0
      %2154 = vmatpush.msra.mxu0 0.0
      %2155 = vmatpush.msra.mxu0 0.0
      %2156 = vmatpush.msra.mxu0 0.0
      %2157 = vmatpush.msra.mxu0 0.0
      %2158 = vmatpush.msra.mxu0 0.0
      %2159 = vmatpush.msra.mxu0 0.0
      %2160 = vmatpush.msra.mxu0 0.0
      %2161 = vmatpush.msra.mxu0 0.0
      %2162 = vmatpush.msra.mxu0 0.0
      %2163 = vmatpush.msra.mxu0 %v2124
      %2164 = vmatpush.msra.mxu0 %v2123
      %2165 = vmatmul.f32.gmra.mxu0 %v2126
      %v2166 = vpop.f32.mrf.mxu0
      %v2167 = vadd.f32 0.0, %v2166
      %2168 = vmatmul.f32.gmra.mxu0 %v2129
      %v2169 = vpop.f32.mrf.mxu0
      %v2170 = vadd.f32 0.0, %v2169
      %2171 = vmatmul.f32.gmra.mxu0 %v2132
      %v2172 = vpop.f32.mrf.mxu0
      %v2173 = vadd.f32 0.0, %v2172
      %2174 = vmatmul.f32.gmra.mxu0 %v2135
      %v2175 = vpop.f32.mrf.mxu0
      %v2176 = vadd.f32 0.0, %v2175
      %2177 = vmatmul.f32.gmra.mxu0 %v2138
      %v2178 = vpop.f32.mrf.mxu0
      %v2179 = vadd.f32 0.0, %v2178
      %2180 = vmatmul.f32.gmra.mxu0 %v2141
      %v2181 = vpop.f32.mrf.mxu0
      %v2182 = vadd.f32 0.0, %v2181
      %2183 = vmatmul.f32.gmra.mxu0 %v2144
      %v2184 = vpop.f32.mrf.mxu0
      %v2185 = vadd.f32 0.0, %v2184
      %2186 = vmatmul.f32.gmra.mxu0 %v2147
      %v2187 = vpop.f32.mrf.mxu0
      %v2188 = vadd.f32 0.0, %v2187
      %2189 = vdwg.mxu0
      %v2190 = vadd.f32 %v2089, %v2167
      %v2191 = vadd.f32 %v2090, %v2170
      %v2192 = vadd.f32 %v2091, %v2173
      %v2193 = vadd.f32 %v2092, %v2176
      %v2194 = vadd.f32 %v2093, %v2179
      %v2195 = vadd.f32 %v2094, %v2182
      %v2196 = vadd.f32 %v2095, %v2185
      %v2197 = vadd.f32 %v2096, %v2188
      %v2198 = vmax.f32 %v2190, 0.0
      %v2199 = vmax.f32 %v2191, 0.0
      %v2200 = vmax.f32 %v2192, 0.0
      %v2201 = vmax.f32 %v2193, 0.0
      %v2202 = vmax.f32 %v2194, 0.0
      %v2203 = vmax.f32 %v2195, 0.0
      %v2204 = vmax.f32 %v2196, 0.0
      %v2205 = vmax.f32 %v2197, 0.0
      %v2206 = vld [vmem:[%s5] sm:$0xff]
      %v2207 = vld [vmem:[%s5 + $0x8] sm:$0xff]
      %v2208 = vld [vmem:[%s5 + $0x10] sm:$0xff]
      %v2209 = vld [vmem:[%s5 + $0x18] sm:$0xff]
      %v2210 = vld [vmem:[%s5 + $0x20] sm:$0xff]
      %v2211 = vld [vmem:[%s5 + $0x28] sm:$0xff]
      %v2212 = vld [vmem:[%s5 + $0x30] sm:$0xff]
      %v2213 = vld [vmem:[%s5 + $0x38] sm:$0xff]
      %v2214 = vld [vmem:[%s6] sm:$0x1]
      %v2216 = vperm.slane %v2214, 0
      %vm2218 = vcmask 523264
      %v2220 = vsel %vm2218, %v2198, 0
      %v2223 = vsel %vm2218, %v2199, 0
      %v2226 = vsel %vm2218, %v2200, 0
      %v2229 = vsel %vm2218, %v2201, 0
      %v2232 = vsel %vm2218, %v2202, 0
      %v2235 = vsel %vm2218, %v2203, 0
      %v2238 = vsel %vm2218, %v2204, 0
      %v2241 = vsel %vm2218, %v2205, 0
      %2243 = vmatpush.msra.mxu0 0.0
      %2244 = vmatpush.msra.mxu0 0.0
      %2245 = vmatpush.msra.mxu0 0.0
      %2246 = vmatpush.msra.mxu0 0.0
      %2247 = vmatpush.msra.mxu0 0.0
      %2248 = vmatpush.msra.mxu0 0.0
      %2249 = vmatpush.msra.mxu0 0.0
      %2250 = vmatpush.msra.mxu0 0.0
      %2251 = vmatpush.msra.mxu0 %v2213
      %2252 = vmatpush.msra.mxu0 %v2212
      %2253 = vmatpush.msra.mxu0 %v2211
      %2254 = vmatpush.msra.mxu0 %v2210
      %2255 = vmatpush.msra.mxu0 %v2209
      %2256 = vmatpush.msra.mxu0 %v2208
      %2257 = vmatpush.msra.mxu0 %v2207
      %2258 = vmatpush.msra.mxu0 %v2206
      %2259 = vmatmul.f32.gmra.mxu0 %v2220
      %v2260 = vpop.f32.mrf.mxu0
      %v2261 = vadd.f32 %v2216, %v2260
      %2262 = vmatmul.f32.gmra.mxu0 %v2223
      %v2263 = vpop.f32.mrf.mxu0
      %v2264 = vadd.f32 %v2216, %v2263
      %2265 = vmatmul.f32.gmra.mxu0 %v2226
      %v2266 = vpop.f32.mrf.mxu0
      %v2267 = vadd.f32 %v2216, %v2266
      %2268 = vmatmul.f32.gmra.mxu0 %v2229
      %v2269 = vpop.f32.mrf.mxu0
      %v2270 = vadd.f32 %v2216, %v2269
      %2271 = vmatmul.f32.gmra.mxu0 %v2232
      %v2272 = vpop.f32.mrf.mxu0
      %v2273 = vadd.f32 %v2216, %v2272
      %2274 = vmatmul.f32.gmra.mxu0 %v2235
      %v2275 = vpop.f32.mrf.mxu0
      %v2276 = vadd.f32 %v2216, %v2275
      %2277 = vmatmul.f32.gmra.mxu0 %v2238
      %v2278 = vpop.f32.mrf.mxu0
      %v2279 = vadd.f32 %v2216, %v2278
      %2280 = vmatmul.f32.gmra.mxu0 %v2241
      %v2281 = vpop.f32.mrf.mxu0
      %v2282 = vadd.f32 %v2216, %v2281
      %2283 = vdwg.mxu0
      %v2284 = vmax.f32 %v2261, 0.0
      %v2285 = vmax.f32 %v2264, 0.0
      %v2286 = vmax.f32 %v2267, 0.0
      %v2287 = vmax.f32 %v2270, 0.0
      %v2288 = vmax.f32 %v2273, 0.0
      %v2289 = vmax.f32 %v2276, 0.0
      %v2290 = vmax.f32 %v2279, 0.0
      %v2291 = vmax.f32 %v2282, 0.0
      %v2292 = vmax.f32 %v2214, 0.0
      %v2294 = vperm.slane %v2292, 0
      %vm2296 = vcmask 261120
      %2297 = vst.msk [vmem:[#allocation4] sm:$0xff] %vm2296, 0.0
      %2298 = vst.msk [vmem:[#allocation4 + $0x8] sm:$0xff] %vm2296, 0.0
      %2299 = vst.msk [vmem:[#allocation4 + $0x10] sm:$0xff] %vm2296, 0.0
      %2300 = vst.msk [vmem:[#allocation4 + $0x18] sm:$0xff] %vm2296, 0.0
      %2301 = vst.msk [vmem:[#allocation4 + $0x20] sm:$0xff] %vm2296, 0.0
      %2302 = vst.msk [vmem:[#allocation4 + $0x28] sm:$0xff] %vm2296, 0.0
      %2303 = vst.msk [vmem:[#allocation4 + $0x30] sm:$0xff] %vm2296, 0.0
      %2304 = vst.msk [vmem:[#allocation4 + $0x38] sm:$0xff] %vm2296, 0.0
      %2305 = vst.msk [vmem:[#allocation4 + $0x40] sm:$0xff] %vm2296, 0.0
      %2306 = vst.msk [vmem:[#allocation4 + $0x48] sm:$0xff] %vm2296, 0.0
      %2307 = vst.msk [vmem:[#allocation4 + $0x50] sm:$0xff] %vm2296, 0.0
      %2308 = vst.msk [vmem:[#allocation4 + $0x58] sm:$0xff] %vm2296, 0.0
      %2309 = vst.msk [vmem:[#allocation4 + $0x60] sm:$0xff] %vm2296, 0.0
      %2310 = vst.msk [vmem:[#allocation4 + $0x68] sm:$0xff] %vm2296, 0.0
      %2311 = vst.msk [vmem:[#allocation4 + $0x70] sm:$0xff] %vm2296, 0.0
      %2312 = vst.msk [vmem:[#allocation4 + $0x78] sm:$0xff] %vm2296, 0.0
      %2313 = vst.msk [vmem:[#allocation4 + $0x80] sm:$0xff] %vm2296, 0.0
      %2314 = vst.msk [vmem:[#allocation4 + $0x88] sm:$0xff] %vm2296, 0.0
      %2315 = vst.msk [vmem:[#allocation4 + $0xd] sm:$0xff] %vm2296, %v2294
      %vm2316 = vcmask 254976
      %2317 = vst.msk [vmem:[#allocation4 + $0x15] sm:$0x3] %vm2316, %v2294
      %2318 = vst.msk [vmem:[#allocation4 + $0x19] sm:$0xff] %vm2296, %v2294
      %2319 = vst.msk [vmem:[#allocation4 + $0x21] sm:$0x3] %vm2316, %v2294
      %2320 = vst.msk [vmem:[#allocation4 + $0x25] sm:$0xff] %vm2296, %v2294
      %2321 = vst.msk [vmem:[#allocation4 + $0x2d] sm:$0x3] %vm2316, %v2294
      %2322 = vst.msk [vmem:[#allocation4 + $0x31] sm:$0xff] %vm2296, %v2294
      %2323 = vst.msk [vmem:[#allocation4 + $0x39] sm:$0x3] %vm2316, %v2294
      %2324 = vst.msk [vmem:[#allocation4 + $0x3d] sm:$0xff] %vm2296, %v2294
      %2325 = vst.msk [vmem:[#allocation4 + $0x45] sm:$0x3] %vm2316, %v2294
      %2326 = vst.msk [vmem:[#allocation4 + $0x49] sm:$0xff] %vm2296, %v2294
      %2327 = vst.msk [vmem:[#allocation4 + $0x51] sm:$0x3] %vm2316, %v2294
      %2328 = vst.msk [vmem:[#allocation4 + $0x55] sm:$0xff] %vm2296, %v2294
      %2329 = vst.msk [vmem:[#allocation4 + $0x5d] sm:$0x3] %vm2316, %v2294
      %2330 = vst.msk [vmem:[#allocation4 + $0x61] sm:$0xff] %vm2296, %v2294
      %2331 = vst.msk [vmem:[#allocation4 + $0x69] sm:$0x3] %vm2316, %v2294
      %2332 = vst.msk [vmem:[#allocation4 + $0x6d] sm:$0xff] %vm2296, %v2294
      %2333 = vst.msk [vmem:[#allocation4 + $0x75] sm:$0x3] %vm2316, %v2294
      %2334 = vst.msk [vmem:[#allocation4 + $0x79] sm:$0xff] %vm2296, %v2294
      %2335 = vst.msk [vmem:[#allocation4 + $0x81] sm:$0x3] %vm2316, %v2294
      %2336 = vst.msk [vmem:[#allocation4 + $0x1a] sm:$0xff] %vm2296, %v2284
      %2337 = vst.msk [vmem:[#allocation4 + $0x26] sm:$0xff] %vm2296, %v2285
      %2338 = vst.msk [vmem:[#allocation4 + $0x32] sm:$0xff] %vm2296, %v2286
      %2339 = vst.msk [vmem:[#allocation4 + $0x3e] sm:$0xff] %vm2296, %v2287
      %2340 = vst.msk [vmem:[#allocation4 + $0x4a] sm:$0xff] %vm2296, %v2288
      %2341 = vst.msk [vmem:[#allocation4 + $0x56] sm:$0xff] %vm2296, %v2289
      %2342 = vst.msk [vmem:[#allocation4 + $0x62] sm:$0xff] %vm2296, %v2290
      %2343 = vst.msk [vmem:[#allocation4 + $0x6e] sm:$0xff] %vm2296, %v2291
      %v2344 = vld [vmem:[%s8] sm:$0x1]
      %v2346 = vperm.slane %v2344, 0
      %v2348 = vld [vmem:[#allocation4] sm:$0xff]
      %v2349 = vld [vmem:[#allocation4 + $0x8] sm:$0x3]
      %2350 = vst.msk [vmem:[#allocation5] sm:$0xff] %vm2296, %v2348
      %2351 = vst.msk [vmem:[#allocation5 + $0x8] sm:$0x3] %vm2316, %v2349
      %v2352 = vld [vmem:[#allocation4 + $0xc] sm:$0xff]
      %v2353 = vld [vmem:[#allocation4 + $0x14] sm:$0x3]
      %2354 = vst.msk [vmem:[#allocation5 + $0xa] sm:$0xff] %vm2296, %v2352
      %2355 = vst.msk [vmem:[#allocation5 + $0x12] sm:$0x3] %vm2316, %v2353
      %v2356 = vld [vmem:[#allocation4 + $0x18] sm:$0xff]
      %v2357 = vld [vmem:[#allocation4 + $0x20] sm:$0x3]
      %2358 = vst.msk [vmem:[#allocation5 + $0x14] sm:$0xff] %vm2296, %v2356
      %2359 = vst.msk [vmem:[#allocation5 + $0x1c] sm:$0x3] %vm2316, %v2357
      %v2360 = vld [vmem:[#allocation4 + $0x24] sm:$0xff]
      %v2361 = vld [vmem:[#allocation4 + $0x2c] sm:$0x3]
      %2362 = vst.msk [vmem:[#allocation5 + $0x1e] sm:$0xff] %vm2296, %v2360
      %2363 = vst.msk [vmem:[#allocation5 + $0x26] sm:$0x3] %vm2316, %v2361
      %v2364 = vld [vmem:[#allocation4 + $0x30] sm:$0xff]
      %v2365 = vld [vmem:[#allocation4 + $0x38] sm:$0x3]
      %2366 = vst.msk [vmem:[#allocation5 + $0x28] sm:$0xff] %vm2296, %v2364
      %2367 = vst.msk [vmem:[#allocation5 + $0x30] sm:$0x3] %vm2316, %v2365
      %v2368 = vld [vmem:[#allocation4 + $0x3c] sm:$0xff]
      %v2369 = vld [vmem:[#allocation4 + $0x44] sm:$0x3]
      %2370 = vst.msk [vmem:[#allocation5 + $0x32] sm:$0xff] %vm2296, %v2368
      %2371 = vst.msk [vmem:[#allocation5 + $0x3a] sm:$0x3] %vm2316, %v2369
      %v2372 = vld [vmem:[#allocation4 + $0x48] sm:$0xff]
      %v2373 = vld [vmem:[#allocation4 + $0x50] sm:$0x3]
      %2374 = vst.msk [vmem:[#allocation5 + $0x3c] sm:$0xff] %vm2296, %v2372
      %2375 = vst.msk [vmem:[#allocation5 + $0x44] sm:$0x3] %vm2316, %v2373
      %v2376 = vld [vmem:[#allocation4 + $0x54] sm:$0xff]
      %v2377 = vld [vmem:[#allocation4 + $0x5c] sm:$0x3]
      %2378 = vst.msk [vmem:[#allocation5 + $0x46] sm:$0xff] %vm2296, %v2376
      %2379 = vst.msk [vmem:[#allocation5 + $0x4e] sm:$0x3] %vm2316, %v2377
      %v2380 = vld [vmem:[#allocation4 + $0x60] sm:$0xff]
      %v2381 = vld [vmem:[#allocation4 + $0x68] sm:$0x3]
      %2382 = vst.msk [vmem:[#allocation5 + $0x50] sm:$0xff] %vm2296, %v2380
      %2383 = vst.msk [vmem:[#allocation5 + $0x58] sm:$0x3] %vm2316, %v2381
      %v2384 = vld [vmem:[#allocation4 + $0x6c] sm:$0xff]
      %v2385 = vld [vmem:[#allocation4 + $0x74] sm:$0x3]
      %2386 = vst.msk [vmem:[#allocation5 + $0x5a] sm:$0xff] %vm2296, %v2384
      %2387 = vst.msk [vmem:[#allocation5 + $0x62] sm:$0x3] %vm2316, %v2385
      %v2388 = vld [vmem:[#allocation5] sm:$0xff]
      %v2389 = vld [vmem:[#allocation5 + $0x8] sm:$0xff]
      %v2390 = vld [vmem:[#allocation5 + $0x10] sm:$0xff]
      %v2391 = vld [vmem:[#allocation5 + $0x18] sm:$0xff]
      %v2392 = vld [vmem:[#allocation5 + $0x20] sm:$0xff]
      %v2393 = vld [vmem:[#allocation5 + $0x28] sm:$0xff]
      %v2394 = vld [vmem:[#allocation5 + $0x30] sm:$0xff]
      %v2395 = vld [vmem:[#allocation5 + $0x38] sm:$0xff]
      %v2396 = vld [vmem:[#allocation5 + $0x40] sm:$0xff]
      %v2397 = vld [vmem:[#allocation5 + $0x48] sm:$0xff]
      %v2398 = vld [vmem:[#allocation5 + $0x50] sm:$0xff]
      %v2399 = vld [vmem:[#allocation5 + $0x58] sm:$0xff]
      %v2400 = vld [vmem:[#allocation5 + $0x60] sm:$0xf]
      %v2401 = vld [vmem:[%s7] sm:$0xff]
      %v2402 = vld [vmem:[%s7 + $0x8] sm:$0xff]
      %v2403 = vld [vmem:[%s7 + $0x10] sm:$0xff]
      %v2404 = vld [vmem:[%s7 + $0x18] sm:$0xff]
      %v2406 = vsel %vm2296, %v2388, 0
      %v2409 = vsel %vm2296, %v2389, 0
      %v2412 = vsel %vm2296, %v2390, 0
      %v2415 = vsel %vm2296, %v2391, 0
      %v2418 = vsel %vm2296, %v2392, 0
      %v2421 = vsel %vm2296, %v2393, 0
      %v2424 = vsel %vm2296, %v2394, 0
      %v2427 = vsel %vm2296, %v2395, 0
      %v2430 = vsel %vm2296, %v2396, 0
      %v2433 = vsel %vm2296, %v2397, 0
      %v2436 = vsel %vm2296, %v2398, 0
      %v2439 = vsel %vm2296, %v2399, 0
      %v2442 = vsel %vm2296, %v2400, 0
      %2444 = vmatpush.msra.mxu0 0.0
      %2445 = vmatpush.msra.mxu0 0.0
      %2446 = vmatpush.msra.mxu0 0.0
      %2447 = vmatpush.msra.mxu0 0.0
      %2448 = vmatpush.msra.mxu0 0.0
      %2449 = vmatpush.msra.mxu0 0.0
      %2450 = vmatpush.msra.mxu0 0.0
      %2451 = vmatpush.msra.mxu0 0.0
      %2452 = vmatpush.msra.mxu0 0.0
      %2453 = vmatpush.msra.mxu0 0.0
      %2454 = vmatpush.msra.mxu0 0.0
      %2455 = vmatpush.msra.mxu0 0.0
      %2456 = vmatpush.msra.mxu0 %v2404
      %2457 = vmatpush.msra.mxu0 %v2403
      %2458 = vmatpush.msra.mxu0 %v2402
      %2459 = vmatpush.msra.mxu0 %v2401
      %2460 = vmatmul.f32.gmra.mxu0 %v2406
      %v2461 = vpop.f32.mrf.mxu0
      %v2462 = vadd.f32 0.0, %v2461
      %2463 = vmatmul.f32.gmra.mxu0 %v2409
      %v2464 = vpop.f32.mrf.mxu0
      %v2465 = vadd.f32 0.0, %v2464
      %2466 = vmatmul.f32.gmra.mxu0 %v2412
      %v2467 = vpop.f32.mrf.mxu0
      %v2468 = vadd.f32 0.0, %v2467
      %2469 = vmatmul.f32.gmra.mxu0 %v2415
      %v2470 = vpop.f32.mrf.mxu0
      %v2471 = vadd.f32 0.0, %v2470
      %2472 = vmatmul.f32.gmra.mxu0 %v2418
      %v2473 = vpop.f32.mrf.mxu0
      %v2474 = vadd.f32 0.0, %v2473
      %2475 = vmatmul.f32.gmra.mxu0 %v2421
      %v2476 = vpop.f32.mrf.mxu0
      %v2477 = vadd.f32 0.0, %v2476
      %2478 = vmatmul.f32.gmra.mxu0 %v2424
      %v2479 = vpop.f32.mrf.mxu0
      %v2480 = vadd.f32 0.0, %v2479
      %2481 = vmatmul.f32.gmra.mxu0 %v2427
      %v2482 = vpop.f32.mrf.mxu0
      %v2483 = vadd.f32 0.0, %v2482
      %2484 = vmatmul.f32.gmra.mxu0 %v2430
      %v2485 = vpop.f32.mrf.mxu0
      %v2486 = vadd.f32 0.0, %v2485
      %2487 = vmatmul.f32.gmra.mxu0 %v2433
      %v2488 = vpop.f32.mrf.mxu0
      %v2489 = vadd.f32 0.0, %v2488
      %2490 = vmatmul.f32.gmra.mxu0 %v2436
      %v2491 = vpop.f32.mrf.mxu0
      %v2492 = vadd.f32 0.0, %v2491
      %2493 = vmatmul.f32.gmra.mxu0 %v2439
      %v2494 = vpop.f32.mrf.mxu0
      %v2495 = vadd.f32 0.0, %v2494
      %2496 = vmatmul.f32.gmra.mxu0 %v2442
      %v2497 = vpop.f32.mrf.mxu0
      %v2498 = vadd.f32 0.0, %v2497
      %2499 = vdwg.mxu0
      %v2500 = vadd.f32 %v2346, %v2462
      %v2501 = vadd.f32 %v2346, %v2465
      %v2502 = vadd.f32 %v2346, %v2468
      %v2503 = vadd.f32 %v2346, %v2471
      %v2504 = vadd.f32 %v2346, %v2474
      %v2505 = vadd.f32 %v2346, %v2477
      %v2506 = vadd.f32 %v2346, %v2480
      %v2507 = vadd.f32 %v2346, %v2483
      %v2508 = vadd.f32 %v2346, %v2486
      %v2509 = vadd.f32 %v2346, %v2489
      %v2510 = vadd.f32 %v2346, %v2492
      %v2511 = vadd.f32 %v2346, %v2495
      %v2512 = vadd.f32 %v2346, %v2498
      %v2513 = vld [vmem:[#allocation4 + $0x1] sm:$0xff]
      %v2514 = vld [vmem:[#allocation4 + $0x9] sm:$0x3]
      %2515 = vst.msk [vmem:[#allocation5] sm:$0xff] %vm2296, %v2513
      %2516 = vst.msk [vmem:[#allocation5 + $0x8] sm:$0x3] %vm2316, %v2514
      %v2517 = vld [vmem:[#allocation4 + $0xd] sm:$0xff]
      %v2518 = vld [vmem:[#allocation4 + $0x15] sm:$0x3]
      %2519 = vst.msk [vmem:[#allocation5 + $0xa] sm:$0xff] %vm2296, %v2517
      %2520 = vst.msk [vmem:[#allocation5 + $0x12] sm:$0x3] %vm2316, %v2518
      %v2521 = vld [vmem:[#allocation4 + $0x19] sm:$0xff]
      %v2522 = vld [vmem:[#allocation4 + $0x21] sm:$0x3]
      %2523 = vst.msk [vmem:[#allocation5 + $0x14] sm:$0xff] %vm2296, %v2521
      %2524 = vst.msk [vmem:[#allocation5 + $0x1c] sm:$0x3] %vm2316, %v2522
      %v2525 = vld [vmem:[#allocation4 + $0x25] sm:$0xff]
      %v2526 = vld [vmem:[#allocation4 + $0x2d] sm:$0x3]
      %2527 = vst.msk [vmem:[#allocation5 + $0x1e] sm:$0xff] %vm2296, %v2525
      %2528 = vst.msk [vmem:[#allocation5 + $0x26] sm:$0x3] %vm2316, %v2526
      %v2529 = vld [vmem:[#allocation4 + $0x31] sm:$0xff]
      %v2530 = vld [vmem:[#allocation4 + $0x39] sm:$0x3]
      %2531 = vst.msk [vmem:[#allocation5 + $0x28] sm:$0xff] %vm2296, %v2529
      %2532 = vst.msk [vmem:[#allocation5 + $0x30] sm:$0x3] %vm2316, %v2530
      %v2533 = vld [vmem:[#allocation4 + $0x3d] sm:$0xff]
      %v2534 = vld [vmem:[#allocation4 + $0x45] sm:$0x3]
      %2535 = vst.msk [vmem:[#allocation5 + $0x32] sm:$0xff] %vm2296, %v2533
      %2536 = vst.msk [vmem:[#allocation5 + $0x3a] sm:$0x3] %vm2316, %v2534
      %v2537 = vld [vmem:[#allocation4 + $0x49] sm:$0xff]
      %v2538 = vld [vmem:[#allocation4 + $0x51] sm:$0x3]
      %2539 = vst.msk [vmem:[#allocation5 + $0x3c] sm:$0xff] %vm2296, %v2537
      %2540 = vst.msk [vmem:[#allocation5 + $0x44] sm:$0x3] %vm2316, %v2538
      %v2541 = vld [vmem:[#allocation4 + $0x55] sm:$0xff]
      %v2542 = vld [vmem:[#allocation4 + $0x5d] sm:$0x3]
      %2543 = vst.msk [vmem:[#allocation5 + $0x46] sm:$0xff] %vm2296, %v2541
      %2544 = vst.msk [vmem:[#allocation5 + $0x4e] sm:$0x3] %vm2316, %v2542
      %v2545 = vld [vmem:[#allocation4 + $0x61] sm:$0xff]
      %v2546 = vld [vmem:[#allocation4 + $0x69] sm:$0x3]
      %2547 = vst.msk [vmem:[#allocation5 + $0x50] sm:$0xff] %vm2296, %v2545
      %2548 = vst.msk [vmem:[#allocation5 + $0x58] sm:$0x3] %vm2316, %v2546
      %v2549 = vld [vmem:[#allocation4 + $0x6d] sm:$0xff]
      %v2550 = vld [vmem:[#allocation4 + $0x75] sm:$0x3]
      %2551 = vst.msk [vmem:[#allocation5 + $0x5a] sm:$0xff] %vm2296, %v2549
      %2552 = vst.msk [vmem:[#allocation5 + $0x62] sm:$0x3] %vm2316, %v2550
      %v2553 = vld [vmem:[#allocation5] sm:$0xff]
      %v2554 = vld [vmem:[#allocation5 + $0x8] sm:$0xff]
      %v2555 = vld [vmem:[#allocation5 + $0x10] sm:$0xff]
      %v2556 = vld [vmem:[#allocation5 + $0x18] sm:$0xff]
      %v2557 = vld [vmem:[#allocation5 + $0x20] sm:$0xff]
      %v2558 = vld [vmem:[#allocation5 + $0x28] sm:$0xff]
      %v2559 = vld [vmem:[#allocation5 + $0x30] sm:$0xff]
      %v2560 = vld [vmem:[#allocation5 + $0x38] sm:$0xff]
      %v2561 = vld [vmem:[#allocation5 + $0x40] sm:$0xff]
      %v2562 = vld [vmem:[#allocation5 + $0x48] sm:$0xff]
      %v2563 = vld [vmem:[#allocation5 + $0x50] sm:$0xff]
      %v2564 = vld [vmem:[#allocation5 + $0x58] sm:$0xff]
      %v2565 = vld [vmem:[#allocation5 + $0x60] sm:$0xf]
      %s2566 = scalar_lea.vmem %s7, 32
      %v2567 = vld [vmem:[%s2566] sm:$0xff]
      %v2568 = vld [vmem:[%s2566 + $0x8] sm:$0xff]
      %v2569 = vld [vmem:[%s2566 + $0x10] sm:$0xff]
      %v2570 = vld [vmem:[%s2566 + $0x18] sm:$0xff]
      %v2572 = vsel %vm2296, %v2553, 0
      %v2575 = vsel %vm2296, %v2554, 0
      %v2578 = vsel %vm2296, %v2555, 0
      %v2581 = vsel %vm2296, %v2556, 0
      %v2584 = vsel %vm2296, %v2557, 0
      %v2587 = vsel %vm2296, %v2558, 0
      %v2590 = vsel %vm2296, %v2559, 0
      %v2593 = vsel %vm2296, %v2560, 0
      %v2596 = vsel %vm2296, %v2561, 0
      %v2599 = vsel %vm2296, %v2562, 0
      %v2602 = vsel %vm2296, %v2563, 0
      %v2605 = vsel %vm2296, %v2564, 0
      %v2608 = vsel %vm2296, %v2565, 0
      %2610 = vmatpush.msra.mxu0 0.0
      %2611 = vmatpush.msra.mxu0 0.0
      %2612 = vmatpush.msra.mxu0 0.0
      %2613 = vmatpush.msra.mxu0 0.0
      %2614 = vmatpush.msra.mxu0 0.0
      %2615 = vmatpush.msra.mxu0 0.0
      %2616 = vmatpush.msra.mxu0 0.0
      %2617 = vmatpush.msra.mxu0 0.0
      %2618 = vmatpush.msra.mxu0 0.0
      %2619 = vmatpush.msra.mxu0 0.0
      %2620 = vmatpush.msra.mxu0 0.0
      %2621 = vmatpush.msra.mxu0 0.0
      %2622 = vmatpush.msra.mxu0 %v2570
      %2623 = vmatpush.msra.mxu0 %v2569
      %2624 = vmatpush.msra.mxu0 %v2568
      %2625 = vmatpush.msra.mxu0 %v2567
      %2626 = vmatmul.f32.gmra.mxu0 %v2572
      %v2627 = vpop.f32.mrf.mxu0
      %v2628 = vadd.f32 0.0, %v2627
      %2629 = vmatmul.f32.gmra.mxu0 %v2575
      %v2630 = vpop.f32.mrf.mxu0
      %v2631 = vadd.f32 0.0, %v2630
      %2632 = vmatmul.f32.gmra.mxu0 %v2578
      %v2633 = vpop.f32.mrf.mxu0
      %v2634 = vadd.f32 0.0, %v2633
      %2635 = vmatmul.f32.gmra.mxu0 %v2581
      %v2636 = vpop.f32.mrf.mxu0
      %v2637 = vadd.f32 0.0, %v2636
      %2638 = vmatmul.f32.gmra.mxu0 %v2584
      %v2639 = vpop.f32.mrf.mxu0
      %v2640 = vadd.f32 0.0, %v2639
      %2641 = vmatmul.f32.gmra.mxu0 %v2587
      %v2642 = vpop.f32.mrf.mxu0
      %v2643 = vadd.f32 0.0, %v2642
      %2644 = vmatmul.f32.gmra.mxu0 %v2590
      %v2645 = vpop.f32.mrf.mxu0
      %v2646 = vadd.f32 0.0, %v2645
      %2647 = vmatmul.f32.gmra.mxu0 %v2593
      %v2648 = vpop.f32.mrf.mxu0
      %v2649 = vadd.f32 0.0, %v2648
      %2650 = vmatmul.f32.gmra.mxu0 %v2596
      %v2651 = vpop.f32.mrf.mxu0
      %v2652 = vadd.f32 0.0, %v2651
      %2653 = vmatmul.f32.gmra.mxu0 %v2599
      %v2654 = vpop.f32.mrf.mxu0
      %v2655 = vadd.f32 0.0, %v2654
      %2656 = vmatmul.f32.gmra.mxu0 %v2602
      %v2657 = vpop.f32.mrf.mxu0
      %v2658 = vadd.f32 0.0, %v2657
      %2659 = vmatmul.f32.gmra.mxu0 %v2605
      %v2660 = vpop.f32.mrf.mxu0
      %v2661 = vadd.f32 0.0, %v2660
      %2662 = vmatmul.f32.gmra.mxu0 %v2608
      %v2663 = vpop.f32.mrf.mxu0
      %v2664 = vadd.f32 0.0, %v2663
      %2665 = vdwg.mxu0
      %v2666 = vadd.f32 %v2500, %v2628
      %v2667 = vadd.f32 %v2501, %v2631
      %v2668 = vadd.f32 %v2502, %v2634
      %v2669 = vadd.f32 %v2503, %v2637
      %v2670 = vadd.f32 %v2504, %v2640
      %v2671 = vadd.f32 %v2505, %v2643
      %v2672 = vadd.f32 %v2506, %v2646
      %v2673 = vadd.f32 %v2507, %v2649
      %v2674 = vadd.f32 %v2508, %v2652
      %v2675 = vadd.f32 %v2509, %v2655
      %v2676 = vadd.f32 %v2510, %v2658
      %v2677 = vadd.f32 %v2511, %v2661
      %v2678 = vadd.f32 %v2512, %v2664
      %v2679 = vld [vmem:[#allocation4 + $0x2] sm:$0xff]
      %v2680 = vld [vmem:[#allocation4 + $0xa] sm:$0x3]
      %2681 = vst.msk [vmem:[#allocation5] sm:$0xff] %vm2296, %v2679
      %2682 = vst.msk [vmem:[#allocation5 + $0x8] sm:$0x3] %vm2316, %v2680
      %v2683 = vld [vmem:[#allocation4 + $0xe] sm:$0xff]
      %v2684 = vld [vmem:[#allocation4 + $0x16] sm:$0x3]
      %2685 = vst.msk [vmem:[#allocation5 + $0xa] sm:$0xff] %vm2296, %v2683
      %2686 = vst.msk [vmem:[#allocation5 + $0x12] sm:$0x3] %vm2316, %v2684
      %v2687 = vld [vmem:[#allocation4 + $0x1a] sm:$0xff]
      %v2688 = vld [vmem:[#allocation4 + $0x22] sm:$0x3]
      %2689 = vst.msk [vmem:[#allocation5 + $0x14] sm:$0xff] %vm2296, %v2687
      %2690 = vst.msk [vmem:[#allocation5 + $0x1c] sm:$0x3] %vm2316, %v2688
      %v2691 = vld [vmem:[#allocation4 + $0x26] sm:$0xff]
      %v2692 = vld [vmem:[#allocation4 + $0x2e] sm:$0x3]
      %2693 = vst.msk [vmem:[#allocation5 + $0x1e] sm:$0xff] %vm2296, %v2691
      %2694 = vst.msk [vmem:[#allocation5 + $0x26] sm:$0x3] %vm2316, %v2692
      %v2695 = vld [vmem:[#allocation4 + $0x32] sm:$0xff]
      %v2696 = vld [vmem:[#allocation4 + $0x3a] sm:$0x3]
      %2697 = vst.msk [vmem:[#allocation5 + $0x28] sm:$0xff] %vm2296, %v2695
      %2698 = vst.msk [vmem:[#allocation5 + $0x30] sm:$0x3] %vm2316, %v2696
      %v2699 = vld [vmem:[#allocation4 + $0x3e] sm:$0xff]
      %v2700 = vld [vmem:[#allocation4 + $0x46] sm:$0x3]
      %2701 = vst.msk [vmem:[#allocation5 + $0x32] sm:$0xff] %vm2296, %v2699
      %2702 = vst.msk [vmem:[#allocation5 + $0x3a] sm:$0x3] %vm2316, %v2700
      %v2703 = vld [vmem:[#allocation4 + $0x4a] sm:$0xff]
      %v2704 = vld [vmem:[#allocation4 + $0x52] sm:$0x3]
      %2705 = vst.msk [vmem:[#allocation5 + $0x3c] sm:$0xff] %vm2296, %v2703
      %2706 = vst.msk [vmem:[#allocation5 + $0x44] sm:$0x3] %vm2316, %v2704
      %v2707 = vld [vmem:[#allocation4 + $0x56] sm:$0xff]
      %v2708 = vld [vmem:[#allocation4 + $0x5e] sm:$0x3]
      %2709 = vst.msk [vmem:[#allocation5 + $0x46] sm:$0xff] %vm2296, %v2707
      %2710 = vst.msk [vmem:[#allocation5 + $0x4e] sm:$0x3] %vm2316, %v2708
      %v2711 = vld [vmem:[#allocation4 + $0x62] sm:$0xff]
      %v2712 = vld [vmem:[#allocation4 + $0x6a] sm:$0x3]
      %2713 = vst.msk [vmem:[#allocation5 + $0x50] sm:$0xff] %vm2296, %v2711
      %2714 = vst.msk [vmem:[#allocation5 + $0x58] sm:$0x3] %vm2316, %v2712
      %v2715 = vld [vmem:[#allocation4 + $0x6e] sm:$0xff]
      %v2716 = vld [vmem:[#allocation4 + $0x76] sm:$0x3]
      %2717 = vst.msk [vmem:[#allocation5 + $0x5a] sm:$0xff] %vm2296, %v2715
      %2718 = vst.msk [vmem:[#allocation5 + $0x62] sm:$0x3] %vm2316, %v2716
      %v2719 = vld [vmem:[#allocation5] sm:$0xff]
      %v2720 = vld [vmem:[#allocation5 + $0x8] sm:$0xff]
      %v2721 = vld [vmem:[#allocation5 + $0x10] sm:$0xff]
      %v2722 = vld [vmem:[#allocation5 + $0x18] sm:$0xff]
      %v2723 = vld [vmem:[#allocation5 + $0x20] sm:$0xff]
      %v2724 = vld [vmem:[#allocation5 + $0x28] sm:$0xff]
      %v2725 = vld [vmem:[#allocation5 + $0x30] sm:$0xff]
      %v2726 = vld [vmem:[#allocation5 + $0x38] sm:$0xff]
      %v2727 = vld [vmem:[#allocation5 + $0x40] sm:$0xff]
      %v2728 = vld [vmem:[#allocation5 + $0x48] sm:$0xff]
      %v2729 = vld [vmem:[#allocation5 + $0x50] sm:$0xff]
      %v2730 = vld [vmem:[#allocation5 + $0x58] sm:$0xff]
      %v2731 = vld [vmem:[#allocation5 + $0x60] sm:$0xf]
      %s2732 = scalar_lea.vmem %s7, 64
      %v2733 = vld [vmem:[%s2732] sm:$0xff]
      %v2734 = vld [vmem:[%s2732 + $0x8] sm:$0xff]
      %v2735 = vld [vmem:[%s2732 + $0x10] sm:$0xff]
      %v2736 = vld [vmem:[%s2732 + $0x18] sm:$0xff]
      %v2738 = vsel %vm2296, %v2719, 0
      %v2741 = vsel %vm2296, %v2720, 0
      %v2744 = vsel %vm2296, %v2721, 0
      %v2747 = vsel %vm2296, %v2722, 0
      %v2750 = vsel %vm2296, %v2723, 0
      %v2753 = vsel %vm2296, %v2724, 0
      %v2756 = vsel %vm2296, %v2725, 0
      %v2759 = vsel %vm2296, %v2726, 0
      %v2762 = vsel %vm2296, %v2727, 0
      %v2765 = vsel %vm2296, %v2728, 0
      %v2768 = vsel %vm2296, %v2729, 0
      %v2771 = vsel %vm2296, %v2730, 0
      %v2774 = vsel %vm2296, %v2731, 0
      %2776 = vmatpush.msra.mxu0 0.0
      %2777 = vmatpush.msra.mxu0 0.0
      %2778 = vmatpush.msra.mxu0 0.0
      %2779 = vmatpush.msra.mxu0 0.0
      %2780 = vmatpush.msra.mxu0 0.0
      %2781 = vmatpush.msra.mxu0 0.0
      %2782 = vmatpush.msra.mxu0 0.0
      %2783 = vmatpush.msra.mxu0 0.0
      %2784 = vmatpush.msra.mxu0 0.0
      %2785 = vmatpush.msra.mxu0 0.0
      %2786 = vmatpush.msra.mxu0 0.0
      %2787 = vmatpush.msra.mxu0 0.0
      %2788 = vmatpush.msra.mxu0 %v2736
      %2789 = vmatpush.msra.mxu0 %v2735
      %2790 = vmatpush.msra.mxu0 %v2734
      %2791 = vmatpush.msra.mxu0 %v2733
      %2792 = vmatmul.f32.gmra.mxu0 %v2738
      %v2793 = vpop.f32.mrf.mxu0
      %v2794 = vadd.f32 0.0, %v2793
      %2795 = vmatmul.f32.gmra.mxu0 %v2741
      %v2796 = vpop.f32.mrf.mxu0
      %v2797 = vadd.f32 0.0, %v2796
      %2798 = vmatmul.f32.gmra.mxu0 %v2744
      %v2799 = vpop.f32.mrf.mxu0
      %v2800 = vadd.f32 0.0, %v2799
      %2801 = vmatmul.f32.gmra.mxu0 %v2747
      %v2802 = vpop.f32.mrf.mxu0
      %v2803 = vadd.f32 0.0, %v2802
      %2804 = vmatmul.f32.gmra.mxu0 %v2750
      %v2805 = vpop.f32.mrf.mxu0
      %v2806 = vadd.f32 0.0, %v2805
      %2807 = vmatmul.f32.gmra.mxu0 %v2753
      %v2808 = vpop.f32.mrf.mxu0
      %v2809 = vadd.f32 0.0, %v2808
      %2810 = vmatmul.f32.gmra.mxu0 %v2756
      %v2811 = vpop.f32.mrf.mxu0
      %v2812 = vadd.f32 0.0, %v2811
      %2813 = vmatmul.f32.gmra.mxu0 %v2759
      %v2814 = vpop.f32.mrf.mxu0
      %v2815 = vadd.f32 0.0, %v2814
      %2816 = vmatmul.f32.gmra.mxu0 %v2762
      %v2817 = vpop.f32.mrf.mxu0
      %v2818 = vadd.f32 0.0, %v2817
      %2819 = vmatmul.f32.gmra.mxu0 %v2765
      %v2820 = vpop.f32.mrf.mxu0
      %v2821 = vadd.f32 0.0, %v2820
      %2822 = vmatmul.f32.gmra.mxu0 %v2768
      %v2823 = vpop.f32.mrf.mxu0
      %v2824 = vadd.f32 0.0, %v2823
      %2825 = vmatmul.f32.gmra.mxu0 %v2771
      %v2826 = vpop.f32.mrf.mxu0
      %v2827 = vadd.f32 0.0, %v2826
      %2828 = vmatmul.f32.gmra.mxu0 %v2774
      %v2829 = vpop.f32.mrf.mxu0
      %v2830 = vadd.f32 0.0, %v2829
      %2831 = vdwg.mxu0
      %v2832 = vadd.f32 %v2666, %v2794
      %v2833 = vadd.f32 %v2667, %v2797
      %v2834 = vadd.f32 %v2668, %v2800
      %v2835 = vadd.f32 %v2669, %v2803
      %v2836 = vadd.f32 %v2670, %v2806
      %v2837 = vadd.f32 %v2671, %v2809
      %v2838 = vadd.f32 %v2672, %v2812
      %v2839 = vadd.f32 %v2673, %v2815
      %v2840 = vadd.f32 %v2674, %v2818
      %v2841 = vadd.f32 %v2675, %v2821
      %v2842 = vadd.f32 %v2676, %v2824
      %v2843 = vadd.f32 %v2677, %v2827
      %v2844 = vadd.f32 %v2678, %v2830
      %v2845 = vld [vmem:[#allocation4 + $0xc] sm:$0xff]
      %v2846 = vld [vmem:[#allocation4 + $0x14] sm:$0x3]
      %2847 = vst.msk [vmem:[#allocation5] sm:$0xff] %vm2296, %v2845
      %2848 = vst.msk [vmem:[#allocation5 + $0x8] sm:$0x3] %vm2316, %v2846
      %v2849 = vld [vmem:[#allocation4 + $0x18] sm:$0xff]
      %v2850 = vld [vmem:[#allocation4 + $0x20] sm:$0x3]
      %2851 = vst.msk [vmem:[#allocation5 + $0xa] sm:$0xff] %vm2296, %v2849
      %2852 = vst.msk [vmem:[#allocation5 + $0x12] sm:$0x3] %vm2316, %v2850
      %v2853 = vld [vmem:[#allocation4 + $0x24] sm:$0xff]
      %v2854 = vld [vmem:[#allocation4 + $0x2c] sm:$0x3]
      %2855 = vst.msk [vmem:[#allocation5 + $0x14] sm:$0xff] %vm2296, %v2853
      %2856 = vst.msk [vmem:[#allocation5 + $0x1c] sm:$0x3] %vm2316, %v2854
      %v2857 = vld [vmem:[#allocation4 + $0x30] sm:$0xff]
      %v2858 = vld [vmem:[#allocation4 + $0x38] sm:$0x3]
      %2859 = vst.msk [vmem:[#allocation5 + $0x1e] sm:$0xff] %vm2296, %v2857
      %2860 = vst.msk [vmem:[#allocation5 + $0x26] sm:$0x3] %vm2316, %v2858
      %v2861 = vld [vmem:[#allocation4 + $0x3c] sm:$0xff]
      %v2862 = vld [vmem:[#allocation4 + $0x44] sm:$0x3]
      %2863 = vst.msk [vmem:[#allocation5 + $0x28] sm:$0xff] %vm2296, %v2861
      %2864 = vst.msk [vmem:[#allocation5 + $0x30] sm:$0x3] %vm2316, %v2862
      %v2865 = vld [vmem:[#allocation4 + $0x48] sm:$0xff]
      %v2866 = vld [vmem:[#allocation4 + $0x50] sm:$0x3]
      %2867 = vst.msk [vmem:[#allocation5 + $0x32] sm:$0xff] %vm2296, %v2865
      %2868 = vst.msk [vmem:[#allocation5 + $0x3a] sm:$0x3] %vm2316, %v2866
      %v2869 = vld [vmem:[#allocation4 + $0x54] sm:$0xff]
      %v2870 = vld [vmem:[#allocation4 + $0x5c] sm:$0x3]
      %2871 = vst.msk [vmem:[#allocation5 + $0x3c] sm:$0xff] %vm2296, %v2869
      %2872 = vst.msk [vmem:[#allocation5 + $0x44] sm:$0x3] %vm2316, %v2870
      %v2873 = vld [vmem:[#allocation4 + $0x60] sm:$0xff]
      %v2874 = vld [vmem:[#allocation4 + $0x68] sm:$0x3]
      %2875 = vst.msk [vmem:[#allocation5 + $0x46] sm:$0xff] %vm2296, %v2873
      %2876 = vst.msk [vmem:[#allocation5 + $0x4e] sm:$0x3] %vm2316, %v2874
      %v2877 = vld [vmem:[#allocation4 + $0x6c] sm:$0xff]
      %v2878 = vld [vmem:[#allocation4 + $0x74] sm:$0x3]
      %2879 = vst.msk [vmem:[#allocation5 + $0x50] sm:$0xff] %vm2296, %v2877
      %2880 = vst.msk [vmem:[#allocation5 + $0x58] sm:$0x3] %vm2316, %v2878
      %v2881 = vld [vmem:[#allocation4 + $0x78] sm:$0xff]
      %v2882 = vld [vmem:[#allocation4 + $0x80] sm:$0x3]
      %2883 = vst.msk [vmem:[#allocation5 + $0x5a] sm:$0xff] %vm2296, %v2881
      %2884 = vst.msk [vmem:[#allocation5 + $0x62] sm:$0x3] %vm2316, %v2882
      %v2885 = vld [vmem:[#allocation5] sm:$0xff]
      %v2886 = vld [vmem:[#allocation5 + $0x8] sm:$0xff]
      %v2887 = vld [vmem:[#allocation5 + $0x10] sm:$0xff]
      %v2888 = vld [vmem:[#allocation5 + $0x18] sm:$0xff]
      %v2889 = vld [vmem:[#allocation5 + $0x20] sm:$0xff]
      %v2890 = vld [vmem:[#allocation5 + $0x28] sm:$0xff]
      %v2891 = vld [vmem:[#allocation5 + $0x30] sm:$0xff]
      %v2892 = vld [vmem:[#allocation5 + $0x38] sm:$0xff]
      %v2893 = vld [vmem:[#allocation5 + $0x40] sm:$0xff]
      %v2894 = vld [vmem:[#allocation5 + $0x48] sm:$0xff]
      %v2895 = vld [vmem:[#allocation5 + $0x50] sm:$0xff]
      %v2896 = vld [vmem:[#allocation5 + $0x58] sm:$0xff]
      %v2897 = vld [vmem:[#allocation5 + $0x60] sm:$0xf]
      %s2898 = scalar_lea.vmem %s7, 96
      %v2899 = vld [vmem:[%s2898] sm:$0xff]
      %v2900 = vld [vmem:[%s2898 + $0x8] sm:$0xff]
      %v2901 = vld [vmem:[%s2898 + $0x10] sm:$0xff]
      %v2902 = vld [vmem:[%s2898 + $0x18] sm:$0xff]
      %v2904 = vsel %vm2296, %v2885, 0
      %v2907 = vsel %vm2296, %v2886, 0
      %v2910 = vsel %vm2296, %v2887, 0
      %v2913 = vsel %vm2296, %v2888, 0
      %v2916 = vsel %vm2296, %v2889, 0
      %v2919 = vsel %vm2296, %v2890, 0
      %v2922 = vsel %vm2296, %v2891, 0
      %v2925 = vsel %vm2296, %v2892, 0
      %v2928 = vsel %vm2296, %v2893, 0
      %v2931 = vsel %vm2296, %v2894, 0
      %v2934 = vsel %vm2296, %v2895, 0
      %v2937 = vsel %vm2296, %v2896, 0
      %v2940 = vsel %vm2296, %v2897, 0
      %2942 = vmatpush.msra.mxu0 0.0
      %2943 = vmatpush.msra.mxu0 0.0
      %2944 = vmatpush.msra.mxu0 0.0
      %2945 = vmatpush.msra.mxu0 0.0
      %2946 = vmatpush.msra.mxu0 0.0
      %2947 = vmatpush.msra.mxu0 0.0
      %2948 = vmatpush.msra.mxu0 0.0
      %2949 = vmatpush.msra.mxu0 0.0
      %2950 = vmatpush.msra.mxu0 0.0
      %2951 = vmatpush.msra.mxu0 0.0
      %2952 = vmatpush.msra.mxu0 0.0
      %2953 = vmatpush.msra.mxu0 0.0
      %2954 = vmatpush.msra.mxu0 %v2902
      %2955 = vmatpush.msra.mxu0 %v2901
      %2956 = vmatpush.msra.mxu0 %v2900
      %2957 = vmatpush.msra.mxu0 %v2899
      %2958 = vmatmul.f32.gmra.mxu0 %v2904
      %v2959 = vpop.f32.mrf.mxu0
      %v2960 = vadd.f32 0.0, %v2959
      %2961 = vmatmul.f32.gmra.mxu0 %v2907
      %v2962 = vpop.f32.mrf.mxu0
      %v2963 = vadd.f32 0.0, %v2962
      %2964 = vmatmul.f32.gmra.mxu0 %v2910
      %v2965 = vpop.f32.mrf.mxu0
      %v2966 = vadd.f32 0.0, %v2965
      %2967 = vmatmul.f32.gmra.mxu0 %v2913
      %v2968 = vpop.f32.mrf.mxu0
      %v2969 = vadd.f32 0.0, %v2968
      %2970 = vmatmul.f32.gmra.mxu0 %v2916
      %v2971 = vpop.f32.mrf.mxu0
      %v2972 = vadd.f32 0.0, %v2971
      %2973 = vmatmul.f32.gmra.mxu0 %v2919
      %v2974 = vpop.f32.mrf.mxu0
      %v2975 = vadd.f32 0.0, %v2974
      %2976 = vmatmul.f32.gmra.mxu0 %v2922
      %v2977 = vpop.f32.mrf.mxu0
      %v2978 = vadd.f32 0.0, %v2977
      %2979 = vmatmul.f32.gmra.mxu0 %v2925
      %v2980 = vpop.f32.mrf.mxu0
      %v2981 = vadd.f32 0.0, %v2980
      %2982 = vmatmul.f32.gmra.mxu0 %v2928
      %v2983 = vpop.f32.mrf.mxu0
      %v2984 = vadd.f32 0.0, %v2983
      %2985 = vmatmul.f32.gmra.mxu0 %v2931
      %v2986 = vpop.f32.mrf.mxu0
      %v2987 = vadd.f32 0.0, %v2986
      %2988 = vmatmul.f32.gmra.mxu0 %v2934
      %v2989 = vpop.f32.mrf.mxu0
      %v2990 = vadd.f32 0.0, %v2989
      %2991 = vmatmul.f32.gmra.mxu0 %v2937
      %v2992 = vpop.f32.mrf.mxu0
      %v2993 = vadd.f32 0.0, %v2992
      %2994 = vmatmul.f32.gmra.mxu0 %v2940
      %v2995 = vpop.f32.mrf.mxu0
      %v2996 = vadd.f32 0.0, %v2995
      %2997 = vdwg.mxu0
      %v2998 = vadd.f32 %v2832, %v2960
      %v2999 = vadd.f32 %v2833, %v2963
      %v3000 = vadd.f32 %v2834, %v2966
      %v3001 = vadd.f32 %v2835, %v2969
      %v3002 = vadd.f32 %v2836, %v2972
      %v3003 = vadd.f32 %v2837, %v2975
      %v3004 = vadd.f32 %v2838, %v2978
      %v3005 = vadd.f32 %v2839, %v2981
      %v3006 = vadd.f32 %v2840, %v2984
      %v3007 = vadd.f32 %v2841, %v2987
      %v3008 = vadd.f32 %v2842, %v2990
      %v3009 = vadd.f32 %v2843, %v2993
      %v3010 = vadd.f32 %v2844, %v2996
      %v3011 = vld [vmem:[#allocation4 + $0xd] sm:$0xff]
      %v3012 = vld [vmem:[#allocation4 + $0x15] sm:$0x3]
      %3013 = vst.msk [vmem:[#allocation5] sm:$0xff] %vm2296, %v3011
      %3014 = vst.msk [vmem:[#allocation5 + $0x8] sm:$0x3] %vm2316, %v3012
      %v3015 = vld [vmem:[#allocation4 + $0x19] sm:$0xff]
      %v3016 = vld [vmem:[#allocation4 + $0x21] sm:$0x3]
      %3017 = vst.msk [vmem:[#allocation5 + $0xa] sm:$0xff] %vm2296, %v3015
      %3018 = vst.msk [vmem:[#allocation5 + $0x12] sm:$0x3] %vm2316, %v3016
      %v3019 = vld [vmem:[#allocation4 + $0x25] sm:$0xff]
      %v3020 = vld [vmem:[#allocation4 + $0x2d] sm:$0x3]
      %3021 = vst.msk [vmem:[#allocation5 + $0x14] sm:$0xff] %vm2296, %v3019
      %3022 = vst.msk [vmem:[#allocation5 + $0x1c] sm:$0x3] %vm2316, %v3020
      %v3023 = vld [vmem:[#allocation4 + $0x31] sm:$0xff]
      %v3024 = vld [vmem:[#allocation4 + $0x39] sm:$0x3]
      %3025 = vst.msk [vmem:[#allocation5 + $0x1e] sm:$0xff] %vm2296, %v3023
      %3026 = vst.msk [vmem:[#allocation5 + $0x26] sm:$0x3] %vm2316, %v3024
      %v3027 = vld [vmem:[#allocation4 + $0x3d] sm:$0xff]
      %v3028 = vld [vmem:[#allocation4 + $0x45] sm:$0x3]
      %3029 = vst.msk [vmem:[#allocation5 + $0x28] sm:$0xff] %vm2296, %v3027
      %3030 = vst.msk [vmem:[#allocation5 + $0x30] sm:$0x3] %vm2316, %v3028
      %v3031 = vld [vmem:[#allocation4 + $0x49] sm:$0xff]
      %v3032 = vld [vmem:[#allocation4 + $0x51] sm:$0x3]
      %3033 = vst.msk [vmem:[#allocation5 + $0x32] sm:$0xff] %vm2296, %v3031
      %3034 = vst.msk [vmem:[#allocation5 + $0x3a] sm:$0x3] %vm2316, %v3032
      %v3035 = vld [vmem:[#allocation4 + $0x55] sm:$0xff]
      %v3036 = vld [vmem:[#allocation4 + $0x5d] sm:$0x3]
      %3037 = vst.msk [vmem:[#allocation5 + $0x3c] sm:$0xff] %vm2296, %v3035
      %3038 = vst.msk [vmem:[#allocation5 + $0x44] sm:$0x3] %vm2316, %v3036
      %v3039 = vld [vmem:[#allocation4 + $0x61] sm:$0xff]
      %v3040 = vld [vmem:[#allocation4 + $0x69] sm:$0x3]
      %3041 = vst.msk [vmem:[#allocation5 + $0x46] sm:$0xff] %vm2296, %v3039
      %3042 = vst.msk [vmem:[#allocation5 + $0x4e] sm:$0x3] %vm2316, %v3040
      %v3043 = vld [vmem:[#allocation4 + $0x6d] sm:$0xff]
      %v3044 = vld [vmem:[#allocation4 + $0x75] sm:$0x3]
      %3045 = vst.msk [vmem:[#allocation5 + $0x50] sm:$0xff] %vm2296, %v3043
      %3046 = vst.msk [vmem:[#allocation5 + $0x58] sm:$0x3] %vm2316, %v3044
      %v3047 = vld [vmem:[#allocation4 + $0x79] sm:$0xff]
      %v3048 = vld [vmem:[#allocation4 + $0x81] sm:$0x3]
      %3049 = vst.msk [vmem:[#allocation5 + $0x5a] sm:$0xff] %vm2296, %v3047
      %3050 = vst.msk [vmem:[#allocation5 + $0x62] sm:$0x3] %vm2316, %v3048
      %v3051 = vld [vmem:[#allocation5] sm:$0xff]
      %v3052 = vld [vmem:[#allocation5 + $0x8] sm:$0xff]
      %v3053 = vld [vmem:[#allocation5 + $0x10] sm:$0xff]
      %v3054 = vld [vmem:[#allocation5 + $0x18] sm:$0xff]
      %v3055 = vld [vmem:[#allocation5 + $0x20] sm:$0xff]
      %v3056 = vld [vmem:[#allocation5 + $0x28] sm:$0xff]
      %v3057 = vld [vmem:[#allocation5 + $0x30] sm:$0xff]
      %v3058 = vld [vmem:[#allocation5 + $0x38] sm:$0xff]
      %v3059 = vld [vmem:[#allocation5 + $0x40] sm:$0xff]
      %v3060 = vld [vmem:[#allocation5 + $0x48] sm:$0xff]
      %v3061 = vld [vmem:[#allocation5 + $0x50] sm:$0xff]
      %v3062 = vld [vmem:[#allocation5 + $0x58] sm:$0xff]
      %v3063 = vld [vmem:[#allocation5 + $0x60] sm:$0xf]
      %s3064 = scalar_lea.vmem %s7, 128
      %v3065 = vld [vmem:[%s3064] sm:$0xff]
      %v3066 = vld [vmem:[%s3064 + $0x8] sm:$0xff]
      %v3067 = vld [vmem:[%s3064 + $0x10] sm:$0xff]
      %v3068 = vld [vmem:[%s3064 + $0x18] sm:$0xff]
      %v3070 = vsel %vm2296, %v3051, 0
      %v3073 = vsel %vm2296, %v3052, 0
      %v3076 = vsel %vm2296, %v3053, 0
      %v3079 = vsel %vm2296, %v3054, 0
      %v3082 = vsel %vm2296, %v3055, 0
      %v3085 = vsel %vm2296, %v3056, 0
      %v3088 = vsel %vm2296, %v3057, 0
      %v3091 = vsel %vm2296, %v3058, 0
      %v3094 = vsel %vm2296, %v3059, 0
      %v3097 = vsel %vm2296, %v3060, 0
      %v3100 = vsel %vm2296, %v3061, 0
      %v3103 = vsel %vm2296, %v3062, 0
      %v3106 = vsel %vm2296, %v3063, 0
      %3108 = vmatpush.msra.mxu0 0.0
      %3109 = vmatpush.msra.mxu0 0.0
      %3110 = vmatpush.msra.mxu0 0.0
      %3111 = vmatpush.msra.mxu0 0.0
      %3112 = vmatpush.msra.mxu0 0.0
      %3113 = vmatpush.msra.mxu0 0.0
      %3114 = vmatpush.msra.mxu0 0.0
      %3115 = vmatpush.msra.mxu0 0.0
      %3116 = vmatpush.msra.mxu0 0.0
      %3117 = vmatpush.msra.mxu0 0.0
      %3118 = vmatpush.msra.mxu0 0.0
      %3119 = vmatpush.msra.mxu0 0.0
      %3120 = vmatpush.msra.mxu0 %v3068
      %3121 = vmatpush.msra.mxu0 %v3067
      %3122 = vmatpush.msra.mxu0 %v3066
      %3123 = vmatpush.msra.mxu0 %v3065
      %3124 = vmatmul.f32.gmra.mxu0 %v3070
      %v3125 = vpop.f32.mrf.mxu0
      %v3126 = vadd.f32 0.0, %v3125
      %3127 = vmatmul.f32.gmra.mxu0 %v3073
      %v3128 = vpop.f32.mrf.mxu0
      %v3129 = vadd.f32 0.0, %v3128
      %3130 = vmatmul.f32.gmra.mxu0 %v3076
      %v3131 = vpop.f32.mrf.mxu0
      %v3132 = vadd.f32 0.0, %v3131
      %3133 = vmatmul.f32.gmra.mxu0 %v3079
      %v3134 = vpop.f32.mrf.mxu0
      %v3135 = vadd.f32 0.0, %v3134
      %3136 = vmatmul.f32.gmra.mxu0 %v3082
      %v3137 = vpop.f32.mrf.mxu0
      %v3138 = vadd.f32 0.0, %v3137
      %3139 = vmatmul.f32.gmra.mxu0 %v3085
      %v3140 = vpop.f32.mrf.mxu0
      %v3141 = vadd.f32 0.0, %v3140
      %3142 = vmatmul.f32.gmra.mxu0 %v3088
      %v3143 = vpop.f32.mrf.mxu0
      %v3144 = vadd.f32 0.0, %v3143
      %3145 = vmatmul.f32.gmra.mxu0 %v3091
      %v3146 = vpop.f32.mrf.mxu0
      %v3147 = vadd.f32 0.0, %v3146
      %3148 = vmatmul.f32.gmra.mxu0 %v3094
      %v3149 = vpop.f32.mrf.mxu0
      %v3150 = vadd.f32 0.0, %v3149
      %3151 = vmatmul.f32.gmra.mxu0 %v3097
      %v3152 = vpop.f32.mrf.mxu0
      %v3153 = vadd.f32 0.0, %v3152
      %3154 = vmatmul.f32.gmra.mxu0 %v3100
      %v3155 = vpop.f32.mrf.mxu0
      %v3156 = vadd.f32 0.0, %v3155
      %3157 = vmatmul.f32.gmra.mxu0 %v3103
      %v3158 = vpop.f32.mrf.mxu0
      %v3159 = vadd.f32 0.0, %v3158
      %3160 = vmatmul.f32.gmra.mxu0 %v3106
      %v3161 = vpop.f32.mrf.mxu0
      %v3162 = vadd.f32 0.0, %v3161
      %3163 = vdwg.mxu0
      %v3164 = vadd.f32 %v2998, %v3126
      %v3165 = vadd.f32 %v2999, %v3129
      %v3166 = vadd.f32 %v3000, %v3132
      %v3167 = vadd.f32 %v3001, %v3135
      %v3168 = vadd.f32 %v3002, %v3138
      %v3169 = vadd.f32 %v3003, %v3141
      %v3170 = vadd.f32 %v3004, %v3144
      %v3171 = vadd.f32 %v3005, %v3147
      %v3172 = vadd.f32 %v3006, %v3150
      %v3173 = vadd.f32 %v3007, %v3153
      %v3174 = vadd.f32 %v3008, %v3156
      %v3175 = vadd.f32 %v3009, %v3159
      %v3176 = vadd.f32 %v3010, %v3162
      %v3177 = vld [vmem:[#allocation4 + $0xe] sm:$0xff]
      %v3178 = vld [vmem:[#allocation4 + $0x16] sm:$0x3]
      %3179 = vst.msk [vmem:[#allocation5] sm:$0xff] %vm2296, %v3177
      %3180 = vst.msk [vmem:[#allocation5 + $0x8] sm:$0x3] %vm2316, %v3178
      %v3181 = vld [vmem:[#allocation4 + $0x1a] sm:$0xff]
      %v3182 = vld [vmem:[#allocation4 + $0x22] sm:$0x3]
      %3183 = vst.msk [vmem:[#allocation5 + $0xa] sm:$0xff] %vm2296, %v3181
      %3184 = vst.msk [vmem:[#allocation5 + $0x12] sm:$0x3] %vm2316, %v3182
      %v3185 = vld [vmem:[#allocation4 + $0x26] sm:$0xff]
      %v3186 = vld [vmem:[#allocation4 + $0x2e] sm:$0x3]
      %3187 = vst.msk [vmem:[#allocation5 + $0x14] sm:$0xff] %vm2296, %v3185
      %3188 = vst.msk [vmem:[#allocation5 + $0x1c] sm:$0x3] %vm2316, %v3186
      %v3189 = vld [vmem:[#allocation4 + $0x32] sm:$0xff]
      %v3190 = vld [vmem:[#allocation4 + $0x3a] sm:$0x3]
      %3191 = vst.msk [vmem:[#allocation5 + $0x1e] sm:$0xff] %vm2296, %v3189
      %3192 = vst.msk [vmem:[#allocation5 + $0x26] sm:$0x3] %vm2316, %v3190
      %v3193 = vld [vmem:[#allocation4 + $0x3e] sm:$0xff]
      %v3194 = vld [vmem:[#allocation4 + $0x46] sm:$0x3]
      %3195 = vst.msk [vmem:[#allocation5 + $0x28] sm:$0xff] %vm2296, %v3193
      %3196 = vst.msk [vmem:[#allocation5 + $0x30] sm:$0x3] %vm2316, %v3194
      %v3197 = vld [vmem:[#allocation4 + $0x4a] sm:$0xff]
      %v3198 = vld [vmem:[#allocation4 + $0x52] sm:$0x3]
      %3199 = vst.msk [vmem:[#allocation5 + $0x32] sm:$0xff] %vm2296, %v3197
      %3200 = vst.msk [vmem:[#allocation5 + $0x3a] sm:$0x3] %vm2316, %v3198
      %v3201 = vld [vmem:[#allocation4 + $0x56] sm:$0xff]
      %v3202 = vld [vmem:[#allocation4 + $0x5e] sm:$0x3]
      %3203 = vst.msk [vmem:[#allocation5 + $0x3c] sm:$0xff] %vm2296, %v3201
      %3204 = vst.msk [vmem:[#allocation5 + $0x44] sm:$0x3] %vm2316, %v3202
      %v3205 = vld [vmem:[#allocation4 + $0x62] sm:$0xff]
      %v3206 = vld [vmem:[#allocation4 + $0x6a] sm:$0x3]
      %3207 = vst.msk [vmem:[#allocation5 + $0x46] sm:$0xff] %vm2296, %v3205
      %3208 = vst.msk [vmem:[#allocation5 + $0x4e] sm:$0x3] %vm2316, %v3206
      %v3209 = vld [vmem:[#allocation4 + $0x6e] sm:$0xff]
      %v3210 = vld [vmem:[#allocation4 + $0x76] sm:$0x3]
      %3211 = vst.msk [vmem:[#allocation5 + $0x50] sm:$0xff] %vm2296, %v3209
      %3212 = vst.msk [vmem:[#allocation5 + $0x58] sm:$0x3] %vm2316, %v3210
      %v3213 = vld [vmem:[#allocation4 + $0x7a] sm:$0xff]
      %v3214 = vld [vmem:[#allocation4 + $0x82] sm:$0x3]
      %3215 = vst.msk [vmem:[#allocation5 + $0x5a] sm:$0xff] %vm2296, %v3213
      %3216 = vst.msk [vmem:[#allocation5 + $0x62] sm:$0x3] %vm2316, %v3214
      %v3217 = vld [vmem:[#allocation5] sm:$0xff]
      %v3218 = vld [vmem:[#allocation5 + $0x8] sm:$0xff]
      %v3219 = vld [vmem:[#allocation5 + $0x10] sm:$0xff]
      %v3220 = vld [vmem:[#allocation5 + $0x18] sm:$0xff]
      %v3221 = vld [vmem:[#allocation5 + $0x20] sm:$0xff]
      %v3222 = vld [vmem:[#allocation5 + $0x28] sm:$0xff]
      %v3223 = vld [vmem:[#allocation5 + $0x30] sm:$0xff]
      %v3224 = vld [vmem:[#allocation5 + $0x38] sm:$0xff]
      %v3225 = vld [vmem:[#allocation5 + $0x40] sm:$0xff]
      %v3226 = vld [vmem:[#allocation5 + $0x48] sm:$0xff]
      %v3227 = vld [vmem:[#allocation5 + $0x50] sm:$0xff]
      %v3228 = vld [vmem:[#allocation5 + $0x58] sm:$0xff]
      %v3229 = vld [vmem:[#allocation5 + $0x60] sm:$0xf]
      %s3230 = scalar_lea.vmem %s7, 160
      %v3231 = vld [vmem:[%s3230] sm:$0xff]
      %v3232 = vld [vmem:[%s3230 + $0x8] sm:$0xff]
      %v3233 = vld [vmem:[%s3230 + $0x10] sm:$0xff]
      %v3234 = vld [vmem:[%s3230 + $0x18] sm:$0xff]
      %v3236 = vsel %vm2296, %v3217, 0
      %v3239 = vsel %vm2296, %v3218, 0
      %v3242 = vsel %vm2296, %v3219, 0
      %v3245 = vsel %vm2296, %v3220, 0
      %v3248 = vsel %vm2296, %v3221, 0
      %v3251 = vsel %vm2296, %v3222, 0
      %v3254 = vsel %vm2296, %v3223, 0
      %v3257 = vsel %vm2296, %v3224, 0
      %v3260 = vsel %vm2296, %v3225, 0
      %v3263 = vsel %vm2296, %v3226, 0
      %v3266 = vsel %vm2296, %v3227, 0
      %v3269 = vsel %vm2296, %v3228, 0
      %v3272 = vsel %vm2296, %v3229, 0
      %3274 = vmatpush.msra.mxu0 0.0
      %3275 = vmatpush.msra.mxu0 0.0
      %3276 = vmatpush.msra.mxu0 0.0
      %3277 = vmatpush.msra.mxu0 0.0
      %3278 = vmatpush.msra.mxu0 0.0
      %3279 = vmatpush.msra.mxu0 0.0
      %3280 = vmatpush.msra.mxu0 0.0
      %3281 = vmatpush.msra.mxu0 0.0
      %3282 = vmatpush.msra.mxu0 0.0
      %3283 = vmatpush.msra.mxu0 0.0
      %3284 = vmatpush.msra.mxu0 0.0
      %3285 = vmatpush.msra.mxu0 0.0
      %3286 = vmatpush.msra.mxu0 %v3234
      %3287 = vmatpush.msra.mxu0 %v3233
      %3288 = vmatpush.msra.mxu0 %v3232
      %3289 = vmatpush.msra.mxu0 %v3231
      %3290 = vmatmul.f32.gmra.mxu0 %v3236
      %v3291 = vpop.f32.mrf.mxu0
      %v3292 = vadd.f32 0.0, %v3291
      %3293 = vmatmul.f32.gmra.mxu0 %v3239
      %v3294 = vpop.f32.mrf.mxu0
      %v3295 = vadd.f32 0.0, %v3294
      %3296 = vmatmul.f32.gmra.mxu0 %v3242
      %v3297 = vpop.f32.mrf.mxu0
      %v3298 = vadd.f32 0.0, %v3297
      %3299 = vmatmul.f32.gmra.mxu0 %v3245
      %v3300 = vpop.f32.mrf.mxu0
      %v3301 = vadd.f32 0.0, %v3300
      %3302 = vmatmul.f32.gmra.mxu0 %v3248
      %v3303 = vpop.f32.mrf.mxu0
      %v3304 = vadd.f32 0.0, %v3303
      %3305 = vmatmul.f32.gmra.mxu0 %v3251
      %v3306 = vpop.f32.mrf.mxu0
      %v3307 = vadd.f32 0.0, %v3306
      %3308 = vmatmul.f32.gmra.mxu0 %v3254
      %v3309 = vpop.f32.mrf.mxu0
      %v3310 = vadd.f32 0.0, %v3309
      %3311 = vmatmul.f32.gmra.mxu0 %v3257
      %v3312 = vpop.f32.mrf.mxu0
      %v3313 = vadd.f32 0.0, %v3312
      %3314 = vmatmul.f32.gmra.mxu0 %v3260
      %v3315 = vpop.f32.mrf.mxu0
      %v3316 = vadd.f32 0.0, %v3315
      %3317 = vmatmul.f32.gmra.mxu0 %v3263
      %v3318 = vpop.f32.mrf.mxu0
      %v3319 = vadd.f32 0.0, %v3318
      %3320 = vmatmul.f32.gmra.mxu0 %v3266
      %v3321 = vpop.f32.mrf.mxu0
      %v3322 = vadd.f32 0.0, %v3321
      %3323 = vmatmul.f32.gmra.mxu0 %v3269
      %v3324 = vpop.f32.mrf.mxu0
      %v3325 = vadd.f32 0.0, %v3324
      %3326 = vmatmul.f32.gmra.mxu0 %v3272
      %v3327 = vpop.f32.mrf.mxu0
      %v3328 = vadd.f32 0.0, %v3327
      %3329 = vdwg.mxu0
      %v3330 = vadd.f32 %v3164, %v3292
      %v3331 = vadd.f32 %v3165, %v3295
      %v3332 = vadd.f32 %v3166, %v3298
      %v3333 = vadd.f32 %v3167, %v3301
      %v3334 = vadd.f32 %v3168, %v3304
      %v3335 = vadd.f32 %v3169, %v3307
      %v3336 = vadd.f32 %v3170, %v3310
      %v3337 = vadd.f32 %v3171, %v3313
      %v3338 = vadd.f32 %v3172, %v3316
      %v3339 = vadd.f32 %v3173, %v3319
      %v3340 = vadd.f32 %v3174, %v3322
      %v3341 = vadd.f32 %v3175, %v3325
      %v3342 = vadd.f32 %v3176, %v3328
      %v3343 = vld [vmem:[#allocation4 + $0x18] sm:$0xff]
      %v3344 = vld [vmem:[#allocation4 + $0x20] sm:$0x3]
      %3345 = vst.msk [vmem:[#allocation5] sm:$0xff] %vm2296, %v3343
      %3346 = vst.msk [vmem:[#allocation5 + $0x8] sm:$0x3] %vm2316, %v3344
      %v3347 = vld [vmem:[#allocation4 + $0x24] sm:$0xff]
      %v3348 = vld [vmem:[#allocation4 + $0x2c] sm:$0x3]
      %3349 = vst.msk [vmem:[#allocation5 + $0xa] sm:$0xff] %vm2296, %v3347
      %3350 = vst.msk [vmem:[#allocation5 + $0x12] sm:$0x3] %vm2316, %v3348
      %v3351 = vld [vmem:[#allocation4 + $0x30] sm:$0xff]
      %v3352 = vld [vmem:[#allocation4 + $0x38] sm:$0x3]
      %3353 = vst.msk [vmem:[#allocation5 + $0x14] sm:$0xff] %vm2296, %v3351
      %3354 = vst.msk [vmem:[#allocation5 + $0x1c] sm:$0x3] %vm2316, %v3352
      %v3355 = vld [vmem:[#allocation4 + $0x3c] sm:$0xff]
      %v3356 = vld [vmem:[#allocation4 + $0x44] sm:$0x3]
      %3357 = vst.msk [vmem:[#allocation5 + $0x1e] sm:$0xff] %vm2296, %v3355
      %3358 = vst.msk [vmem:[#allocation5 + $0x26] sm:$0x3] %vm2316, %v3356
      %v3359 = vld [vmem:[#allocation4 + $0x48] sm:$0xff]
      %v3360 = vld [vmem:[#allocation4 + $0x50] sm:$0x3]
      %3361 = vst.msk [vmem:[#allocation5 + $0x28] sm:$0xff] %vm2296, %v3359
      %3362 = vst.msk [vmem:[#allocation5 + $0x30] sm:$0x3] %vm2316, %v3360
      %v3363 = vld [vmem:[#allocation4 + $0x54] sm:$0xff]
      %v3364 = vld [vmem:[#allocation4 + $0x5c] sm:$0x3]
      %3365 = vst.msk [vmem:[#allocation5 + $0x32] sm:$0xff] %vm2296, %v3363
      %3366 = vst.msk [vmem:[#allocation5 + $0x3a] sm:$0x3] %vm2316, %v3364
      %v3367 = vld [vmem:[#allocation4 + $0x60] sm:$0xff]
      %v3368 = vld [vmem:[#allocation4 + $0x68] sm:$0x3]
      %3369 = vst.msk [vmem:[#allocation5 + $0x3c] sm:$0xff] %vm2296, %v3367
      %3370 = vst.msk [vmem:[#allocation5 + $0x44] sm:$0x3] %vm2316, %v3368
      %v3371 = vld [vmem:[#allocation4 + $0x6c] sm:$0xff]
      %v3372 = vld [vmem:[#allocation4 + $0x74] sm:$0x3]
      %3373 = vst.msk [vmem:[#allocation5 + $0x46] sm:$0xff] %vm2296, %v3371
      %3374 = vst.msk [vmem:[#allocation5 + $0x4e] sm:$0x3] %vm2316, %v3372
      %v3375 = vld [vmem:[#allocation4 + $0x78] sm:$0xff]
      %v3376 = vld [vmem:[#allocation4 + $0x80] sm:$0x3]
      %3377 = vst.msk [vmem:[#allocation5 + $0x50] sm:$0xff] %vm2296, %v3375
      %3378 = vst.msk [vmem:[#allocation5 + $0x58] sm:$0x3] %vm2316, %v3376
      %v3379 = vld [vmem:[#allocation4 + $0x84] sm:$0xff]
      %v3380 = vld [vmem:[#allocation4 + $0x8c] sm:$0x3]
      %3381 = vst.msk [vmem:[#allocation5 + $0x5a] sm:$0xff] %vm2296, %v3379
      %3382 = vst.msk [vmem:[#allocation5 + $0x62] sm:$0x3] %vm2316, %v3380
      %v3383 = vld [vmem:[#allocation5] sm:$0xff]
      %v3384 = vld [vmem:[#allocation5 + $0x8] sm:$0xff]
      %v3385 = vld [vmem:[#allocation5 + $0x10] sm:$0xff]
      %v3386 = vld [vmem:[#allocation5 + $0x18] sm:$0xff]
      %v3387 = vld [vmem:[#allocation5 + $0x20] sm:$0xff]
      %v3388 = vld [vmem:[#allocation5 + $0x28] sm:$0xff]
      %v3389 = vld [vmem:[#allocation5 + $0x30] sm:$0xff]
      %v3390 = vld [vmem:[#allocation5 + $0x38] sm:$0xff]
      %v3391 = vld [vmem:[#allocation5 + $0x40] sm:$0xff]
      %v3392 = vld [vmem:[#allocation5 + $0x48] sm:$0xff]
      %v3393 = vld [vmem:[#allocation5 + $0x50] sm:$0xff]
      %v3394 = vld [vmem:[#allocation5 + $0x58] sm:$0xff]
      %v3395 = vld [vmem:[#allocation5 + $0x60] sm:$0xf]
      %s3396 = scalar_lea.vmem %s7, 192
      %v3397 = vld [vmem:[%s3396] sm:$0xff]
      %v3398 = vld [vmem:[%s3396 + $0x8] sm:$0xff]
      %v3399 = vld [vmem:[%s3396 + $0x10] sm:$0xff]
      %v3400 = vld [vmem:[%s3396 + $0x18] sm:$0xff]
      %v3402 = vsel %vm2296, %v3383, 0
      %v3405 = vsel %vm2296, %v3384, 0
      %v3408 = vsel %vm2296, %v3385, 0
      %v3411 = vsel %vm2296, %v3386, 0
      %v3414 = vsel %vm2296, %v3387, 0
      %v3417 = vsel %vm2296, %v3388, 0
      %v3420 = vsel %vm2296, %v3389, 0
      %v3423 = vsel %vm2296, %v3390, 0
      %v3426 = vsel %vm2296, %v3391, 0
      %v3429 = vsel %vm2296, %v3392, 0
      %v3432 = vsel %vm2296, %v3393, 0
      %v3435 = vsel %vm2296, %v3394, 0
      %v3438 = vsel %vm2296, %v3395, 0
      %3440 = vmatpush.msra.mxu0 0.0
      %3441 = vmatpush.msra.mxu0 0.0
      %3442 = vmatpush.msra.mxu0 0.0
      %3443 = vmatpush.msra.mxu0 0.0
      %3444 = vmatpush.msra.mxu0 0.0
      %3445 = vmatpush.msra.mxu0 0.0
      %3446 = vmatpush.msra.mxu0 0.0
      %3447 = vmatpush.msra.mxu0 0.0
      %3448 = vmatpush.msra.mxu0 0.0
      %3449 = vmatpush.msra.mxu0 0.0
      %3450 = vmatpush.msra.mxu0 0.0
      %3451 = vmatpush.msra.mxu0 0.0
      %3452 = vmatpush.msra.mxu0 %v3400
      %3453 = vmatpush.msra.mxu0 %v3399
      %3454 = vmatpush.msra.mxu0 %v3398
      %3455 = vmatpush.msra.mxu0 %v3397
      %3456 = vmatmul.f32.gmra.mxu0 %v3402
      %v3457 = vpop.f32.mrf.mxu0
      %v3458 = vadd.f32 0.0, %v3457
      %3459 = vmatmul.f32.gmra.mxu0 %v3405
      %v3460 = vpop.f32.mrf.mxu0
      %v3461 = vadd.f32 0.0, %v3460
      %3462 = vmatmul.f32.gmra.mxu0 %v3408
      %v3463 = vpop.f32.mrf.mxu0
      %v3464 = vadd.f32 0.0, %v3463
      %3465 = vmatmul.f32.gmra.mxu0 %v3411
      %v3466 = vpop.f32.mrf.mxu0
      %v3467 = vadd.f32 0.0, %v3466
      %3468 = vmatmul.f32.gmra.mxu0 %v3414
      %v3469 = vpop.f32.mrf.mxu0
      %v3470 = vadd.f32 0.0, %v3469
      %3471 = vmatmul.f32.gmra.mxu0 %v3417
      %v3472 = vpop.f32.mrf.mxu0
      %v3473 = vadd.f32 0.0, %v3472
      %3474 = vmatmul.f32.gmra.mxu0 %v3420
      %v3475 = vpop.f32.mrf.mxu0
      %v3476 = vadd.f32 0.0, %v3475
      %3477 = vmatmul.f32.gmra.mxu0 %v3423
      %v3478 = vpop.f32.mrf.mxu0
      %v3479 = vadd.f32 0.0, %v3478
      %3480 = vmatmul.f32.gmra.mxu0 %v3426
      %v3481 = vpop.f32.mrf.mxu0
      %v3482 = vadd.f32 0.0, %v3481
      %3483 = vmatmul.f32.gmra.mxu0 %v3429
      %v3484 = vpop.f32.mrf.mxu0
      %v3485 = vadd.f32 0.0, %v3484
      %3486 = vmatmul.f32.gmra.mxu0 %v3432
      %v3487 = vpop.f32.mrf.mxu0
      %v3488 = vadd.f32 0.0, %v3487
      %3489 = vmatmul.f32.gmra.mxu0 %v3435
      %v3490 = vpop.f32.mrf.mxu0
      %v3491 = vadd.f32 0.0, %v3490
      %3492 = vmatmul.f32.gmra.mxu0 %v3438
      %v3493 = vpop.f32.mrf.mxu0
      %v3494 = vadd.f32 0.0, %v3493
      %3495 = vdwg.mxu0
      %v3496 = vadd.f32 %v3330, %v3458
      %v3497 = vadd.f32 %v3331, %v3461
      %v3498 = vadd.f32 %v3332, %v3464
      %v3499 = vadd.f32 %v3333, %v3467
      %v3500 = vadd.f32 %v3334, %v3470
      %v3501 = vadd.f32 %v3335, %v3473
      %v3502 = vadd.f32 %v3336, %v3476
      %v3503 = vadd.f32 %v3337, %v3479
      %v3504 = vadd.f32 %v3338, %v3482
      %v3505 = vadd.f32 %v3339, %v3485
      %v3506 = vadd.f32 %v3340, %v3488
      %v3507 = vadd.f32 %v3341, %v3491
      %v3508 = vadd.f32 %v3342, %v3494
      %v3509 = vld [vmem:[#allocation4 + $0x19] sm:$0xff]
      %v3510 = vld [vmem:[#allocation4 + $0x21] sm:$0x3]
      %3511 = vst.msk [vmem:[#allocation5] sm:$0xff] %vm2296, %v3509
      %3512 = vst.msk [vmem:[#allocation5 + $0x8] sm:$0x3] %vm2316, %v3510
      %v3513 = vld [vmem:[#allocation4 + $0x25] sm:$0xff]
      %v3514 = vld [vmem:[#allocation4 + $0x2d] sm:$0x3]
      %3515 = vst.msk [vmem:[#allocation5 + $0xa] sm:$0xff] %vm2296, %v3513
      %3516 = vst.msk [vmem:[#allocation5 + $0x12] sm:$0x3] %vm2316, %v3514
      %v3517 = vld [vmem:[#allocation4 + $0x31] sm:$0xff]
      %v3518 = vld [vmem:[#allocation4 + $0x39] sm:$0x3]
      %3519 = vst.msk [vmem:[#allocation5 + $0x14] sm:$0xff] %vm2296, %v3517
      %3520 = vst.msk [vmem:[#allocation5 + $0x1c] sm:$0x3] %vm2316, %v3518
      %v3521 = vld [vmem:[#allocation4 + $0x3d] sm:$0xff]
      %v3522 = vld [vmem:[#allocation4 + $0x45] sm:$0x3]
      %3523 = vst.msk [vmem:[#allocation5 + $0x1e] sm:$0xff] %vm2296, %v3521
      %3524 = vst.msk [vmem:[#allocation5 + $0x26] sm:$0x3] %vm2316, %v3522
      %v3525 = vld [vmem:[#allocation4 + $0x49] sm:$0xff]
      %v3526 = vld [vmem:[#allocation4 + $0x51] sm:$0x3]
      %3527 = vst.msk [vmem:[#allocation5 + $0x28] sm:$0xff] %vm2296, %v3525
      %3528 = vst.msk [vmem:[#allocation5 + $0x30] sm:$0x3] %vm2316, %v3526
      %v3529 = vld [vmem:[#allocation4 + $0x55] sm:$0xff]
      %v3530 = vld [vmem:[#allocation4 + $0x5d] sm:$0x3]
      %3531 = vst.msk [vmem:[#allocation5 + $0x32] sm:$0xff] %vm2296, %v3529
      %3532 = vst.msk [vmem:[#allocation5 + $0x3a] sm:$0x3] %vm2316, %v3530
      %v3533 = vld [vmem:[#allocation4 + $0x61] sm:$0xff]
      %v3534 = vld [vmem:[#allocation4 + $0x69] sm:$0x3]
      %3535 = vst.msk [vmem:[#allocation5 + $0x3c] sm:$0xff] %vm2296, %v3533
      %3536 = vst.msk [vmem:[#allocation5 + $0x44] sm:$0x3] %vm2316, %v3534
      %v3537 = vld [vmem:[#allocation4 + $0x6d] sm:$0xff]
      %v3538 = vld [vmem:[#allocation4 + $0x75] sm:$0x3]
      %3539 = vst.msk [vmem:[#allocation5 + $0x46] sm:$0xff] %vm2296, %v3537
      %3540 = vst.msk [vmem:[#allocation5 + $0x4e] sm:$0x3] %vm2316, %v3538
      %v3541 = vld [vmem:[#allocation4 + $0x79] sm:$0xff]
      %v3542 = vld [vmem:[#allocation4 + $0x81] sm:$0x3]
      %3543 = vst.msk [vmem:[#allocation5 + $0x50] sm:$0xff] %vm2296, %v3541
      %3544 = vst.msk [vmem:[#allocation5 + $0x58] sm:$0x3] %vm2316, %v3542
      %v3545 = vld [vmem:[#allocation4 + $0x85] sm:$0xff]
      %v3546 = vld [vmem:[#allocation4 + $0x8d] sm:$0x3]
      %3547 = vst.msk [vmem:[#allocation5 + $0x5a] sm:$0xff] %vm2296, %v3545
      %3548 = vst.msk [vmem:[#allocation5 + $0x62] sm:$0x3] %vm2316, %v3546
      %v3549 = vld [vmem:[#allocation5] sm:$0xff]
      %v3550 = vld [vmem:[#allocation5 + $0x8] sm:$0xff]
      %v3551 = vld [vmem:[#allocation5 + $0x10] sm:$0xff]
      %v3552 = vld [vmem:[#allocation5 + $0x18] sm:$0xff]
      %v3553 = vld [vmem:[#allocation5 + $0x20] sm:$0xff]
      %v3554 = vld [vmem:[#allocation5 + $0x28] sm:$0xff]
      %v3555 = vld [vmem:[#allocation5 + $0x30] sm:$0xff]
      %v3556 = vld [vmem:[#allocation5 + $0x38] sm:$0xff]
      %v3557 = vld [vmem:[#allocation5 + $0x40] sm:$0xff]
      %v3558 = vld [vmem:[#allocation5 + $0x48] sm:$0xff]
      %v3559 = vld [vmem:[#allocation5 + $0x50] sm:$0xff]
      %v3560 = vld [vmem:[#allocation5 + $0x58] sm:$0xff]
      %v3561 = vld [vmem:[#allocation5 + $0x60] sm:$0xf]
      %s3562 = scalar_lea.vmem %s7, 224
      %v3563 = vld [vmem:[%s3562] sm:$0xff]
      %v3564 = vld [vmem:[%s3562 + $0x8] sm:$0xff]
      %v3565 = vld [vmem:[%s3562 + $0x10] sm:$0xff]
      %v3566 = vld [vmem:[%s3562 + $0x18] sm:$0xff]
      %v3568 = vsel %vm2296, %v3549, 0
      %v3571 = vsel %vm2296, %v3550, 0
      %v3574 = vsel %vm2296, %v3551, 0
      %v3577 = vsel %vm2296, %v3552, 0
      %v3580 = vsel %vm2296, %v3553, 0
      %v3583 = vsel %vm2296, %v3554, 0
      %v3586 = vsel %vm2296, %v3555, 0
      %v3589 = vsel %vm2296, %v3556, 0
      %v3592 = vsel %vm2296, %v3557, 0
      %v3595 = vsel %vm2296, %v3558, 0
      %v3598 = vsel %vm2296, %v3559, 0
      %v3601 = vsel %vm2296, %v3560, 0
      %v3604 = vsel %vm2296, %v3561, 0
      %3606 = vmatpush.msra.mxu0 0.0
      %3607 = vmatpush.msra.mxu0 0.0
      %3608 = vmatpush.msra.mxu0 0.0
      %3609 = vmatpush.msra.mxu0 0.0
      %3610 = vmatpush.msra.mxu0 0.0
      %3611 = vmatpush.msra.mxu0 0.0
      %3612 = vmatpush.msra.mxu0 0.0
      %3613 = vmatpush.msra.mxu0 0.0
      %3614 = vmatpush.msra.mxu0 0.0
      %3615 = vmatpush.msra.mxu0 0.0
      %3616 = vmatpush.msra.mxu0 0.0
      %3617 = vmatpush.msra.mxu0 0.0
      %3618 = vmatpush.msra.mxu0 %v3566
      %3619 = vmatpush.msra.mxu0 %v3565
      %3620 = vmatpush.msra.mxu0 %v3564
      %3621 = vmatpush.msra.mxu0 %v3563
      %3622 = vmatmul.f32.gmra.mxu0 %v3568
      %v3623 = vpop.f32.mrf.mxu0
      %v3624 = vadd.f32 0.0, %v3623
      %3625 = vmatmul.f32.gmra.mxu0 %v3571
      %v3626 = vpop.f32.mrf.mxu0
      %v3627 = vadd.f32 0.0, %v3626
      %3628 = vmatmul.f32.gmra.mxu0 %v3574
      %v3629 = vpop.f32.mrf.mxu0
      %v3630 = vadd.f32 0.0, %v3629
      %3631 = vmatmul.f32.gmra.mxu0 %v3577
      %v3632 = vpop.f32.mrf.mxu0
      %v3633 = vadd.f32 0.0, %v3632
      %3634 = vmatmul.f32.gmra.mxu0 %v3580
      %v3635 = vpop.f32.mrf.mxu0
      %v3636 = vadd.f32 0.0, %v3635
      %3637 = vmatmul.f32.gmra.mxu0 %v3583
      %v3638 = vpop.f32.mrf.mxu0
      %v3639 = vadd.f32 0.0, %v3638
      %3640 = vmatmul.f32.gmra.mxu0 %v3586
      %v3641 = vpop.f32.mrf.mxu0
      %v3642 = vadd.f32 0.0, %v3641
      %3643 = vmatmul.f32.gmra.mxu0 %v3589
      %v3644 = vpop.f32.mrf.mxu0
      %v3645 = vadd.f32 0.0, %v3644
      %3646 = vmatmul.f32.gmra.mxu0 %v3592
      %v3647 = vpop.f32.mrf.mxu0
      %v3648 = vadd.f32 0.0, %v3647
      %3649 = vmatmul.f32.gmra.mxu0 %v3595
      %v3650 = vpop.f32.mrf.mxu0
      %v3651 = vadd.f32 0.0, %v3650
      %3652 = vmatmul.f32.gmra.mxu0 %v3598
      %v3653 = vpop.f32.mrf.mxu0
      %v3654 = vadd.f32 0.0, %v3653
      %3655 = vmatmul.f32.gmra.mxu0 %v3601
      %v3656 = vpop.f32.mrf.mxu0
      %v3657 = vadd.f32 0.0, %v3656
      %3658 = vmatmul.f32.gmra.mxu0 %v3604
      %v3659 = vpop.f32.mrf.mxu0
      %v3660 = vadd.f32 0.0, %v3659
      %3661 = vdwg.mxu0
      %v3662 = vadd.f32 %v3496, %v3624
      %v3663 = vadd.f32 %v3497, %v3627
      %v3664 = vadd.f32 %v3498, %v3630
      %v3665 = vadd.f32 %v3499, %v3633
      %v3666 = vadd.f32 %v3500, %v3636
      %v3667 = vadd.f32 %v3501, %v3639
      %v3668 = vadd.f32 %v3502, %v3642
      %v3669 = vadd.f32 %v3503, %v3645
      %v3670 = vadd.f32 %v3504, %v3648
      %v3671 = vadd.f32 %v3505, %v3651
      %v3672 = vadd.f32 %v3506, %v3654
      %v3673 = vadd.f32 %v3507, %v3657
      %v3674 = vadd.f32 %v3508, %v3660
      %v3675 = vld [vmem:[#allocation4 + $0x1a] sm:$0xff]
      %v3676 = vld [vmem:[#allocation4 + $0x22] sm:$0x3]
      %3677 = vst.msk [vmem:[#allocation5] sm:$0xff] %vm2296, %v3675
      %3678 = vst.msk [vmem:[#allocation5 + $0x8] sm:$0x3] %vm2316, %v3676
      %v3679 = vld [vmem:[#allocation4 + $0x26] sm:$0xff]
      %v3680 = vld [vmem:[#allocation4 + $0x2e] sm:$0x3]
      %3681 = vst.msk [vmem:[#allocation5 + $0xa] sm:$0xff] %vm2296, %v3679
      %3682 = vst.msk [vmem:[#allocation5 + $0x12] sm:$0x3] %vm2316, %v3680
      %v3683 = vld [vmem:[#allocation4 + $0x32] sm:$0xff]
      %v3684 = vld [vmem:[#allocation4 + $0x3a] sm:$0x3]
      %3685 = vst.msk [vmem:[#allocation5 + $0x14] sm:$0xff] %vm2296, %v3683
      %3686 = vst.msk [vmem:[#allocation5 + $0x1c] sm:$0x3] %vm2316, %v3684
      %v3687 = vld [vmem:[#allocation4 + $0x3e] sm:$0xff]
      %v3688 = vld [vmem:[#allocation4 + $0x46] sm:$0x3]
      %3689 = vst.msk [vmem:[#allocation5 + $0x1e] sm:$0xff] %vm2296, %v3687
      %3690 = vst.msk [vmem:[#allocation5 + $0x26] sm:$0x3] %vm2316, %v3688
      %v3691 = vld [vmem:[#allocation4 + $0x4a] sm:$0xff]
      %v3692 = vld [vmem:[#allocation4 + $0x52] sm:$0x3]
      %3693 = vst.msk [vmem:[#allocation5 + $0x28] sm:$0xff] %vm2296, %v3691
      %3694 = vst.msk [vmem:[#allocation5 + $0x30] sm:$0x3] %vm2316, %v3692
      %v3695 = vld [vmem:[#allocation4 + $0x56] sm:$0xff]
      %v3696 = vld [vmem:[#allocation4 + $0x5e] sm:$0x3]
      %3697 = vst.msk [vmem:[#allocation5 + $0x32] sm:$0xff] %vm2296, %v3695
      %3698 = vst.msk [vmem:[#allocation5 + $0x3a] sm:$0x3] %vm2316, %v3696
      %v3699 = vld [vmem:[#allocation4 + $0x62] sm:$0xff]
      %v3700 = vld [vmem:[#allocation4 + $0x6a] sm:$0x3]
      %3701 = vst.msk [vmem:[#allocation5 + $0x3c] sm:$0xff] %vm2296, %v3699
      %3702 = vst.msk [vmem:[#allocation5 + $0x44] sm:$0x3] %vm2316, %v3700
      %v3703 = vld [vmem:[#allocation4 + $0x6e] sm:$0xff]
      %v3704 = vld [vmem:[#allocation4 + $0x76] sm:$0x3]
      %3705 = vst.msk [vmem:[#allocation5 + $0x46] sm:$0xff] %vm2296, %v3703
      %3706 = vst.msk [vmem:[#allocation5 + $0x4e] sm:$0x3] %vm2316, %v3704
      %v3707 = vld [vmem:[#allocation4 + $0x7a] sm:$0xff]
      %v3708 = vld [vmem:[#allocation4 + $0x82] sm:$0x3]
      %3709 = vst.msk [vmem:[#allocation5 + $0x50] sm:$0xff] %vm2296, %v3707
      %3710 = vst.msk [vmem:[#allocation5 + $0x58] sm:$0x3] %vm2316, %v3708
      %v3711 = vld [vmem:[#allocation4 + $0x86] sm:$0xff]
      %v3712 = vld [vmem:[#allocation4 + $0x8e] sm:$0x3]
      %3713 = vst.msk [vmem:[#allocation5 + $0x5a] sm:$0xff] %vm2296, %v3711
      %3714 = vst.msk [vmem:[#allocation5 + $0x62] sm:$0x3] %vm2316, %v3712
      %v3715 = vld [vmem:[#allocation5] sm:$0xff]
      %v3716 = vld [vmem:[#allocation5 + $0x8] sm:$0xff]
      %v3717 = vld [vmem:[#allocation5 + $0x10] sm:$0xff]
      %v3718 = vld [vmem:[#allocation5 + $0x18] sm:$0xff]
      %v3719 = vld [vmem:[#allocation5 + $0x20] sm:$0xff]
      %v3720 = vld [vmem:[#allocation5 + $0x28] sm:$0xff]
      %v3721 = vld [vmem:[#allocation5 + $0x30] sm:$0xff]
      %v3722 = vld [vmem:[#allocation5 + $0x38] sm:$0xff]
      %v3723 = vld [vmem:[#allocation5 + $0x40] sm:$0xff]
      %v3724 = vld [vmem:[#allocation5 + $0x48] sm:$0xff]
      %v3725 = vld [vmem:[#allocation5 + $0x50] sm:$0xff]
      %v3726 = vld [vmem:[#allocation5 + $0x58] sm:$0xff]
      %v3727 = vld [vmem:[#allocation5 + $0x60] sm:$0xf]
      %s3728 = scalar_lea.vmem %s7, 256
      %v3729 = vld [vmem:[%s3728] sm:$0xff]
      %v3730 = vld [vmem:[%s3728 + $0x8] sm:$0xff]
      %v3731 = vld [vmem:[%s3728 + $0x10] sm:$0xff]
      %v3732 = vld [vmem:[%s3728 + $0x18] sm:$0xff]
      %v3734 = vsel %vm2296, %v3715, 0
      %v3737 = vsel %vm2296, %v3716, 0
      %v3740 = vsel %vm2296, %v3717, 0
      %v3743 = vsel %vm2296, %v3718, 0
      %v3746 = vsel %vm2296, %v3719, 0
      %v3749 = vsel %vm2296, %v3720, 0
      %v3752 = vsel %vm2296, %v3721, 0
      %v3755 = vsel %vm2296, %v3722, 0
      %v3758 = vsel %vm2296, %v3723, 0
      %v3761 = vsel %vm2296, %v3724, 0
      %v3764 = vsel %vm2296, %v3725, 0
      %v3767 = vsel %vm2296, %v3726, 0
      %v3770 = vsel %vm2296, %v3727, 0
      %3772 = vmatpush.msra.mxu0 0.0
      %3773 = vmatpush.msra.mxu0 0.0
      %3774 = vmatpush.msra.mxu0 0.0
      %3775 = vmatpush.msra.mxu0 0.0
      %3776 = vmatpush.msra.mxu0 0.0
      %3777 = vmatpush.msra.mxu0 0.0
      %3778 = vmatpush.msra.mxu0 0.0
      %3779 = vmatpush.msra.mxu0 0.0
      %3780 = vmatpush.msra.mxu0 0.0
      %3781 = vmatpush.msra.mxu0 0.0
      %3782 = vmatpush.msra.mxu0 0.0
      %3783 = vmatpush.msra.mxu0 0.0
      %3784 = vmatpush.msra.mxu0 %v3732
      %3785 = vmatpush.msra.mxu0 %v3731
      %3786 = vmatpush.msra.mxu0 %v3730
      %3787 = vmatpush.msra.mxu0 %v3729
      %3788 = vmatmul.f32.gmra.mxu0 %v3734
      %v3789 = vpop.f32.mrf.mxu0
      %v3790 = vadd.f32 0.0, %v3789
      %3791 = vmatmul.f32.gmra.mxu0 %v3737
      %v3792 = vpop.f32.mrf.mxu0
      %v3793 = vadd.f32 0.0, %v3792
      %3794 = vmatmul.f32.gmra.mxu0 %v3740
      %v3795 = vpop.f32.mrf.mxu0
      %v3796 = vadd.f32 0.0, %v3795
      %3797 = vmatmul.f32.gmra.mxu0 %v3743
      %v3798 = vpop.f32.mrf.mxu0
      %v3799 = vadd.f32 0.0, %v3798
      %3800 = vmatmul.f32.gmra.mxu0 %v3746
      %v3801 = vpop.f32.mrf.mxu0
      %v3802 = vadd.f32 0.0, %v3801
      %3803 = vmatmul.f32.gmra.mxu0 %v3749
      %v3804 = vpop.f32.mrf.mxu0
      %v3805 = vadd.f32 0.0, %v3804
      %3806 = vmatmul.f32.gmra.mxu0 %v3752
      %v3807 = vpop.f32.mrf.mxu0
      %v3808 = vadd.f32 0.0, %v3807
      %3809 = vmatmul.f32.gmra.mxu0 %v3755
      %v3810 = vpop.f32.mrf.mxu0
      %v3811 = vadd.f32 0.0, %v3810
      %3812 = vmatmul.f32.gmra.mxu0 %v3758
      %v3813 = vpop.f32.mrf.mxu0
      %v3814 = vadd.f32 0.0, %v3813
      %3815 = vmatmul.f32.gmra.mxu0 %v3761
      %v3816 = vpop.f32.mrf.mxu0
      %v3817 = vadd.f32 0.0, %v3816
      %3818 = vmatmul.f32.gmra.mxu0 %v3764
      %v3819 = vpop.f32.mrf.mxu0
      %v3820 = vadd.f32 0.0, %v3819
      %3821 = vmatmul.f32.gmra.mxu0 %v3767
      %v3822 = vpop.f32.mrf.mxu0
      %v3823 = vadd.f32 0.0, %v3822
      %3824 = vmatmul.f32.gmra.mxu0 %v3770
      %v3825 = vpop.f32.mrf.mxu0
      %v3826 = vadd.f32 0.0, %v3825
      %3827 = vdwg.mxu0
      %v3828 = vadd.f32 %v3662, %v3790
      %v3829 = vadd.f32 %v3663, %v3793
      %v3830 = vadd.f32 %v3664, %v3796
      %v3831 = vadd.f32 %v3665, %v3799
      %v3832 = vadd.f32 %v3666, %v3802
      %v3833 = vadd.f32 %v3667, %v3805
      %v3834 = vadd.f32 %v3668, %v3808
      %v3835 = vadd.f32 %v3669, %v3811
      %v3836 = vadd.f32 %v3670, %v3814
      %v3837 = vadd.f32 %v3671, %v3817
      %v3838 = vadd.f32 %v3672, %v3820
      %v3839 = vadd.f32 %v3673, %v3823
      %v3840 = vadd.f32 %v3674, %v3826
      %v3841 = vmax.f32 %v3828, 0.0
      %v3842 = vmax.f32 %v3829, 0.0
      %v3843 = vmax.f32 %v3830, 0.0
      %v3844 = vmax.f32 %v3831, 0.0
      %v3845 = vmax.f32 %v3832, 0.0
      %v3846 = vmax.f32 %v3833, 0.0
      %v3847 = vmax.f32 %v3834, 0.0
      %v3848 = vmax.f32 %v3835, 0.0
      %v3849 = vmax.f32 %v3836, 0.0
      %v3850 = vmax.f32 %v3837, 0.0
      %v3851 = vmax.f32 %v3838, 0.0
      %v3852 = vmax.f32 %v3839, 0.0
      %v3853 = vmax.f32 %v3840, 0.0
      %3854 = vst.msk [vmem:[%s332] sm:$0xff] %vm2218, %v3841
      %3855 = vst.msk [vmem:[%s332 + $0x8] sm:$0xff] %vm2218, %v3842
      %3856 = vst.msk [vmem:[%s332 + $0x10] sm:$0xff] %vm2218, %v3843
      %3857 = vst.msk [vmem:[%s332 + $0x18] sm:$0xff] %vm2218, %v3844
      %3858 = vst.msk [vmem:[%s332 + $0x20] sm:$0xff] %vm2218, %v3845
      %3859 = vst.msk [vmem:[%s332 + $0x28] sm:$0xff] %vm2218, %v3846
      %3860 = vst.msk [vmem:[%s332 + $0x30] sm:$0xff] %vm2218, %v3847
      %3861 = vst.msk [vmem:[%s332 + $0x38] sm:$0xff] %vm2218, %v3848
      %3862 = vst.msk [vmem:[%s332 + $0x40] sm:$0xff] %vm2218, %v3849
      %3863 = vst.msk [vmem:[%s332 + $0x48] sm:$0xff] %vm2218, %v3850
      %3864 = vst.msk [vmem:[%s332 + $0x50] sm:$0xff] %vm2218, %v3851
      %3865 = vst.msk [vmem:[%s332 + $0x58] sm:$0xff] %vm2218, %v3852
      %vm3866 = vcmask 519168
      %3867 = vst.msk [vmem:[%s332 + $0x60] sm:$0xf] %vm3866, %v3853
      %p3868 = scmp.lt.s32.totalorder %s20, 1
      %s3869 = scalar_select %p3868, %s20, 1
      %s3870 = smul.addr %s3869, 13
      %s3871 = smul.addr %s3870, 8
      %s3872 = scalar_lea.vmem %s9, %s3871
      // Predicated region
      $region57: #{fused_model_forward.1} parent=55 // pred_check
        %p3873 = pneg %p232
      $region58: #{fused_model_forward.1} parent=55 // pred_check_branch
        %3875 = sbr.rel (%p3873) target = $region60
      $region59: #{fused_model_forward.1} parent=55 // pred_region
        _
      $region60: #{fused_model_forward.1} parent=55 // pred_fallthru
        _
    $region56: #{fused_model_forward.1} parent=5 // pred_fallthru
      _
    %p3876 = scmp.le.s32.totalorder 2, %s15
    // Predicated region
    $region61: #{fused_model_forward.1} parent=5 // pred_check
      %p3877 = pneg %p3876
    $region62: #{fused_model_forward.1} parent=5 // pred_check_branch
      %3879 = sbr.rel (%p3877) target = $region64
    $region63: #{fused_model_forward.1} parent=5 // pred_region
      %s3880 = ssub.s32 %s15, 2
      // Predicated region
      $region65: #{fused_model_forward.1} parent=63 // pred_check
        %p3881 = pneg %p238
      $region66: #{fused_model_forward.1} parent=63 // pred_check_branch
        %3883 = sbr.rel (%p3881) target = $region68
      $region67: #{fused_model_forward.1} parent=63 // pred_region
        %p3884 = scmp.lt.s32.totalorder %s21, 1
        %s3885 = scalar_select %p3884, %s21, 1
        %s3886 = smul.addr %s3885, 13
        %s3887 = smul.addr %s3886, 8
        %s3888 = scalar_lea.vmem %s9, %s3887
      $region68: #{fused_model_forward.1} parent=63 // pred_fallthru
        _
    $region64: #{fused_model_forward.1} parent=5 // pred_fallthru
      _
  $region6: #{fused_model_forward.1} parent=0 // loop_footer
    %s19 = sadd.s32 1, %s15
  $region7: #{fused_model_forward.1} parent=0 // loop_footer_branch
    %14 = sbr.rel target = $region3
  $region8: #{fused_model_forward.1} parent=0 // loop_exit
    _

</llo_original>
